<compile_context>
chip_gen: v6e
topology: v6e:2x2x1
jax: 0.10.0
libtpu: 0.0.40
codegen_flags: <defaults>
</compile_context>

<pallas_src>
import functools
import math

import jax
import jax.numpy as jnp
from jax import lax
from jax.experimental import pallas as pl
from jax.experimental.pallas import tpu as pltpu

NUM_GROUPS = 32          # normalization(dim) == GroupNorm32(32, dim)
EPS = 1e-5
_SQRT1_2 = 0.7071067811865476
_SQRT_2_OVER_PI = 0.7978845608028654

_HAS_BUFFERED = hasattr(pl, "Buffered")


# --------------------------------------------------------------------------
# helpers
# --------------------------------------------------------------------------
def _round_up(x, m):
    return ((x + m - 1) // m) * m


def _vmem_capacity_bytes():
    """Per-core VMEM capacity; conservative (v7x, 64 MiB) fallback."""
    try:
        return int(pltpu.get_tpu_info().vmem_capacity_bytes)
    except Exception:
        return 64 * 1024 * 1024


def _weights_bytes(c, inner, single_buffer):
    w = (inner * c * 2) + (c * inner * 2) + inner * 4 + c * 4 + 2 * NUM_GROUPS * c * 4
    return w if single_buffer else 2 * w


def _interm_bytes(c, inner, lanes):
    # (inner, lanes) f32 + bf16 copy, plus a few (c, lanes) f32 temporaries.
    return inner * lanes * 6 + c * lanes * 12


def _pick_lane_tile(s128, cap, fixed_bytes, per_lane_fn, budget):
    """Largest multiple of 128 that divides s128, <= cap, and fits the budget."""
    t = min(s128, max(cap, 128))
    t = (t // 128) * 128
    while t > 128 and (s128 % t != 0 or fixed_bytes + per_lane_fn(t) > budget):
        t -= 128
    return max(t, 128)


def _pick_bt(b, c):
    # Small-C: block several batch rows per grid step to amortize per-step
    # overhead and MXU fill/drain (biggest relative win on v6e/v7x).
    if c >= 256:
        return 1
    for cand in (8, 4, 2):
        if cand <= b and b % cand == 0:
            return cand
    return 1


def _spec(shape, index_map, single):
    # Single-buffer grid-invariant / slowly-varying inputs when supported.
    if single and _HAS_BUFFERED:
        try:
            return pl.BlockSpec(shape, index_map, pipeline_mode=pl.Buffered(1))
        except TypeError:
            pass
    return pl.BlockSpec(shape, index_map)


def _run(call_fn):
    # Prefer single-buffered invariant inputs (halves weight residency in
    # VMEM, matters on v7x's 64 MiB/TC); fall back gracefully if unsupported.
    if _HAS_BUFFERED:
        try:
            return call_fn(True)
        except Exception:
            pass
    return call_fn(False)


# --------------------------------------------------------------------------
# GELU variants
# --------------------------------------------------------------------------
def _erf(x):
    # Abramowitz & Stegun 7.1.26 (|abs err| < 1.5e-7); full-precision EUP
    # reciprocal keeps near-exact parity with PyTorch's erf GELU.
    p = 0.3275911
    a1, a2, a3, a4, a5 = (0.254829592, -0.284496736, 1.421413741,
                          -1.453152027, 1.061405429)
    sgn = jnp.where(x < 0.0, -1.0, 1.0)
    ax = jnp.abs(x)
    t = pl.reciprocal(1.0 + p * ax, approx=False)
    poly = t * (a1 + t * (a2 + t * (a3 + t * (a4 + t * a5))))
    return sgn * (1.0 - poly * jnp.exp(-ax * ax))


def _gelu_erf(x):
    return 0.5 * x * (1.0 + _erf(x * _SQRT1_2))


def _gelu_tanh(x):
    # <= ~1e-3 deviation from exact GELU; one EUP tanh + ~6 VALU ops, roughly
    # halving VALU pressure where the MXU is underfed (small/mid C).
    return 0.5 * x * (1.0 + jnp.tanh(_SQRT_2_OVER_PI * (x + 0.044715 * x * x * x)))


# --------------------------------------------------------------------------
# kernels
# --------------------------------------------------------------------------
def _ffn_chunk(xs, mean, rstd, w1_ref, b1_ref, w2_ref, b2_ref, gelu_fn):
    # GroupNorm apply (affine folded into W1'/b1'), Linear -> GELU -> Linear,
    # residual.  bf16 MXU operands, f32 accumulation / elementwise.
    h = (xs - mean) * rstd
    a = jnp.dot(w1_ref[...], h.astype(jnp.bfloat16),
                preferred_element_type=jnp.float32)
    a = gelu_fn(a + b1_ref[...])
    y = jnp.dot(w2_ref[...], a.astype(jnp.bfloat16),
                preferred_element_type=jnp.float32)
    return xs + y + b2_ref[...]


def _fused_kernel(x_ref, gmat_ref, smat_ref, w1_ref, b1_ref, w2_ref, b2_ref,
                  o_ref, *, chunk, gelu_fn):
    # --- GroupNorm statistics over the whole (zero-padded) spatial slab.
    #     Zero padding does not perturb sum / sum-of-squares; gmat already
    #     divides by the TRUE (unpadded) per-group element count.
    x = x_ref[0].astype(jnp.float32)                      # (C, S_pad)
    s1 = jnp.sum(x, axis=-1, keepdims=True)               # (C, 1)
    s2 = jnp.sum(x * x, axis=-1, keepdims=True)           # (C, 1)
    g1 = jnp.dot(gmat_ref[...], s1, preferred_element_type=jnp.float32)   # (G, 1)
    g2 = jnp.dot(gmat_ref[...], s2, preferred_element_type=jnp.float32)
    mean = jnp.dot(smat_ref[...], g1, preferred_element_type=jnp.float32)  # (C, 1)
    ex2 = jnp.dot(smat_ref[...], g2, preferred_element_type=jnp.float32)
    var = jnp.maximum(ex2 - mean * mean, 0.0)
    rstd = lax.rsqrt(var + EPS)

    n_chunks = x_ref.shape[2] // chunk

    if n_chunks == 1:
        out = _ffn_chunk(x, mean, rstd, w1_ref, b1_ref, w2_ref, b2_ref, gelu_fn)
        o_ref[0] = out.astype(o_ref.dtype)
    else:
        # Chunk the GELU + second matmul over S so the (4C, chunk) f32/bf16
        # intermediates stay small (keeps v7x's 64 MiB/TC VMEM happy).
        def body(j, carry):
            off = pl.multiple_of(j * chunk, 128)
            xs = x_ref[0, :, pl.ds(off, chunk)].astype(jnp.float32)
            out = _ffn_chunk(xs, mean, rstd, w1_ref, b1_ref, w2_ref, b2_ref,
                             gelu_fn)
            o_ref[0, :, pl.ds(off, chunk)] = out.astype(o_ref.dtype)
            return carry

        lax.fori_loop(0, n_chunks, body, 0)


def _tiled_kernel(x_ref, mean_ref, rstd_ref, w1_ref, b1_ref, w2_ref, b2_ref,
                  o_ref, *, bt, gelu_fn):
    def do(bi):
        xs = x_ref[bi].astype(jnp.float32)                # (C, st)
        out = _ffn_chunk(xs, mean_ref[bi], rstd_ref[bi], w1_ref, b1_ref,
                         w2_ref, b2_ref, gelu_fn)
        o_ref[bi] = out.astype(o_ref.dtype)

    if bt == 1:
        do(0)
    else:
        # fori_loop (not a static Python loop) so live ranges stay bounded.
        def body(bi, carry):
            do(bi)
            return carry

        lax.fori_loop(0, bt, body, 0)


# --------------------------------------------------------------------------
# host wrapper
# --------------------------------------------------------------------------
def feedforward(x_nchw, params, *, mode="auto", gelu_mode="auto"):
    """FeedForward forward.  mode: 'auto' | 'fused' | 'tiled'."""
    gamma, beta, w1, b1, w2, b2 = params
    b, c, *spatial = x_nchw.shape
    s = math.prod(spatial)
    assert c % NUM_GROUPS == 0, f"channels {c} must be divisible by {NUM_GROUPS}"
    inner = w1.shape[0]

    # PyTorch checkpoints store 1-D bias / affine vectors.
    gamma = jnp.asarray(gamma, jnp.float32).reshape(c)
    beta = jnp.asarray(beta, jnp.float32).reshape(c)
    w1 = jnp.asarray(w1, jnp.float32).reshape(inner, c)
    b1 = jnp.asarray(b1, jnp.float32).reshape(inner, 1)
    w2 = jnp.asarray(w2, jnp.float32).reshape(c, inner)
    b2 = jnp.asarray(b2, jnp.float32).reshape(c, 1)

    # Fold the GroupNorm affine into the first Linear (host-side, free):
    #   W1' = W1 * gamma^T ,  b1' = b1 + W1 @ beta
    w1_eff = (w1 * gamma[None, :]).astype(jnp.bfloat16)
    b1_eff = b1 + w1 @ beta[:, None]
    w2_bf = w2.astype(jnp.bfloat16)

    if gelu_mode == "auto":
        gelu_fn = _gelu_tanh if c <= 384 else _gelu_erf
    elif gelu_mode == "tanh":
        gelu_fn = _gelu_tanh
    else:
        gelu_fn = _gelu_erf

    x = x_nchw.reshape(b, c, s)
    itemsize = x.dtype.itemsize
    s128 = _round_up(s, 128)

    vmem_cap = _vmem_capacity_bytes()
    budget = int(0.45 * vmem_cap)            # pipeline blocks + temporaries
    vmem_limit = int(0.70 * vmem_cap)
    wbytes = _weights_bytes(c, inner, _HAS_BUFFERED)

    slab_bytes = c * s128 * itemsize         # one (C, S_pad) block
    fused_fixed = 4 * slab_bytes + wbytes    # x + out, double-buffered
    if mode == "tiled":
        use_fused = False
    elif mode == "fused":
        use_fused = True
    else:
        use_fused = fused_fixed + _interm_bytes(c, inner, 128) <= budget

    gs_per = c // NUM_GROUPS

    if use_fused:
        # ----------------- fused path: x read from HBM once -----------------
        chunk = _pick_lane_tile(s128, 2048, fused_fixed,
                                lambda t: _interm_bytes(c, inner, t), budget)
        s_pad = s128
        if s_pad != s:
            x = jnp.pad(x, ((0, 0), (0, 0), (0, s_pad - s)))

        # Group gather / scatter matrices: per-group average of per-channel
        # sums, broadcast back to channels (divides by the TRUE element count).
        group_of = jnp.arange(c) // gs_per
        onehot = (jnp.arange(NUM_GROUPS)[:, None] == group_of[None, :])
        gmat = onehot.astype(jnp.float32) / float(gs_per * s)   # (G, C)
        smat = onehot.astype(jnp.float32).T                     # (C, G)

        kernel = functools.partial(_fused_kernel, chunk=chunk, gelu_fn=gelu_fn)

        def _call(single):
            grid_spec = pltpu.PrefetchScalarGridSpec(
                num_scalar_prefetch=0,
                grid=(b,),
                in_specs=[
                    pl.BlockSpec((1, c, s_pad), lambda i: (i, 0, 0)),    # x
                    _spec((NUM_GROUPS, c), lambda i: (0, 0), single),    # gmat
                    _spec((c, NUM_GROUPS), lambda i: (0, 0), single),    # smat
                    _spec((inner, c), lambda i: (0, 0), single),         # W1'
                    _spec((inner, 1), lambda i: (0, 0), single),         # b1'
                    _spec((c, inner), lambda i: (0, 0), single),         # W2
                    _spec((c, 1), lambda i: (0, 0), single),             # b2
                ],
                out_specs=pl.BlockSpec((1, c, s_pad), lambda i: (i, 0, 0)),
            )
            out = pl.pallas_call(
                kernel,
                out_shape=jax.ShapeDtypeStruct((b, c, s_pad), x.dtype),
                grid_spec=grid_spec,
                compiler_params=pltpu.CompilerParams(
                    dimension_semantics=("parallel",),
                    vmem_limit_bytes=vmem_limit),
            )(x, gmat, smat, w1_eff, b1_eff, w2_bf, b2)
            return jax.block_until_ready(out)

        out = _run(_call)

    else:
        # ----------------- tiled fallback (very large slabs) ----------------
        # GroupNorm statistics: full-S reduction in plain JAX over the
        # UNPADDED input (exact two-pass).
        # TODO(synk): replace with a dedicated Pallas reduction kernel to drop
        # the extra HBM pass over x for slabs too large for the fused path.
        x32 = x.astype(jnp.float32)
        xg = x32.reshape(b, NUM_GROUPS, gs_per * s)
        mean_g = jnp.mean(xg, axis=-1)
        var_g = jnp.mean(jnp.square(xg - mean_g[..., None]), axis=-1)
        rstd_g = lax.rsqrt(var_g + EPS)
        mean_c = jnp.repeat(mean_g, gs_per, axis=1).reshape(b, c, 1)
        rstd_c = jnp.repeat(rstd_g, gs_per, axis=1).reshape(b, c, 1)

        bt = _pick_bt(b, c)
        tiled_fixed = wbytes + 4 * bt * c * 128 * 4      # + mean/rstd columns
        st = _pick_lane_tile(
            s128, 2048, tiled_fixed,
            lambda t: 4 * bt * c * t * itemsize + _interm_bytes(c, inner, t),
            budget)
        s_pad = _round_up(s, st)
        if s_pad != s:
            x = jnp.pad(x, ((0, 0), (0, 0), (0, s_pad - s)))

        kernel = functools.partial(_tiled_kernel, bt=bt, gelu_fn=gelu_fn)

        def _call(single):
            grid_spec = pltpu.PrefetchScalarGridSpec(
                num_scalar_prefetch=0,
                grid=(b // bt, s_pad // st),
                in_specs=[
                    pl.BlockSpec((bt, c, st), lambda i, j: (i, 0, j)),   # x
                    _spec((bt, c, 1), lambda i, j: (i, 0, 0), single),   # mean
                    _spec((bt, c, 1), lambda i, j: (i, 0, 0), single),   # rstd
                    _spec((inner, c), lambda i, j: (0, 0), single),      # W1'
                    _spec((inner, 1), lambda i, j: (0, 0), single),      # b1'
                    _spec((c, inner), lambda i, j: (0, 0), single),      # W2
                    _spec((c, 1), lambda i, j: (0, 0), single),          # b2
                ],
                out_specs=pl.BlockSpec((bt, c, st), lambda i, j: (i, 0, j)),
            )
            out = pl.pallas_call(
                kernel,
                out_shape=jax.ShapeDtypeStruct((b, c, s_pad), x.dtype),
                grid_spec=grid_spec,
                compiler_params=pltpu.CompilerParams(
                    dimension_semantics=("parallel", "parallel"),
                    vmem_limit_bytes=vmem_limit),
            )(x, mean_c, rstd_c, w1_eff, b1_eff, w2_bf, b2)
            return jax.block_until_ready(out)

        out = _run(_call)

    if s_pad != s:
        out = out[:, :, :s]
    return out.reshape(b, c, *spatial)


# --------------------------------------------------------------------------
# pure-JAX fp32 reference mirroring the PyTorch forward
# --------------------------------------------------------------------------
def reference(x_nchw, params):
    gamma, beta, w1, b1, w2, b2 = params
    b, c, *spatial = x_nchw.shape
    s = math.prod(spatial)
    x = x_nchw.reshape(b, c, s).astype(jnp.float32)
    xg = x.reshape(b, NUM_GROUPS, -1)
    mean = xg.mean(-1, keepdims=True)
    var = ((xg - mean) ** 2).mean(-1, keepdims=True)
    xn = ((xg - mean) / jnp.sqrt(var + EPS)).reshape(b, c, s)
    h = xn * gamma.reshape(1, c, 1) + beta.reshape(1, c, 1)
    hp = jnp.transpose(h, (0, 2, 1))                    # (b, s, c)
    a = hp @ w1.reshape(-1, c).T + b1.reshape(1, 1, -1)
    a = 0.5 * a * (1.0 + jax.scipy.special.erf(a / jnp.sqrt(2.0)))
    y = a @ w2.reshape(c, -1).T + b2.reshape(1, 1, -1)
    y = jnp.transpose(y, (0, 2, 1))                     # (b, c, s)
    return (x + y).reshape(b, c, *spatial)


# --------------------------------------------------------------------------
# demo / self-test
# --------------------------------------------------------------------------
if __name__ == "__main__":
    def make_inputs(key, b, dim, h, w):
        inner = dim * 4                   # mult = 4
        k1, k2, k3, k4, k5, k6, k7 = jax.random.split(key, 7)
        x = jax.random.normal(k1, (b, dim, h, w), jnp.float32)
        lim1 = 1.0 / math.sqrt(dim)
        w1 = jax.random.uniform(k2, (inner, dim), jnp.float32, -lim1, lim1)
        b1 = jax.random.uniform(k3, (inner,), jnp.float32, -lim1, lim1)
        lim2 = 1.0 / math.sqrt(inner)
        w2 = jax.random.uniform(k4, (dim, inner), jnp.float32, -lim2, lim2)
        b2 = jax.random.uniform(k5, (dim,), jnp.float32, -lim2, lim2)
        gamma = 1.0 + 0.1 * jax.random.normal(k6, (dim,), jnp.float32)
        beta = 0.1 * jax.random.normal(k7, (dim,), jnp.float32)
        return x, (gamma, beta, w1, b1, w2, b2)

    key = jax.random.PRNGKey(0)
    k_a, k_b = jax.random.split(key)

    case_small = make_inputs(k_a, 2, 32, 16, 16)    # C=32, S=256 (lane-aligned)
    case_pad = make_inputs(k_b, 2, 64, 10, 10)      # C=64, S=100 (needs padding)

    tests = [
        (case_small, "auto", "auto", "fused+tanh  C=32 S=256"),
        (case_small, "tiled", "auto", "tiled       C=32 S=256"),
        (case_pad, "auto", "erf", "fused+erf   C=64 S=100 (padded)"),
    ]

    for (x, params), mode, gelu_mode, label in tests:
        out = feedforward(x, params, mode=mode, gelu_mode=gelu_mode)
        out = jax.block_until_ready(out)
        ref = reference(x, params)
        assert out.shape == x.shape, f"[{label}] shape mismatch"
        if not bool(jnp.allclose(out, ref, atol=1e-2, rtol=1e-2)):
            err = float(jnp.max(jnp.abs(out - ref)))
            raise AssertionError(
                f"[{label}] kernel/reference mismatch, max abs err={err}")

    print("KERNEL_OK")
</pallas_src>

<mosaic_0001>
module attributes {stable_mosaic.version = 11 : i64} {
  func.func @_fused_kernel(%arg0: i32, %arg1: memref<1x32x256xf32, #tpu.memory_space<vmem>>, %arg2: memref<32x32xf32, #tpu.memory_space<vmem>>, %arg3: memref<32x32xf32, #tpu.memory_space<vmem>>, %arg4: memref<128x32xbf16, #tpu.memory_space<vmem>>, %arg5: memref<128x1xf32, #tpu.memory_space<vmem>>, %arg6: memref<32x128xbf16, #tpu.memory_space<vmem>>, %arg7: memref<32x1xf32, #tpu.memory_space<vmem>>, %arg8: memref<1x32x256xf32, #tpu.memory_space<vmem>>) attributes {dimension_semantics = [#tpu.dimension_semantics<parallel>], iteration_bounds = array<i64: 2>, scalar_prefetch = 0 : i64, scratch_operands = 0 : i64, tpu.core_type = #tpu.core_type<tc>, window_params = [{transform_indices = @transform_0, window_bounds = array<i64: 1, 32, 256>}, {pipeline_mode = #tpu.pipeline_mode<synchronous>, transform_indices = @transform_1, window_bounds = array<i64: 32, 32>}, {pipeline_mode = #tpu.pipeline_mode<synchronous>, transform_indices = @transform_2, window_bounds = array<i64: 32, 32>}, {pipeline_mode = #tpu.pipeline_mode<synchronous>, transform_indices = @transform_3, window_bounds = array<i64: 128, 32>}, {pipeline_mode = #tpu.pipeline_mode<synchronous>, transform_indices = @transform_4, window_bounds = array<i64: 128, 1>}, {pipeline_mode = #tpu.pipeline_mode<synchronous>, transform_indices = @transform_5, window_bounds = array<i64: 32, 128>}, {pipeline_mode = #tpu.pipeline_mode<synchronous>, transform_indices = @transform_6, window_bounds = array<i64: 32, 1>}, {transform_indices = @transform_7, window_bounds = array<i64: 1, 32, 256>}]} {
    %c0 = arith.constant 0 : index
    %c0_0 = arith.constant 0 : index
    %c0_1 = arith.constant 0 : index
    %0 = vector.load %arg1[%c0, %c0_0, %c0_1] : memref<1x32x256xf32, #tpu.memory_space<vmem>>, vector<1x32x256xf32>
    %1 = vector.shape_cast %0 : vector<1x32x256xf32> to vector<32x256xf32>
    %cst = arith.constant dense<0.000000e+00> : vector<32xf32>
    %2 = vector.multi_reduction <add>, %1, %cst [1] : vector<32x256xf32> to vector<32xf32>
    %3 = vector.shape_cast %2 : vector<32xf32> to vector<32x1xf32>
    %4 = arith.mulf %1, %1 : vector<32x256xf32>
    %cst_2 = arith.constant dense<0.000000e+00> : vector<32xf32>
    %5 = vector.multi_reduction <add>, %4, %cst_2 [1] : vector<32x256xf32> to vector<32xf32>
    %6 = vector.shape_cast %5 : vector<32xf32> to vector<32x1xf32>
    %c0_3 = arith.constant 0 : index
    %c0_4 = arith.constant 0 : index
    %7 = vector.load %arg2[%c0_3, %c0_4] : memref<32x32xf32, #tpu.memory_space<vmem>>, vector<32x32xf32>
    %cst_5 = arith.constant dense<0.000000e+00> : vector<32x1xf32>
    %8 = tpu.matmul %7, %3, %cst_5 {dimension_numbers = #tpu.dot_dimension_numbers<[1], [0], [0], [1], [0, 0, 1, 1], [], []>} : vector<32x32xf32>, vector<32x1xf32>, vector<32x1xf32> -> vector<32x1xf32>
    %c0_6 = arith.constant 0 : index
    %c0_7 = arith.constant 0 : index
    %9 = vector.load %arg2[%c0_6, %c0_7] : memref<32x32xf32, #tpu.memory_space<vmem>>, vector<32x32xf32>
    %cst_8 = arith.constant dense<0.000000e+00> : vector<32x1xf32>
    %10 = tpu.matmul %9, %6, %cst_8 {dimension_numbers = #tpu.dot_dimension_numbers<[1], [0], [0], [1], [0, 0, 1, 1], [], []>} : vector<32x32xf32>, vector<32x1xf32>, vector<32x1xf32> -> vector<32x1xf32>
    %c0_9 = arith.constant 0 : index
    %c0_10 = arith.constant 0 : index
    %11 = vector.load %arg3[%c0_9, %c0_10] : memref<32x32xf32, #tpu.memory_space<vmem>>, vector<32x32xf32>
    %cst_11 = arith.constant dense<0.000000e+00> : vector<32x1xf32>
    %12 = tpu.matmul %11, %8, %cst_11 {dimension_numbers = #tpu.dot_dimension_numbers<[1], [0], [0], [1], [0, 0, 1, 1], [], []>} : vector<32x32xf32>, vector<32x1xf32>, vector<32x1xf32> -> vector<32x1xf32>
    %c0_12 = arith.constant 0 : index
    %c0_13 = arith.constant 0 : index
    %13 = vector.load %arg3[%c0_12, %c0_13] : memref<32x32xf32, #tpu.memory_space<vmem>>, vector<32x32xf32>
    %cst_14 = arith.constant dense<0.000000e+00> : vector<32x1xf32>
    %14 = tpu.matmul %13, %10, %cst_14 {dimension_numbers = #tpu.dot_dimension_numbers<[1], [0], [0], [1], [0, 0, 1, 1], [], []>} : vector<32x32xf32>, vector<32x1xf32>, vector<32x1xf32> -> vector<32x1xf32>
    %15 = arith.mulf %12, %12 : vector<32x1xf32>
    %16 = arith.subf %14, %15 : vector<32x1xf32>
    %cst_15 = arith.constant 0.000000e+00 : f32
    %17 = vector.broadcast %cst_15 : f32 to vector<32x1xf32>
    %18 = arith.maximumf %16, %17 : vector<32x1xf32>
    %cst_16 = arith.constant 9.99999974E-6 : f32
    %19 = vector.broadcast %cst_16 : f32 to vector<32x1xf32>
    %20 = arith.addf %18, %19 : vector<32x1xf32>
    %21 = math.rsqrt %20 : vector<32x1xf32>
    %22 = vector.broadcast %12 : vector<32x1xf32> to vector<32x256xf32>
    %23 = arith.subf %1, %22 : vector<32x256xf32>
    %24 = vector.broadcast %21 : vector<32x1xf32> to vector<32x256xf32>
    %25 = arith.mulf %23, %24 : vector<32x256xf32>
    %c0_17 = arith.constant 0 : index
    %c0_18 = arith.constant 0 : index
    %26 = vector.load %arg4[%c0_17, %c0_18] : memref<128x32xbf16, #tpu.memory_space<vmem>>, vector<128x32xbf16>
    %27 = arith.truncf %25 : vector<32x256xf32> to vector<32x256xbf16>
    %cst_19 = arith.constant dense<0.000000e+00> : vector<128x256xf32>
    %28 = tpu.matmul %26, %27, %cst_19 {dimension_numbers = #tpu.dot_dimension_numbers<[1], [0], [0], [1], [0, 0, 1, 1], [], []>} : vector<128x32xbf16>, vector<32x256xbf16>, vector<128x256xf32> -> vector<128x256xf32>
    %c0_20 = arith.constant 0 : index
    %c0_21 = arith.constant 0 : index
    %29 = vector.load %arg5[%c0_20, %c0_21] : memref<128x1xf32, #tpu.memory_space<vmem>>, vector<128x1xf32>
    %30 = vector.broadcast %29 : vector<128x1xf32> to vector<128x256xf32>
    %31 = arith.addf %28, %30 : vector<128x256xf32>
    %cst_22 = arith.constant 5.000000e-01 : f32
    %32 = vector.broadcast %cst_22 : f32 to vector<128x256xf32>
    %33 = arith.mulf %32, %31 : vector<128x256xf32>
    %cst_23 = arith.constant 4.471500e-02 : f32
    %34 = vector.broadcast %cst_23 : f32 to vector<128x256xf32>
    %35 = arith.mulf %34, %31 : vector<128x256xf32>
    %36 = arith.mulf %35, %31 : vector<128x256xf32>
    %37 = arith.mulf %36, %31 : vector<128x256xf32>
    %38 = arith.addf %31, %37 : vector<128x256xf32>
    %cst_24 = arith.constant 0.797884583 : f32
    %39 = vector.broadcast %cst_24 : f32 to vector<128x256xf32>
    %40 = arith.mulf %39, %38 : vector<128x256xf32>
    %41 = math.tanh %40 : vector<128x256xf32>
    %cst_25 = arith.constant 1.000000e+00 : f32
    %42 = vector.broadcast %cst_25 : f32 to vector<128x256xf32>
    %43 = arith.addf %42, %41 : vector<128x256xf32>
    %44 = arith.mulf %33, %43 : vector<128x256xf32>
    %c0_26 = arith.constant 0 : index
    %c0_27 = arith.constant 0 : index
    %45 = vector.load %arg6[%c0_26, %c0_27] : memref<32x128xbf16, #tpu.memory_space<vmem>>, vector<32x128xbf16>
    %46 = arith.truncf %44 : vector<128x256xf32> to vector<128x256xbf16>
    %cst_28 = arith.constant dense<0.000000e+00> : vector<32x256xf32>
    %47 = tpu.matmul %45, %46, %cst_28 {dimension_numbers = #tpu.dot_dimension_numbers<[1], [0], [0], [1], [0, 0, 1, 1], [], []>} : vector<32x128xbf16>, vector<128x256xbf16>, vector<32x256xf32> -> vector<32x256xf32>
    %48 = arith.addf %1, %47 : vector<32x256xf32>
    %c0_29 = arith.constant 0 : index
    %c0_30 = arith.constant 0 : index
    %49 = vector.load %arg7[%c0_29, %c0_30] : memref<32x1xf32, #tpu.memory_space<vmem>>, vector<32x1xf32>
    %50 = vector.broadcast %49 : vector<32x1xf32> to vector<32x256xf32>
    %51 = arith.addf %48, %50 : vector<32x256xf32>
    %c0_31 = arith.constant 0 : index
    %c0_32 = arith.constant 0 : index
    %c0_33 = arith.constant 0 : index
    %52 = vector.load %arg8[%c0_31, %c0_32, %c0_33] : memref<1x32x256xf32, #tpu.memory_space<vmem>>, vector<1x32x256xf32>
    %53 = vector.shape_cast %52 : vector<1x32x256xf32> to vector<32x256xf32>
    %54 = vector.shape_cast %51 : vector<32x256xf32> to vector<1x32x256xf32>
    tpu.vector_store %arg8[%c0_31, %c0_32, %c0_33], %54 {strides = array<i32>} : memref<1x32x256xf32, #tpu.memory_space<vmem>>, vector<1x32x256xf32>,
    return
  }
  func.func @transform_0(%arg0: i32) -> (i32, i32, i32) {
    %c0_i32 = arith.constant 0 : i32
    %c0_i32_0 = arith.constant 0 : i32
    %c0_i32_1 = arith.constant 0 : i32
    return %arg0, %c0_i32, %c0_i32_0 : i32, i32, i32
  }
  func.func @transform_1(%arg0: i32) -> (i32, i32) {
    %c0_i32 = arith.constant 0 : i32
    %c0_i32_0 = arith.constant 0 : i32
    %c0_i32_1 = arith.constant 0 : i32
    return %c0_i32, %c0_i32_0 : i32, i32
  }
  func.func @transform_2(%arg0: i32) -> (i32, i32) {
    %c0_i32 = arith.constant 0 : i32
    %c0_i32_0 = arith.constant 0 : i32
    %c0_i32_1 = arith.constant 0 : i32
    return %c0_i32, %c0_i32_0 : i32, i32
  }
  func.func @transform_3(%arg0: i32) -> (i32, i32) {
    %c0_i32 = arith.constant 0 : i32
    %c0_i32_0 = arith.constant 0 : i32
    %c0_i32_1 = arith.constant 0 : i32
    return %c0_i32, %c0_i32_0 : i32, i32
  }
  func.func @transform_4(%arg0: i32) -> (i32, i32) {
    %c0_i32 = arith.constant 0 : i32
    %c0_i32_0 = arith.constant 0 : i32
    %c0_i32_1 = arith.constant 0 : i32
    return %c0_i32, %c0_i32_0 : i32, i32
  }
  func.func @transform_5(%arg0: i32) -> (i32, i32) {
    %c0_i32 = arith.constant 0 : i32
    %c0_i32_0 = arith.constant 0 : i32
    %c0_i32_1 = arith.constant 0 : i32
    return %c0_i32, %c0_i32_0 : i32, i32
  }
  func.func @transform_6(%arg0: i32) -> (i32, i32) {
    %c0_i32 = arith.constant 0 : i32
    %c0_i32_0 = arith.constant 0 : i32
    %c0_i32_1 = arith.constant 0 : i32
    return %c0_i32, %c0_i32_0 : i32, i32
  }
  func.func @transform_7(%arg0: i32) -> (i32, i32, i32) {
    %c0_i32 = arith.constant 0 : i32
    %c0_i32_0 = arith.constant 0 : i32
    %c0_i32_1 = arith.constant 0 : i32
    return %arg0, %c0_i32, %c0_i32_0 : i32, i32, i32
  }
}

module attributes {stable_mosaic.version = 11 : i64} {
  func.func @_fused_kernel(%arg0: i32, %arg1: memref<1x32x256xf32, #tpu.memory_space<vmem>>, %arg2: memref<32x32xf32, #tpu.memory_space<vmem>>, %arg3: memref<32x32xf32, #tpu.memory_space<vmem>>, %arg4: memref<128x32xbf16, #tpu.memory_space<vmem>>, %arg5: memref<128x1xf32, #tpu.memory_space<vmem>>, %arg6: memref<32x128xbf16, #tpu.memory_space<vmem>>, %arg7: memref<32x1xf32, #tpu.memory_space<vmem>>, %arg8: memref<1x32x256xf32, #tpu.memory_space<vmem>>) attributes {dimension_semantics = [#tpu.dimension_semantics<parallel>], iteration_bounds = array<i64: 2>, scalar_prefetch = 0 : i64, scratch_operands = 0 : i64, tpu.core_type = #tpu.core_type<tc>, window_params = [{transform_indices = @transform_0, window_bounds = array<i64: 1, 32, 256>}, {pipeline_mode = #tpu.pipeline_mode<synchronous>, transform_indices = @transform_1, window_bounds = array<i64: 32, 32>}, {pipeline_mode = #tpu.pipeline_mode<synchronous>, transform_indices = @transform_2, window_bounds = array<i64: 32, 32>}, {pipeline_mode = #tpu.pipeline_mode<synchronous>, transform_indices = @transform_3, window_bounds = array<i64: 128, 32>}, {pipeline_mode = #tpu.pipeline_mode<synchronous>, transform_indices = @transform_4, window_bounds = array<i64: 128, 1>}, {pipeline_mode = #tpu.pipeline_mode<synchronous>, transform_indices = @transform_5, window_bounds = array<i64: 32, 128>}, {pipeline_mode = #tpu.pipeline_mode<synchronous>, transform_indices = @transform_6, window_bounds = array<i64: 32, 1>}, {transform_indices = @transform_7, window_bounds = array<i64: 1, 32, 256>}]} {
    %c0 = arith.constant 0 : index
    %c0_0 = arith.constant 0 : index
    %c0_1 = arith.constant 0 : index
    %0 = vector.load %arg1[%c0, %c0_0, %c0_1] : memref<1x32x256xf32, #tpu.memory_space<vmem>>, vector<1x32x256xf32>
    %1 = vector.shape_cast %0 : vector<1x32x256xf32> to vector<32x256xf32>
    %cst = arith.constant dense<0.000000e+00> : vector<32xf32>
    %2 = vector.multi_reduction <add>, %1, %cst [1] : vector<32x256xf32> to vector<32xf32>
    %3 = vector.shape_cast %2 : vector<32xf32> to vector<32x1xf32>
    %4 = arith.mulf %1, %1 : vector<32x256xf32>
    %cst_2 = arith.constant dense<0.000000e+00> : vector<32xf32>
    %5 = vector.multi_reduction <add>, %4, %cst_2 [1] : vector<32x256xf32> to vector<32xf32>
    %6 = vector.shape_cast %5 : vector<32xf32> to vector<32x1xf32>
    %c0_3 = arith.constant 0 : index
    %c0_4 = arith.constant 0 : index
    %7 = vector.load %arg2[%c0_3, %c0_4] : memref<32x32xf32, #tpu.memory_space<vmem>>, vector<32x32xf32>
    %cst_5 = arith.constant dense<0.000000e+00> : vector<32x1xf32>
    %8 = tpu.matmul %7, %3, %cst_5 {dimension_numbers = #tpu.dot_dimension_numbers<[1], [0], [0], [1], [0, 0, 1, 1], [], []>} : vector<32x32xf32>, vector<32x1xf32>, vector<32x1xf32> -> vector<32x1xf32>
    %c0_6 = arith.constant 0 : index
    %c0_7 = arith.constant 0 : index
    %9 = vector.load %arg2[%c0_6, %c0_7] : memref<32x32xf32, #tpu.memory_space<vmem>>, vector<32x32xf32>
    %cst_8 = arith.constant dense<0.000000e+00> : vector<32x1xf32>
    %10 = tpu.matmul %9, %6, %cst_8 {dimension_numbers = #tpu.dot_dimension_numbers<[1], [0], [0], [1], [0, 0, 1, 1], [], []>} : vector<32x32xf32>, vector<32x1xf32>, vector<32x1xf32> -> vector<32x1xf32>
    %c0_9 = arith.constant 0 : index
    %c0_10 = arith.constant 0 : index
    %11 = vector.load %arg3[%c0_9, %c0_10] : memref<32x32xf32, #tpu.memory_space<vmem>>, vector<32x32xf32>
    %cst_11 = arith.constant dense<0.000000e+00> : vector<32x1xf32>
    %12 = tpu.matmul %11, %8, %cst_11 {dimension_numbers = #tpu.dot_dimension_numbers<[1], [0], [0], [1], [0, 0, 1, 1], [], []>} : vector<32x32xf32>, vector<32x1xf32>, vector<32x1xf32> -> vector<32x1xf32>
    %c0_12 = arith.constant 0 : index
    %c0_13 = arith.constant 0 : index
    %13 = vector.load %arg3[%c0_12, %c0_13] : memref<32x32xf32, #tpu.memory_space<vmem>>, vector<32x32xf32>
    %cst_14 = arith.constant dense<0.000000e+00> : vector<32x1xf32>
    %14 = tpu.matmul %13, %10, %cst_14 {dimension_numbers = #tpu.dot_dimension_numbers<[1], [0], [0], [1], [0, 0, 1, 1], [], []>} : vector<32x32xf32>, vector<32x1xf32>, vector<32x1xf32> -> vector<32x1xf32>
    %15 = arith.mulf %12, %12 : vector<32x1xf32>
    %16 = arith.subf %14, %15 : vector<32x1xf32>
    %cst_15 = arith.constant 0.000000e+00 : f32
    %17 = vector.broadcast %cst_15 : f32 to vector<32x1xf32>
    %18 = arith.maximumf %16, %17 : vector<32x1xf32>
    %cst_16 = arith.constant 9.99999974E-6 : f32
    %19 = vector.broadcast %cst_16 : f32 to vector<32x1xf32>
    %20 = arith.addf %18, %19 : vector<32x1xf32>
    %21 = math.rsqrt %20 : vector<32x1xf32>
    %22 = vector.broadcast %12 : vector<32x1xf32> to vector<32x256xf32>
    %23 = arith.subf %1, %22 : vector<32x256xf32>
    %24 = vector.broadcast %21 : vector<32x1xf32> to vector<32x256xf32>
    %25 = arith.mulf %23, %24 : vector<32x256xf32>
    %c0_17 = arith.constant 0 : index
    %c0_18 = arith.constant 0 : index
    %26 = vector.load %arg4[%c0_17, %c0_18] : memref<128x32xbf16, #tpu.memory_space<vmem>>, vector<128x32xbf16>
    %27 = arith.truncf %25 : vector<32x256xf32> to vector<32x256xbf16>
    %cst_19 = arith.constant dense<0.000000e+00> : vector<128x256xf32>
    %28 = tpu.matmul %26, %27, %cst_19 {dimension_numbers = #tpu.dot_dimension_numbers<[1], [0], [0], [1], [0, 0, 1, 1], [], []>} : vector<128x32xbf16>, vector<32x256xbf16>, vector<128x256xf32> -> vector<128x256xf32>
    %c0_20 = arith.constant 0 : index
    %c0_21 = arith.constant 0 : index
    %29 = vector.load %arg5[%c0_20, %c0_21] : memref<128x1xf32, #tpu.memory_space<vmem>>, vector<128x1xf32>
    %30 = vector.broadcast %29 : vector<128x1xf32> to vector<128x256xf32>
    %31 = arith.addf %28, %30 : vector<128x256xf32>
    %cst_22 = arith.constant 5.000000e-01 : f32
    %32 = vector.broadcast %cst_22 : f32 to vector<128x256xf32>
    %33 = arith.mulf %32, %31 : vector<128x256xf32>
    %cst_23 = arith.constant 4.471500e-02 : f32
    %34 = vector.broadcast %cst_23 : f32 to vector<128x256xf32>
    %35 = arith.mulf %34, %31 : vector<128x256xf32>
    %36 = arith.mulf %35, %31 : vector<128x256xf32>
    %37 = arith.mulf %36, %31 : vector<128x256xf32>
    %38 = arith.addf %31, %37 : vector<128x256xf32>
    %cst_24 = arith.constant 0.797884583 : f32
    %39 = vector.broadcast %cst_24 : f32 to vector<128x256xf32>
    %40 = arith.mulf %39, %38 : vector<128x256xf32>
    %41 = math.tanh %40 : vector<128x256xf32>
    %cst_25 = arith.constant 1.000000e+00 : f32
    %42 = vector.broadcast %cst_25 : f32 to vector<128x256xf32>
    %43 = arith.addf %42, %41 : vector<128x256xf32>
    %44 = arith.mulf %33, %43 : vector<128x256xf32>
    %c0_26 = arith.constant 0 : index
    %c0_27 = arith.constant 0 : index
    %45 = vector.load %arg6[%c0_26, %c0_27] : memref<32x128xbf16, #tpu.memory_space<vmem>>, vector<32x128xbf16>
    %46 = arith.truncf %44 : vector<128x256xf32> to vector<128x256xbf16>
    %cst_28 = arith.constant dense<0.000000e+00> : vector<32x256xf32>
    %47 = tpu.matmul %45, %46, %cst_28 {dimension_numbers = #tpu.dot_dimension_numbers<[1], [0], [0], [1], [0, 0, 1, 1], [], []>} : vector<32x128xbf16>, vector<128x256xbf16>, vector<32x256xf32> -> vector<32x256xf32>
    %48 = arith.addf %1, %47 : vector<32x256xf32>
    %c0_29 = arith.constant 0 : index
    %c0_30 = arith.constant 0 : index
    %49 = vector.load %arg7[%c0_29, %c0_30] : memref<32x1xf32, #tpu.memory_space<vmem>>, vector<32x1xf32>
    %50 = vector.broadcast %49 : vector<32x1xf32> to vector<32x256xf32>
    %51 = arith.addf %48, %50 : vector<32x256xf32>
    %c0_31 = arith.constant 0 : index
    %c0_32 = arith.constant 0 : index
    %c0_33 = arith.constant 0 : index
    %52 = vector.load %arg8[%c0_31, %c0_32, %c0_33] : memref<1x32x256xf32, #tpu.memory_space<vmem>>, vector<1x32x256xf32>
    %53 = vector.shape_cast %52 : vector<1x32x256xf32> to vector<32x256xf32>
    %54 = vector.shape_cast %51 : vector<32x256xf32> to vector<1x32x256xf32>
    tpu.vector_store %arg8[%c0_31, %c0_32, %c0_33], %54 {strides = array<i32>} : memref<1x32x256xf32, #tpu.memory_space<vmem>>, vector<1x32x256xf32>,
    return
  }
  func.func @transform_0(%arg0: i32) -> (i32, i32, i32) {
    %c0_i32 = arith.constant 0 : i32
    %c0_i32_0 = arith.constant 0 : i32
    %c0_i32_1 = arith.constant 0 : i32
    return %arg0, %c0_i32, %c0_i32_0 : i32, i32, i32
  }
  func.func @transform_1(%arg0: i32) -> (i32, i32) {
    %c0_i32 = arith.constant 0 : i32
    %c0_i32_0 = arith.constant 0 : i32
    %c0_i32_1 = arith.constant 0 : i32
    return %c0_i32, %c0_i32_0 : i32, i32
  }
  func.func @transform_2(%arg0: i32) -> (i32, i32) {
    %c0_i32 = arith.constant 0 : i32
    %c0_i32_0 = arith.constant 0 : i32
    %c0_i32_1 = arith.constant 0 : i32
    return %c0_i32, %c0_i32_0 : i32, i32
  }
  func.func @transform_3(%arg0: i32) -> (i32, i32) {
    %c0_i32 = arith.constant 0 : i32
    %c0_i32_0 = arith.constant 0 : i32
    %c0_i32_1 = arith.constant 0 : i32
    return %c0_i32, %c0_i32_0 : i32, i32
  }
  func.func @transform_4(%arg0: i32) -> (i32, i32) {
    %c0_i32 = arith.constant 0 : i32
    %c0_i32_0 = arith.constant 0 : i32
    %c0_i32_1 = arith.constant 0 : i32
    return %c0_i32, %c0_i32_0 : i32, i32
  }
  func.func @transform_5(%arg0: i32) -> (i32, i32) {
    %c0_i32 = arith.constant 0 : i32
    %c0_i32_0 = arith.constant 0 : i32
    %c0_i32_1 = arith.constant 0 : i32
    return %c0_i32, %c0_i32_0 : i32, i32
  }
  func.func @transform_6(%arg0: i32) -> (i32, i32) {
    %c0_i32 = arith.constant 0 : i32
    %c0_i32_0 = arith.constant 0 : i32
    %c0_i32_1 = arith.constant 0 : i32
    return %c0_i32, %c0_i32_0 : i32, i32
  }
  func.func @transform_7(%arg0: i32) -> (i32, i32, i32) {
    %c0_i32 = arith.constant 0 : i32
    %c0_i32_0 = arith.constant 0 : i32
    %c0_i32_1 = arith.constant 0 : i32
    return %arg0, %c0_i32, %c0_i32_0 : i32, i32, i32
  }
}

</mosaic_0001>

<llo_original>
// kernel: tpu_custom_call.1
$region0: #{tpu_custom_call.1}
  #allocation0 [shape = 'u32[]', space=smem, size = 0x4, offset = 0x4, fixed_abs, tag = 'smem constant byte address 0x4 - core index']
  #allocation1 [shape = 'u32[144,128]{1,0:T(1,128)}', space=vmem, size = 0x12000, scoped, tag = 'internal scratch']
  %s0 = inlined_call_operand.vmem [shape: f32[2,32,256], index: 0, kind: input, shape index: {}]
  %s1 = inlined_call_operand.vmem [shape: f32[32,32], index: 1, kind: input, shape index: {}]
  %s2 = inlined_call_operand.vmem [shape: f32[32,32], index: 2, kind: input, shape index: {}]
  %s3 = inlined_call_operand.vmem [shape: bf16[128,32], index: 3, kind: input, shape index: {}]
  %s4 = inlined_call_operand.vmem [shape: f32[128,1], index: 4, kind: input, shape index: {}]
  %s5 = inlined_call_operand.vmem [shape: bf16[32,128], index: 5, kind: input, shape index: {}]
  %s6 = inlined_call_operand.vmem [shape: f32[32,1], index: 6, kind: input, shape index: {}]
  %s7 = inlined_call_operand.hbm [shape: f32[2,32,256], index: 7, kind: output, shape index: {}]
  %s8 = sld [smem:[#allocation0]]
  $region61: #{tpu_custom_call.1} parent=0
    _
  %s10 = ssub.s32 1, %s8
  %s11 = scalar_select 0, %s10, %s8
  $region1: #{tpu_custom_call.1} parent=0
    #allocation2 [shape = 'u8[65536]{0}', space=vmem, size = 0x10000, scoped, tag = 'output window, operand 0']
    #allocation3 [shape = 's32[2]{0}', space=sflag, size = 0x8, scoped, tag = 'scoped memory for tpu_custom_call.1']
    %12 = vsyncpa [#allocation3], 0
    %s13 = scalar_lea.sflag [#allocation3], 1
    %14 = vsyncpa %s13, 0
    loop: start=0, step=1, limit=4
    $region2: #{tpu_custom_call.1} parent=1 // loop_pre_header
      _
    $region3: #{tpu_custom_call.1} parent=1 // loop_header
      %s16 = sphi 0, %s20
      %p17 = scmp.ge.s32.totalorder %s16, 4
      %s26 = sphi 0, %s28
      %s29 = sphi 0, %s26
      %s30 = sphi 0, %s29
      %s46 = sphi 0, %s30
      %s50 = sphi 0, %s50
      %s52 = sphi 0, %s50
      %s53 = sphi 0, %s52
      %s67 = sphi 0, %s53
      %s71 = sphi 0, %s71
      %s73 = sphi 0, %s71
      %s74 = sphi 0, %s73
      %s88 = sphi 0, %s74
      %s92 = sphi 0, %s92
      %s94 = sphi 0, %s92
      %s95 = sphi 0, %s94
      %s109 = sphi 0, %s95
      %s113 = sphi 0, %s113
      %s115 = sphi 0, %s113
      %s116 = sphi 0, %s115
      %s130 = sphi 0, %s116
      %s134 = sphi 0, %s134
      %s136 = sphi 0, %s134
      %s137 = sphi 0, %s136
      %s151 = sphi 0, %s137
      %s155 = sphi 0, %s155
      %s157 = sphi 0, %s155
      %s158 = sphi 0, %s157
      %s172 = sphi 0, %s158
      %s178 = sphi 0, %s180
      %s181 = sphi 0, %s178
      %s182 = sphi 0, %s181
      %s198 = sphi 0, %s182
    $region4: #{tpu_custom_call.1} parent=1 // loop_header_branch
      %19 = sbr.rel (%p17) target = $region8
    $region5: #{tpu_custom_call.1} parent=1 // loop_body
      %s21 = ssub.s32 %s16, 1
      %s22 = ssub.s32 %s16, 2
      %s23 = sadd.s32 %s16, 1
      %s24 = ssub.s32 %s16, %s23
      %p25 = scmp.eq.s32.totalorder %s24, 0
      %s27 = sadd.s32 %s26, 1
      %s28 = scalar_select %p25, %s26, %s27
      %p31 = pneg %p25
      %p32 = scmp.eq.s32.totalorder %s16, 1
      %p33 = por %p31, %p32
      %p34 = scmp.ne.s32.totalorder %s26, %s29
      %p35 = scmp.eq.s32.totalorder %s16, 0
      %p36 = por %p34, %p35
      %p37 = scmp.ne.s32.totalorder %s26, %s29
      %p38 = scmp.eq.s32.totalorder %s21, 1
      %p39 = por %p37, %p38
      %p40 = scmp.ne.s32.totalorder %s29, %s30
      %p41 = scmp.eq.s32.totalorder %s21, 0
      %p42 = por %p40, %p41
      %p43 = scmp.ne.s32.totalorder %s29, %s30
      %p44 = scmp.eq.s32.totalorder %s22, 1
      %p45 = por %p43, %p44
      %p47 = scmp.ne.s32.totalorder %s30, %s46
      %p48 = scmp.eq.s32.totalorder %s22, 0
      %p49 = por %p47, %p48
      %s51 = sadd.s32 %s50, 1
      %p54 = scmp.eq.s32.totalorder %s16, 1
      %p55 = scmp.ne.s32.totalorder %s50, %s52
      %p56 = scmp.eq.s32.totalorder %s16, 0
      %p57 = por %p55, %p56
      %p58 = scmp.ne.s32.totalorder %s50, %s52
      %p59 = scmp.eq.s32.totalorder %s21, 1
      %p60 = por %p58, %p59
      %p61 = scmp.ne.s32.totalorder %s52, %s53
      %p62 = scmp.eq.s32.totalorder %s21, 0
      %p63 = por %p61, %p62
      %p64 = scmp.ne.s32.totalorder %s52, %s53
      %p65 = scmp.eq.s32.totalorder %s22, 1
      %p66 = por %p64, %p65
      %p68 = scmp.ne.s32.totalorder %s53, %s67
      %p69 = scmp.eq.s32.totalorder %s22, 0
      %p70 = por %p68, %p69
      %s72 = sadd.s32 %s71, 1
      %p75 = scmp.eq.s32.totalorder %s16, 1
      %p76 = scmp.ne.s32.totalorder %s71, %s73
      %p77 = scmp.eq.s32.totalorder %s16, 0
      %p78 = por %p76, %p77
      %p79 = scmp.ne.s32.totalorder %s71, %s73
      %p80 = scmp.eq.s32.totalorder %s21, 1
      %p81 = por %p79, %p80
      %p82 = scmp.ne.s32.totalorder %s73, %s74
      %p83 = scmp.eq.s32.totalorder %s21, 0
      %p84 = por %p82, %p83
      %p85 = scmp.ne.s32.totalorder %s73, %s74
      %p86 = scmp.eq.s32.totalorder %s22, 1
      %p87 = por %p85, %p86
      %p89 = scmp.ne.s32.totalorder %s74, %s88
      %p90 = scmp.eq.s32.totalorder %s22, 0
      %p91 = por %p89, %p90
      %s93 = sadd.s32 %s92, 1
      %p96 = scmp.eq.s32.totalorder %s16, 1
      %p97 = scmp.ne.s32.totalorder %s92, %s94
      %p98 = scmp.eq.s32.totalorder %s16, 0
      %p99 = por %p97, %p98
      %p100 = scmp.ne.s32.totalorder %s92, %s94
      %p101 = scmp.eq.s32.totalorder %s21, 1
      %p102 = por %p100, %p101
      %p103 = scmp.ne.s32.totalorder %s94, %s95
      %p104 = scmp.eq.s32.totalorder %s21, 0
      %p105 = por %p103, %p104
      %p106 = scmp.ne.s32.totalorder %s94, %s95
      %p107 = scmp.eq.s32.totalorder %s22, 1
      %p108 = por %p106, %p107
      %p110 = scmp.ne.s32.totalorder %s95, %s109
      %p111 = scmp.eq.s32.totalorder %s22, 0
      %p112 = por %p110, %p111
      %s114 = sadd.s32 %s113, 1
      %p117 = scmp.eq.s32.totalorder %s16, 1
      %p118 = scmp.ne.s32.totalorder %s113, %s115
      %p119 = scmp.eq.s32.totalorder %s16, 0
      %p120 = por %p118, %p119
      %p121 = scmp.ne.s32.totalorder %s113, %s115
      %p122 = scmp.eq.s32.totalorder %s21, 1
      %p123 = por %p121, %p122
      %p124 = scmp.ne.s32.totalorder %s115, %s116
      %p125 = scmp.eq.s32.totalorder %s21, 0
      %p126 = por %p124, %p125
      %p127 = scmp.ne.s32.totalorder %s115, %s116
      %p128 = scmp.eq.s32.totalorder %s22, 1
      %p129 = por %p127, %p128
      %p131 = scmp.ne.s32.totalorder %s116, %s130
      %p132 = scmp.eq.s32.totalorder %s22, 0
      %p133 = por %p131, %p132
      %s135 = sadd.s32 %s134, 1
      %p138 = scmp.eq.s32.totalorder %s16, 1
      %p139 = scmp.ne.s32.totalorder %s134, %s136
      %p140 = scmp.eq.s32.totalorder %s16, 0
      %p141 = por %p139, %p140
      %p142 = scmp.ne.s32.totalorder %s134, %s136
      %p143 = scmp.eq.s32.totalorder %s21, 1
      %p144 = por %p142, %p143
      %p145 = scmp.ne.s32.totalorder %s136, %s137
      %p146 = scmp.eq.s32.totalorder %s21, 0
      %p147 = por %p145, %p146
      %p148 = scmp.ne.s32.totalorder %s136, %s137
      %p149 = scmp.eq.s32.totalorder %s22, 1
      %p150 = por %p148, %p149
      %p152 = scmp.ne.s32.totalorder %s137, %s151
      %p153 = scmp.eq.s32.totalorder %s22, 0
      %p154 = por %p152, %p153
      %s156 = sadd.s32 %s155, 1
      %p159 = scmp.eq.s32.totalorder %s16, 1
      %p160 = scmp.ne.s32.totalorder %s155, %s157
      %p161 = scmp.eq.s32.totalorder %s16, 0
      %p162 = por %p160, %p161
      %p163 = scmp.ne.s32.totalorder %s155, %s157
      %p164 = scmp.eq.s32.totalorder %s21, 1
      %p165 = por %p163, %p164
      %p166 = scmp.ne.s32.totalorder %s157, %s158
      %p167 = scmp.eq.s32.totalorder %s21, 0
      %p168 = por %p166, %p167
      %p169 = scmp.ne.s32.totalorder %s157, %s158
      %p170 = scmp.eq.s32.totalorder %s22, 1
      %p171 = por %p169, %p170
      %p173 = scmp.ne.s32.totalorder %s158, %s172
      %p174 = scmp.eq.s32.totalorder %s22, 0
      %p175 = por %p173, %p174
      %s176 = ssub.s32 %s16, %s23
      %p177 = scmp.eq.s32.totalorder %s176, 0
      %s179 = sadd.s32 %s178, 1
      %s180 = scalar_select %p177, %s178, %s179
      %p183 = pneg %p177
      %p184 = scmp.eq.s32.totalorder %s16, 1
      %p185 = por %p183, %p184
      %p186 = scmp.ne.s32.totalorder %s178, %s181
      %p187 = scmp.eq.s32.totalorder %s16, 0
      %p188 = por %p186, %p187
      %p189 = scmp.ne.s32.totalorder %s178, %s181
      %p190 = scmp.eq.s32.totalorder %s21, 1
      %p191 = por %p189, %p190
      %p192 = scmp.ne.s32.totalorder %s181, %s182
      %p193 = scmp.eq.s32.totalorder %s21, 0
      %p194 = por %p192, %p193
      %p195 = scmp.ne.s32.totalorder %s181, %s182
      %p196 = scmp.eq.s32.totalorder %s22, 1
      %p197 = por %p195, %p196
      %p199 = scmp.ne.s32.totalorder %s182, %s198
      %p200 = scmp.eq.s32.totalorder %s22, 0
      %p201 = por %p199, %p200
      %p202 = scmp.le.s32.totalorder 1, %s16
      %p203 = scmp.lt.s32.totalorder %s16, 3
      %p204 = pnand %p202, %p203
      %p205 = pneg %p204
      // Predicated region
      $region9: #{tpu_custom_call.1} parent=5 // pred_check
        _
      $region10: #{tpu_custom_call.1} parent=5 // pred_check_branch
        %207 = sbr.rel (%p204) target = $region12
      $region11: #{tpu_custom_call.1} parent=5 // pred_region
        %s208 = ssub.s32 %s16, 1
        // Predicated region
        $region13: #{tpu_custom_call.1} parent=11 // pred_check
          %p209 = pneg %p63
        $region14: #{tpu_custom_call.1} parent=11 // pred_check_branch
          %211 = sbr.rel (%p209) target = $region16
        $region15: #{tpu_custom_call.1} parent=11 // pred_region
          _
        $region16: #{tpu_custom_call.1} parent=11 // pred_fallthru
          _
        // Predicated region
        $region17: #{tpu_custom_call.1} parent=11 // pred_check
          %p212 = pneg %p84
        $region18: #{tpu_custom_call.1} parent=11 // pred_check_branch
          %214 = sbr.rel (%p212) target = $region20
        $region19: #{tpu_custom_call.1} parent=11 // pred_region
          _
        $region20: #{tpu_custom_call.1} parent=11 // pred_fallthru
          _
        // Predicated region
        $region21: #{tpu_custom_call.1} parent=11 // pred_check
          %p215 = pneg %p105
        $region22: #{tpu_custom_call.1} parent=11 // pred_check_branch
          %217 = sbr.rel (%p215) target = $region24
        $region23: #{tpu_custom_call.1} parent=11 // pred_region
          _
        $region24: #{tpu_custom_call.1} parent=11 // pred_fallthru
          _
        // Predicated region
        $region25: #{tpu_custom_call.1} parent=11 // pred_check
          %p218 = pneg %p126
        $region26: #{tpu_custom_call.1} parent=11 // pred_check_branch
          %220 = sbr.rel (%p218) target = $region28
        $region27: #{tpu_custom_call.1} parent=11 // pred_region
          _
        $region28: #{tpu_custom_call.1} parent=11 // pred_fallthru
          _
        // Predicated region
        $region29: #{tpu_custom_call.1} parent=11 // pred_check
          %p221 = pneg %p147
        $region30: #{tpu_custom_call.1} parent=11 // pred_check_branch
          %223 = sbr.rel (%p221) target = $region32
        $region31: #{tpu_custom_call.1} parent=11 // pred_region
          _
        $region32: #{tpu_custom_call.1} parent=11 // pred_fallthru
          _
        // Predicated region
        $region33: #{tpu_custom_call.1} parent=11 // pred_check
          %p224 = pneg %p168
        $region34: #{tpu_custom_call.1} parent=11 // pred_check_branch
          %226 = sbr.rel (%p224) target = $region36
        $region35: #{tpu_custom_call.1} parent=11 // pred_region
          _
        $region36: #{tpu_custom_call.1} parent=11 // pred_fallthru
          _
      $region12: #{tpu_custom_call.1} parent=5 // pred_fallthru
        _
      %p227 = scmp.lt.s32.totalorder %s16, 2
      // Predicated region
      $region37: #{tpu_custom_call.1} parent=5 // pred_check
        %p228 = pneg %p227
      $region38: #{tpu_custom_call.1} parent=5 // pred_check_branch
        %230 = sbr.rel (%p228) target = $region40
      $region39: #{tpu_custom_call.1} parent=5 // pred_region
        // Predicated region
        $region41: #{tpu_custom_call.1} parent=39 // pred_check
          %p231 = pneg %p36
        $region42: #{tpu_custom_call.1} parent=39 // pred_check_branch
          %233 = sbr.rel (%p231) target = $region44
        $region43: #{tpu_custom_call.1} parent=39 // pred_region
          %p234 = scmp.lt.s32.totalorder %s16, 1
          %s235 = scalar_select %p234, %s16, 1
          %s236 = smul.addr %s235, 8
          %s237 = smul.addr %s236, 8
          %s238 = scalar_lea.vmem %s0, %s237
        $region44: #{tpu_custom_call.1} parent=39 // pred_fallthru
          _
      $region40: #{tpu_custom_call.1} parent=5 // pred_fallthru
        _
      %p239 = scmp.le.s32.totalorder 1, %s16
      %p240 = scmp.lt.s32.totalorder %s16, 3
      %p241 = pnand %p239, %p240
      %p242 = pneg %p241
      // Predicated region
      $region45: #{tpu_custom_call.1} parent=5 // pred_check
        _
      $region46: #{tpu_custom_call.1} parent=5 // pred_check_branch
        %244 = sbr.rel (%p241) target = $region48
      $region47: #{tpu_custom_call.1} parent=5 // pred_region
        %s245 = ssub.s32 %s16, 1
        %p246 = scmp.lt.s32.totalorder %s21, 1
        %s247 = scalar_select %p246, %s21, 1
        %s248 = smul.addr %s247, 8
        %s249 = smul.addr %s248, 8
        %s250 = scalar_lea.vmem %s0, %s249
        %p251 = pneg %p42
        %p252 = pneg %p39
        %p253 = pneg %p63
        %p254 = pneg %p60
        %p255 = pneg %p84
        %p256 = pneg %p81
        %p257 = pneg %p105
        %p258 = pneg %p102
        %p259 = pneg %p126
        %p260 = pneg %p123
        %p261 = pneg %p147
        %p262 = pneg %p144
        %p263 = pneg %p168
        %p264 = pneg %p165
        %p265 = pneg %p194
        %p266 = pneg %p191
        %s267 = sand.u32 %s181, 1
        %s268 = scalar_lea.sflag [#allocation3], %s267
        %s269 = sand.u32 %s181, 1
        %s270 = smul.addr %s269, 64
        %s271 = scalar_lea.vmem [#allocation2], %s270
        %p272 = scmp.lt.s32.totalorder %s21, 1
        %s273 = scalar_select %p272, %s21, 1
        %s274 = smul.addr %s273, 8
        %s275 = smul.addr %s274, 8
        %s276 = scalar_lea.vmem %s0, %s275
        %v278 = vld [vmem:[%s276] sm:$0xff]
        %v279 = vld [vmem:[%s276 + $0x8] sm:$0xff]
        %v280 = vld [vmem:[%s276 + $0x10] sm:$0xff]
        %v281 = vld [vmem:[%s276 + $0x18] sm:$0xff]
        %v282 = vld [vmem:[%s276 + $0x20] sm:$0xff]
        %v283 = vld [vmem:[%s276 + $0x28] sm:$0xff]
        %v284 = vld [vmem:[%s276 + $0x30] sm:$0xff]
        %v285 = vld [vmem:[%s276 + $0x38] sm:$0xff]
        %v286 = vadd.f32 %v278, %v279
        %287 = vadd.xlane.f32.xlu0 %v286
        %v288 = vpop.xlane.xlu0 %287
        %v289 = vadd.f32 %v280, %v281
        %290 = vadd.xlane.f32.xlu0 %v289
        %v291 = vpop.xlane.xlu0 %290
        %v292 = vadd.f32 %v282, %v283
        %293 = vadd.xlane.f32.xlu0 %v292
        %v294 = vpop.xlane.xlu0 %293
        %v295 = vadd.f32 %v284, %v285
        %296 = vadd.xlane.f32.xlu0 %v295
        %v297 = vpop.xlane.xlu0 %296
        %v298 = vmul.f32 %v278, %v278
        %v299 = vmul.f32 %v279, %v279
        %v300 = vmul.f32 %v280, %v280
        %v301 = vmul.f32 %v281, %v281
        %v302 = vmul.f32 %v282, %v282
        %v303 = vmul.f32 %v283, %v283
        %v304 = vmul.f32 %v284, %v284
        %v305 = vmul.f32 %v285, %v285
        %v306 = vadd.f32 %v298, %v299
        %307 = vadd.xlane.f32.xlu0 %v306
        %v308 = vpop.xlane.xlu0 %307
        %v309 = vadd.f32 %v300, %v301
        %310 = vadd.xlane.f32.xlu0 %v309
        %v311 = vpop.xlane.xlu0 %310
        %v312 = vadd.f32 %v302, %v303
        %313 = vadd.xlane.f32.xlu0 %v312
        %v314 = vpop.xlane.xlu0 %313
        %v315 = vadd.f32 %v304, %v305
        %316 = vadd.xlane.f32.xlu0 %v315
        %v317 = vpop.xlane.xlu0 %316
        %v318 = vld [vmem:[%s1] sm:$0xff]
        %v319 = vld [vmem:[%s1 + $0x8] sm:$0xff]
        %v320 = vld [vmem:[%s1 + $0x10] sm:$0xff]
        %v321 = vld [vmem:[%s1 + $0x18] sm:$0xff]
        %vm322 = vcmask 261120
        %v324 = vsel %vm322, %v318, 0
        %v327 = vsel %vm322, %v319, 0
        %v330 = vsel %vm322, %v320, 0
        %v333 = vsel %vm322, %v321, 0
        %335 = vmatprep.subr.mxu0 0.0
        %336 = vmatpush1.msra.mxu0 0.0
        %337 = vmatprep.subr.mxu0 0.0
        %338 = vmatpush1.msra.mxu0 0.0
        %339 = vmatprep.subr.mxu0 0.0
        %340 = vmatpush1.msra.mxu0 0.0
        %341 = vmatprep.subr.mxu0 0.0
        %342 = vmatpush1.msra.mxu0 0.0
        %343 = vmatprep.subr.mxu0 0.0
        %344 = vmatpush1.msra.mxu0 0.0
        %345 = vmatprep.subr.mxu0 0.0
        %346 = vmatpush1.msra.mxu0 0.0
        %347 = vmatprep.subr.mxu0 0.0
        %348 = vmatpush1.msra.mxu0 0.0
        %349 = vmatprep.subr.mxu0 0.0
        %350 = vmatpush1.msra.mxu0 0.0
        %351 = vmatprep.subr.mxu0 0.0
        %352 = vmatpush1.msra.mxu0 0.0
        %353 = vmatprep.subr.mxu0 0.0
        %354 = vmatpush1.msra.mxu0 0.0
        %355 = vmatprep.subr.mxu0 0.0
        %356 = vmatpush1.msra.mxu0 0.0
        %357 = vmatprep.subr.mxu0 0.0
        %358 = vmatpush1.msra.mxu0 0.0
        %359 = vmatprep.subr.mxu0 0.0
        %360 = vmatpush1.msra.mxu0 %v297
        %361 = vmatprep.subr.mxu0 0.0
        %362 = vmatpush1.msra.mxu0 %v294
        %363 = vmatprep.subr.mxu0 0.0
        %364 = vmatpush1.msra.mxu0 %v291
        %365 = vmatprep.subr.mxu0 0.0
        %366 = vmatpush1.msra.mxu0 %v288
        %367 = vmatprep.subr.mxu0 0.0
        %368 = vmatpush2.msra.mxu0 0.0
        %369 = vmatprep.subr.mxu0 0.0
        %370 = vmatpush2.msra.mxu0 0.0
        %371 = vmatprep.subr.mxu0 0.0
        %372 = vmatpush2.msra.mxu0 0.0
        %373 = vmatprep.subr.mxu0 0.0
        %374 = vmatpush2.msra.mxu0 0.0
        %375 = vmatprep.subr.mxu0 0.0
        %376 = vmatpush2.msra.mxu0 0.0
        %377 = vmatprep.subr.mxu0 0.0
        %378 = vmatpush2.msra.mxu0 0.0
        %379 = vmatprep.subr.mxu0 0.0
        %380 = vmatpush2.msra.mxu0 0.0
        %381 = vmatprep.subr.mxu0 0.0
        %382 = vmatpush2.msra.mxu0 0.0
        %383 = vmatprep.subr.mxu0 0.0
        %384 = vmatpush2.msra.mxu0 0.0
        %385 = vmatprep.subr.mxu0 0.0
        %386 = vmatpush2.msra.mxu0 0.0
        %387 = vmatprep.subr.mxu0 0.0
        %388 = vmatpush2.msra.mxu0 0.0
        %389 = vmatprep.subr.mxu0 0.0
        %390 = vmatpush2.msra.mxu0 0.0
        %391 = vmatprep.subr.mxu0 0.0
        %392 = vmatpush2.msra.mxu0 0.0
        %393 = vmatprep.subr.mxu0 0.0
        %394 = vmatpush2.msra.mxu0 0.0
        %395 = vmatprep.subr.mxu0 0.0
        %396 = vmatpush2.msra.mxu0 0.0
        %397 = vmatprep.subr.mxu0 0.0
        %398 = vmatpush2.msra.mxu0 0.0
        %399 = vmatprep.mubr.f32.mxu0 0.0
        %400 = vmatmul.mubr.f32.gmra.mxu0 %v324
        %v401 = vpop.f32.mrf.mxu0
        %v402 = vadd.f32 0.0, %v401
        %v403 = vpop.f32.mrf.mxu0
        %404 = vmatprep.mubr.f32.mxu0 0.0
        %405 = vmatmul.mubr.f32.gmra.mxu0 %v327
        %v406 = vpop.f32.mrf.mxu0
        %v407 = vadd.f32 0.0, %v406
        %v408 = vpop.f32.mrf.mxu0
        %409 = vmatprep.mubr.f32.mxu0 0.0
        %410 = vmatmul.mubr.f32.gmra.mxu0 %v330
        %v411 = vpop.f32.mrf.mxu0
        %v412 = vadd.f32 0.0, %v411
        %v413 = vpop.f32.mrf.mxu0
        %414 = vmatprep.mubr.f32.mxu0 0.0
        %415 = vmatmul.mubr.f32.gmra.mxu0 %v333
        %v416 = vpop.f32.mrf.mxu0
        %v417 = vadd.f32 0.0, %v416
        %v418 = vpop.f32.mrf.mxu0
        %419 = vdwg.mxu0
        %420 = vmatprep.subr.mxu0 0.0
        %421 = vmatpush1.msra.mxu0 0.0
        %422 = vmatprep.subr.mxu0 0.0
        %423 = vmatpush1.msra.mxu0 0.0
        %424 = vmatprep.subr.mxu0 0.0
        %425 = vmatpush1.msra.mxu0 0.0
        %426 = vmatprep.subr.mxu0 0.0
        %427 = vmatpush1.msra.mxu0 0.0
        %428 = vmatprep.subr.mxu0 0.0
        %429 = vmatpush1.msra.mxu0 0.0
        %430 = vmatprep.subr.mxu0 0.0
        %431 = vmatpush1.msra.mxu0 0.0
        %432 = vmatprep.subr.mxu0 0.0
        %433 = vmatpush1.msra.mxu0 0.0
        %434 = vmatprep.subr.mxu0 0.0
        %435 = vmatpush1.msra.mxu0 0.0
        %436 = vmatprep.subr.mxu0 0.0
        %437 = vmatpush1.msra.mxu0 0.0
        %438 = vmatprep.subr.mxu0 0.0
        %439 = vmatpush1.msra.mxu0 0.0
        %440 = vmatprep.subr.mxu0 0.0
        %441 = vmatpush1.msra.mxu0 0.0
        %442 = vmatprep.subr.mxu0 0.0
        %443 = vmatpush1.msra.mxu0 0.0
        %444 = vmatprep.subr.mxu0 0.0
        %445 = vmatpush1.msra.mxu0 %v317
        %446 = vmatprep.subr.mxu0 0.0
        %447 = vmatpush1.msra.mxu0 %v314
        %448 = vmatprep.subr.mxu0 0.0
        %449 = vmatpush1.msra.mxu0 %v311
        %450 = vmatprep.subr.mxu0 0.0
        %451 = vmatpush1.msra.mxu0 %v308
        %452 = vmatprep.subr.mxu0 0.0
        %453 = vmatpush2.msra.mxu0 0.0
        %454 = vmatprep.subr.mxu0 0.0
        %455 = vmatpush2.msra.mxu0 0.0
        %456 = vmatprep.subr.mxu0 0.0
        %457 = vmatpush2.msra.mxu0 0.0
        %458 = vmatprep.subr.mxu0 0.0
        %459 = vmatpush2.msra.mxu0 0.0
        %460 = vmatprep.subr.mxu0 0.0
        %461 = vmatpush2.msra.mxu0 0.0
        %462 = vmatprep.subr.mxu0 0.0
        %463 = vmatpush2.msra.mxu0 0.0
        %464 = vmatprep.subr.mxu0 0.0
        %465 = vmatpush2.msra.mxu0 0.0
        %466 = vmatprep.subr.mxu0 0.0
        %467 = vmatpush2.msra.mxu0 0.0
        %468 = vmatprep.subr.mxu0 0.0
        %469 = vmatpush2.msra.mxu0 0.0
        %470 = vmatprep.subr.mxu0 0.0
        %471 = vmatpush2.msra.mxu0 0.0
        %472 = vmatprep.subr.mxu0 0.0
        %473 = vmatpush2.msra.mxu0 0.0
        %474 = vmatprep.subr.mxu0 0.0
        %475 = vmatpush2.msra.mxu0 0.0
        %476 = vmatprep.subr.mxu0 0.0
        %477 = vmatpush2.msra.mxu0 0.0
        %478 = vmatprep.subr.mxu0 0.0
        %479 = vmatpush2.msra.mxu0 0.0
        %480 = vmatprep.subr.mxu0 0.0
        %481 = vmatpush2.msra.mxu0 0.0
        %482 = vmatprep.subr.mxu0 0.0
        %483 = vmatpush2.msra.mxu0 0.0
        %484 = vmatprep.mubr.f32.mxu0 0.0
        %485 = vmatmul.mubr.f32.gmra.mxu0 %v324
        %v486 = vpop.f32.mrf.mxu0
        %v487 = vadd.f32 0.0, %v486
        %v488 = vpop.f32.mrf.mxu0
        %489 = vmatprep.mubr.f32.mxu0 0.0
        %490 = vmatmul.mubr.f32.gmra.mxu0 %v327
        %v491 = vpop.f32.mrf.mxu0
        %v492 = vadd.f32 0.0, %v491
        %v493 = vpop.f32.mrf.mxu0
        %494 = vmatprep.mubr.f32.mxu0 0.0
        %495 = vmatmul.mubr.f32.gmra.mxu0 %v330
        %v496 = vpop.f32.mrf.mxu0
        %v497 = vadd.f32 0.0, %v496
        %v498 = vpop.f32.mrf.mxu0
        %499 = vmatprep.mubr.f32.mxu0 0.0
        %500 = vmatmul.mubr.f32.gmra.mxu0 %v333
        %v501 = vpop.f32.mrf.mxu0
        %v502 = vadd.f32 0.0, %v501
        %v503 = vpop.f32.mrf.mxu0
        %504 = vdwg.mxu0
        %v505 = vld [vmem:[%s2] sm:$0xff]
        %v506 = vld [vmem:[%s2 + $0x8] sm:$0xff]
        %v507 = vld [vmem:[%s2 + $0x10] sm:$0xff]
        %v508 = vld [vmem:[%s2 + $0x18] sm:$0xff]
        %v510 = vsel %vm322, %v505, 0
        %v513 = vsel %vm322, %v506, 0
        %v516 = vsel %vm322, %v507, 0
        %v519 = vsel %vm322, %v508, 0
        %521 = vmatprep.subr.mxu0 0.0
        %522 = vmatpush1.msra.mxu0 0.0
        %523 = vmatprep.subr.mxu0 0.0
        %524 = vmatpush1.msra.mxu0 0.0
        %525 = vmatprep.subr.mxu0 0.0
        %526 = vmatpush1.msra.mxu0 0.0
        %527 = vmatprep.subr.mxu0 0.0
        %528 = vmatpush1.msra.mxu0 0.0
        %529 = vmatprep.subr.mxu0 0.0
        %530 = vmatpush1.msra.mxu0 0.0
        %531 = vmatprep.subr.mxu0 0.0
        %532 = vmatpush1.msra.mxu0 0.0
        %533 = vmatprep.subr.mxu0 0.0
        %534 = vmatpush1.msra.mxu0 0.0
        %535 = vmatprep.subr.mxu0 0.0
        %536 = vmatpush1.msra.mxu0 0.0
        %537 = vmatprep.subr.mxu0 0.0
        %538 = vmatpush1.msra.mxu0 0.0
        %539 = vmatprep.subr.mxu0 0.0
        %540 = vmatpush1.msra.mxu0 0.0
        %541 = vmatprep.subr.mxu0 0.0
        %542 = vmatpush1.msra.mxu0 0.0
        %543 = vmatprep.subr.mxu0 0.0
        %544 = vmatpush1.msra.mxu0 0.0
        %545 = vmatprep.subr.mxu0 0.0
        %546 = vmatpush1.msra.mxu0 %v417
        %547 = vmatprep.subr.mxu0 0.0
        %548 = vmatpush1.msra.mxu0 %v412
        %549 = vmatprep.subr.mxu0 0.0
        %550 = vmatpush1.msra.mxu0 %v407
        %551 = vmatprep.subr.mxu0 0.0
        %552 = vmatpush1.msra.mxu0 %v402
        %553 = vmatprep.subr.mxu0 0.0
        %554 = vmatpush2.msra.mxu0 0.0
        %555 = vmatprep.subr.mxu0 0.0
        %556 = vmatpush2.msra.mxu0 0.0
        %557 = vmatprep.subr.mxu0 0.0
        %558 = vmatpush2.msra.mxu0 0.0
        %559 = vmatprep.subr.mxu0 0.0
        %560 = vmatpush2.msra.mxu0 0.0
        %561 = vmatprep.subr.mxu0 0.0
        %562 = vmatpush2.msra.mxu0 0.0
        %563 = vmatprep.subr.mxu0 0.0
        %564 = vmatpush2.msra.mxu0 0.0
        %565 = vmatprep.subr.mxu0 0.0
        %566 = vmatpush2.msra.mxu0 0.0
        %567 = vmatprep.subr.mxu0 0.0
        %568 = vmatpush2.msra.mxu0 0.0
        %569 = vmatprep.subr.mxu0 0.0
        %570 = vmatpush2.msra.mxu0 0.0
        %571 = vmatprep.subr.mxu0 0.0
        %572 = vmatpush2.msra.mxu0 0.0
        %573 = vmatprep.subr.mxu0 0.0
        %574 = vmatpush2.msra.mxu0 0.0
        %575 = vmatprep.subr.mxu0 0.0
        %576 = vmatpush2.msra.mxu0 0.0
        %577 = vmatprep.subr.mxu0 0.0
        %578 = vmatpush2.msra.mxu0 0.0
        %579 = vmatprep.subr.mxu0 0.0
        %580 = vmatpush2.msra.mxu0 0.0
        %581 = vmatprep.subr.mxu0 0.0
        %582 = vmatpush2.msra.mxu0 0.0
        %583 = vmatprep.subr.mxu0 0.0
        %584 = vmatpush2.msra.mxu0 0.0
        %585 = vmatprep.mubr.f32.mxu0 0.0
        %586 = vmatmul.mubr.f32.gmra.mxu0 %v510
        %v587 = vpop.f32.mrf.mxu0
        %v588 = vadd.f32 0.0, %v587
        %v589 = vpop.f32.mrf.mxu0
        %590 = vmatprep.mubr.f32.mxu0 0.0
        %591 = vmatmul.mubr.f32.gmra.mxu0 %v513
        %v592 = vpop.f32.mrf.mxu0
        %v593 = vadd.f32 0.0, %v592
        %v594 = vpop.f32.mrf.mxu0
        %595 = vmatprep.mubr.f32.mxu0 0.0
        %596 = vmatmul.mubr.f32.gmra.mxu0 %v516
        %v597 = vpop.f32.mrf.mxu0
        %v598 = vadd.f32 0.0, %v597
        %v599 = vpop.f32.mrf.mxu0
        %600 = vmatprep.mubr.f32.mxu0 0.0
        %601 = vmatmul.mubr.f32.gmra.mxu0 %v519
        %v602 = vpop.f32.mrf.mxu0
        %v603 = vadd.f32 0.0, %v602
        %v604 = vpop.f32.mrf.mxu0
        %605 = vdwg.mxu0
        %606 = vmatprep.subr.mxu0 0.0
        %607 = vmatpush1.msra.mxu0 0.0
        %608 = vmatprep.subr.mxu0 0.0
        %609 = vmatpush1.msra.mxu0 0.0
        %610 = vmatprep.subr.mxu0 0.0
        %611 = vmatpush1.msra.mxu0 0.0
        %612 = vmatprep.subr.mxu0 0.0
        %613 = vmatpush1.msra.mxu0 0.0
        %614 = vmatprep.subr.mxu0 0.0
        %615 = vmatpush1.msra.mxu0 0.0
        %616 = vmatprep.subr.mxu0 0.0
        %617 = vmatpush1.msra.mxu0 0.0
        %618 = vmatprep.subr.mxu0 0.0
        %619 = vmatpush1.msra.mxu0 0.0
        %620 = vmatprep.subr.mxu0 0.0
        %621 = vmatpush1.msra.mxu0 0.0
        %622 = vmatprep.subr.mxu0 0.0
        %623 = vmatpush1.msra.mxu0 0.0
        %624 = vmatprep.subr.mxu0 0.0
        %625 = vmatpush1.msra.mxu0 0.0
        %626 = vmatprep.subr.mxu0 0.0
        %627 = vmatpush1.msra.mxu0 0.0
        %628 = vmatprep.subr.mxu0 0.0
        %629 = vmatpush1.msra.mxu0 0.0
        %630 = vmatprep.subr.mxu0 0.0
        %631 = vmatpush1.msra.mxu0 %v502
        %632 = vmatprep.subr.mxu0 0.0
        %633 = vmatpush1.msra.mxu0 %v497
        %634 = vmatprep.subr.mxu0 0.0
        %635 = vmatpush1.msra.mxu0 %v492
        %636 = vmatprep.subr.mxu0 0.0
        %637 = vmatpush1.msra.mxu0 %v487
        %638 = vmatprep.subr.mxu0 0.0
        %639 = vmatpush2.msra.mxu0 0.0
        %640 = vmatprep.subr.mxu0 0.0
        %641 = vmatpush2.msra.mxu0 0.0
        %642 = vmatprep.subr.mxu0 0.0
        %643 = vmatpush2.msra.mxu0 0.0
        %644 = vmatprep.subr.mxu0 0.0
        %645 = vmatpush2.msra.mxu0 0.0
        %646 = vmatprep.subr.mxu0 0.0
        %647 = vmatpush2.msra.mxu0 0.0
        %648 = vmatprep.subr.mxu0 0.0
        %649 = vmatpush2.msra.mxu0 0.0
        %650 = vmatprep.subr.mxu0 0.0
        %651 = vmatpush2.msra.mxu0 0.0
        %652 = vmatprep.subr.mxu0 0.0
        %653 = vmatpush2.msra.mxu0 0.0
        %654 = vmatprep.subr.mxu0 0.0
        %655 = vmatpush2.msra.mxu0 0.0
        %656 = vmatprep.subr.mxu0 0.0
        %657 = vmatpush2.msra.mxu0 0.0
        %658 = vmatprep.subr.mxu0 0.0
        %659 = vmatpush2.msra.mxu0 0.0
        %660 = vmatprep.subr.mxu0 0.0
        %661 = vmatpush2.msra.mxu0 0.0
        %662 = vmatprep.subr.mxu0 0.0
        %663 = vmatpush2.msra.mxu0 0.0
        %664 = vmatprep.subr.mxu0 0.0
        %665 = vmatpush2.msra.mxu0 0.0
        %666 = vmatprep.subr.mxu0 0.0
        %667 = vmatpush2.msra.mxu0 0.0
        %668 = vmatprep.subr.mxu0 0.0
        %669 = vmatpush2.msra.mxu0 0.0
        %670 = vmatprep.mubr.f32.mxu0 0.0
        %671 = vmatmul.mubr.f32.gmra.mxu0 %v510
        %v672 = vpop.f32.mrf.mxu0
        %v673 = vadd.f32 0.0, %v672
        %v674 = vpop.f32.mrf.mxu0
        %675 = vmatprep.mubr.f32.mxu0 0.0
        %676 = vmatmul.mubr.f32.gmra.mxu0 %v513
        %v677 = vpop.f32.mrf.mxu0
        %v678 = vadd.f32 0.0, %v677
        %v679 = vpop.f32.mrf.mxu0
        %680 = vmatprep.mubr.f32.mxu0 0.0
        %681 = vmatmul.mubr.f32.gmra.mxu0 %v516
        %v682 = vpop.f32.mrf.mxu0
        %v683 = vadd.f32 0.0, %v682
        %v684 = vpop.f32.mrf.mxu0
        %685 = vmatprep.mubr.f32.mxu0 0.0
        %686 = vmatmul.mubr.f32.gmra.mxu0 %v519
        %v687 = vpop.f32.mrf.mxu0
        %v688 = vadd.f32 0.0, %v687
        %v689 = vpop.f32.mrf.mxu0
        %690 = vdwg.mxu0
        %v691 = vmul.f32 %v588, %v588
        %v692 = vmul.f32 %v593, %v593
        %v693 = vmul.f32 %v598, %v598
        %v694 = vmul.f32 %v603, %v603
        %v695 = vsub.f32 %v673, %v691
        %v696 = vsub.f32 %v678, %v692
        %v697 = vsub.f32 %v683, %v693
        %v698 = vsub.f32 %v688, %v694
        %v699 = vmax.f32 %v695, 0.0
        %v700 = vmax.f32 %v696, 0.0
        %v701 = vmax.f32 %v697, 0.0
        %v702 = vmax.f32 %v698, 0.0
        %v703 = vadd.f32 %v699, 1e-05
        %v704 = vadd.f32 %v700, 1e-05
        %v705 = vadd.f32 %v701, 1e-05
        %v706 = vadd.f32 %v702, 1e-05
        %v707 = vrsqrt.pop %v703
        %v708 = vrsqrt.pop %v704
        %v709 = vrsqrt.pop %v705
        %v710 = vrsqrt.pop %v706
        %712 = vset.pattern.permute.xlu0 0
        %713 = vperm.xlu0 %712, %v588
        %v714 = vpop.permute.xlu0 %713
        %717 = vset.pattern.permute.xlu0 0
        %718 = vperm.xlu0 %717, %v593
        %v719 = vpop.permute.xlu0 %718
        %722 = vset.pattern.permute.xlu0 0
        %723 = vperm.xlu0 %722, %v598
        %v724 = vpop.permute.xlu0 %723
        %727 = vset.pattern.permute.xlu0 0
        %728 = vperm.xlu0 %727, %v603
        %v729 = vpop.permute.xlu0 %728
        %v731 = vsub.f32 %v278, %v714
        %v732 = vsub.f32 %v279, %v714
        %v733 = vsub.f32 %v280, %v719
        %v734 = vsub.f32 %v281, %v719
        %v735 = vsub.f32 %v282, %v724
        %v736 = vsub.f32 %v283, %v724
        %v737 = vsub.f32 %v284, %v729
        %v738 = vsub.f32 %v285, %v729
        %740 = vset.pattern.permute.xlu0 0
        %741 = vperm.xlu0 %740, %v707
        %v742 = vpop.permute.xlu0 %741
        %745 = vset.pattern.permute.xlu0 0
        %746 = vperm.xlu0 %745, %v708
        %v747 = vpop.permute.xlu0 %746
        %750 = vset.pattern.permute.xlu0 0
        %751 = vperm.xlu0 %750, %v709
        %v752 = vpop.permute.xlu0 %751
        %755 = vset.pattern.permute.xlu0 0
        %756 = vperm.xlu0 %755, %v710
        %v757 = vpop.permute.xlu0 %756
        %v759 = vmul.f32 %v731, %v742
        %v760 = vmul.f32 %v732, %v742
        %v761 = vmul.f32 %v733, %v747
        %v762 = vmul.f32 %v734, %v747
        %v763 = vmul.f32 %v735, %v752
        %v764 = vmul.f32 %v736, %v752
        %v765 = vmul.f32 %v737, %v757
        %v766 = vmul.f32 %v738, %v757
        %v767 = vld [vmem:[%s3] sm:$0xf]
        %v768 = vld [vmem:[%s3 + $0x4] sm:$0xf]
        %v769 = vld [vmem:[%s3 + $0x8] sm:$0xf]
        %v770 = vld [vmem:[%s3 + $0xc] sm:$0xf]
        %v771 = vld [vmem:[%s3 + $0x10] sm:$0xf]
        %v772 = vld [vmem:[%s3 + $0x14] sm:$0xf]
        %v773 = vld [vmem:[%s3 + $0x18] sm:$0xf]
        %v774 = vld [vmem:[%s3 + $0x1c] sm:$0xf]
        %v775 = vld [vmem:[%s3 + $0x20] sm:$0xf]
        %v776 = vld [vmem:[%s3 + $0x24] sm:$0xf]
        %v777 = vld [vmem:[%s3 + $0x28] sm:$0xf]
        %v778 = vld [vmem:[%s3 + $0x2c] sm:$0xf]
        %v779 = vld [vmem:[%s3 + $0x30] sm:$0xf]
        %v780 = vld [vmem:[%s3 + $0x34] sm:$0xf]
        %v781 = vld [vmem:[%s3 + $0x38] sm:$0xf]
        %v782 = vld [vmem:[%s3 + $0x3c] sm:$0xf]
        %v783 = vpack.c.bf16 %v761, %v759
        %v784 = vpack.c.bf16 %v762, %v760
        %v785 = vpack.c.bf16 %v765, %v763
        %v786 = vpack.c.bf16 %v766, %v764
        %v787 = vld [vmem:[%s4] sm:$0xff]
        %v788 = vld [vmem:[%s4 + $0x8] sm:$0xff]
        %v789 = vld [vmem:[%s4 + $0x10] sm:$0xff]
        %v790 = vld [vmem:[%s4 + $0x18] sm:$0xff]
        %v791 = vld [vmem:[%s4 + $0x20] sm:$0xff]
        %v792 = vld [vmem:[%s4 + $0x28] sm:$0xff]
        %v793 = vld [vmem:[%s4 + $0x30] sm:$0xff]
        %v794 = vld [vmem:[%s4 + $0x38] sm:$0xff]
        %v795 = vld [vmem:[%s4 + $0x40] sm:$0xff]
        %v796 = vld [vmem:[%s4 + $0x48] sm:$0xff]
        %v797 = vld [vmem:[%s4 + $0x50] sm:$0xff]
        %v798 = vld [vmem:[%s4 + $0x58] sm:$0xff]
        %v799 = vld [vmem:[%s4 + $0x60] sm:$0xff]
        %v800 = vld [vmem:[%s4 + $0x68] sm:$0xff]
        %v801 = vld [vmem:[%s4 + $0x70] sm:$0xff]
        %v802 = vld [vmem:[%s4 + $0x78] sm:$0xff]
        %804 = vset.pattern.permute.xlu0 0
        %805 = vperm.xlu0 %804, %v787
        %v806 = vpop.permute.xlu0 %805
        %809 = vset.pattern.permute.xlu0 0
        %810 = vperm.xlu0 %809, %v788
        %v811 = vpop.permute.xlu0 %810
        %814 = vset.pattern.permute.xlu0 0
        %815 = vperm.xlu0 %814, %v789
        %v816 = vpop.permute.xlu0 %815
        %819 = vset.pattern.permute.xlu0 0
        %820 = vperm.xlu0 %819, %v790
        %v821 = vpop.permute.xlu0 %820
        %824 = vset.pattern.permute.xlu0 0
        %825 = vperm.xlu0 %824, %v791
        %v826 = vpop.permute.xlu0 %825
        %829 = vset.pattern.permute.xlu0 0
        %830 = vperm.xlu0 %829, %v792
        %v831 = vpop.permute.xlu0 %830
        %834 = vset.pattern.permute.xlu0 0
        %835 = vperm.xlu0 %834, %v793
        %v836 = vpop.permute.xlu0 %835
        %839 = vset.pattern.permute.xlu0 0
        %840 = vperm.xlu0 %839, %v794
        %v841 = vpop.permute.xlu0 %840
        %844 = vset.pattern.permute.xlu0 0
        %845 = vperm.xlu0 %844, %v795
        %v846 = vpop.permute.xlu0 %845
        %849 = vset.pattern.permute.xlu0 0
        %850 = vperm.xlu0 %849, %v796
        %v851 = vpop.permute.xlu0 %850
        %854 = vset.pattern.permute.xlu0 0
        %855 = vperm.xlu0 %854, %v797
        %v856 = vpop.permute.xlu0 %855
        %859 = vset.pattern.permute.xlu0 0
        %860 = vperm.xlu0 %859, %v798
        %v861 = vpop.permute.xlu0 %860
        %864 = vset.pattern.permute.xlu0 0
        %865 = vperm.xlu0 %864, %v799
        %v866 = vpop.permute.xlu0 %865
        %869 = vset.pattern.permute.xlu0 0
        %870 = vperm.xlu0 %869, %v800
        %v871 = vpop.permute.xlu0 %870
        %874 = vset.pattern.permute.xlu0 0
        %875 = vperm.xlu0 %874, %v801
        %v876 = vpop.permute.xlu0 %875
        %879 = vset.pattern.permute.xlu0 0
        %880 = vperm.xlu0 %879, %v802
        %v881 = vpop.permute.xlu0 %880
        %v899 = vunpack.c.l.b16 %v767
        %v900 = vunpack.c.l.b16 %v768
        %v901 = vunpack.c.l.b16 %v769
        %v902 = vunpack.c.l.b16 %v770
        %v903 = vunpack.c.l.b16 %v771
        %v904 = vunpack.c.l.b16 %v772
        %v905 = vunpack.c.l.b16 %v773
        %v906 = vunpack.c.l.b16 %v774
        %v907 = vunpack.c.l.b16 %v775
        %v908 = vunpack.c.l.b16 %v776
        %v909 = vunpack.c.l.b16 %v777
        %v910 = vunpack.c.l.b16 %v778
        %v911 = vunpack.c.l.b16 %v779
        %v912 = vunpack.c.l.b16 %v780
        %v913 = vunpack.c.l.b16 %v781
        %v914 = vunpack.c.l.b16 %v782
        %v915 = vpack.c.b16 %v900, %v899
        %v916 = vpack.c.b16 %v902, %v901
        %v917 = vpack.c.b16 %v904, %v903
        %v918 = vpack.c.b16 %v906, %v905
        %v919 = vpack.c.b16 %v908, %v907
        %v920 = vpack.c.b16 %v910, %v909
        %v921 = vpack.c.b16 %v912, %v911
        %v922 = vpack.c.b16 %v914, %v913
        %v924 = vsel %vm322, %v915, 0
        %v927 = vsel %vm322, %v916, 0
        %v930 = vsel %vm322, %v917, 0
        %v933 = vsel %vm322, %v918, 0
        %v936 = vsel %vm322, %v919, 0
        %v939 = vsel %vm322, %v920, 0
        %v942 = vsel %vm322, %v921, 0
        %v945 = vsel %vm322, %v922, 0
        %947 = vmatprep.subr.bf16.mxu0 0
        %948 = vmatpush1.bf16.msra.mxu0 0
        %949 = vmatprep.subr.bf16.mxu0 0
        %950 = vmatpush1.bf16.msra.mxu0 0
        %951 = vmatprep.subr.bf16.mxu0 0
        %952 = vmatpush1.bf16.msra.mxu0 0
        %953 = vmatprep.subr.bf16.mxu0 0
        %954 = vmatpush1.bf16.msra.mxu0 0
        %955 = vmatprep.subr.bf16.mxu0 0
        %956 = vmatpush1.bf16.msra.mxu0 0
        %957 = vmatprep.subr.bf16.mxu0 0
        %958 = vmatpush1.bf16.msra.mxu0 0
        %959 = vmatprep.subr.bf16.mxu0 %v786
        %960 = vmatpush1.bf16.msra.mxu0 %v785
        %961 = vmatprep.subr.bf16.mxu0 %v784
        %962 = vmatpush1.bf16.msra.mxu0 %v783
        %963 = vmatprep.subr.bf16.mxu0 0
        %964 = vmatpush2.bf16.msra.mxu0 0
        %965 = vmatprep.subr.bf16.mxu0 0
        %966 = vmatpush2.bf16.msra.mxu0 0
        %967 = vmatprep.subr.bf16.mxu0 0
        %968 = vmatpush2.bf16.msra.mxu0 0
        %969 = vmatprep.subr.bf16.mxu0 0
        %970 = vmatpush2.bf16.msra.mxu0 0
        %971 = vmatprep.subr.bf16.mxu0 0
        %972 = vmatpush2.bf16.msra.mxu0 0
        %973 = vmatprep.subr.bf16.mxu0 0
        %974 = vmatpush2.bf16.msra.mxu0 0
        %975 = vmatprep.subr.bf16.mxu0 0
        %976 = vmatpush2.bf16.msra.mxu0 0
        %977 = vmatprep.subr.bf16.mxu0 0
        %978 = vmatpush2.bf16.msra.mxu0 0
        %979 = vmatprep.mubr.bf16.mxu0 0
        %980 = vmatmul.mubr.bf16.gmra.mxu0 %v924
        %v981 = vpop.f32.mrf.mxu0
        %v982 = vadd.f32 %v806, %v981
        %v983 = vpop.f32.mrf.mxu0
        %v984 = vadd.f32 %v806, %v983
        %v985 = vpop.f32.mrf.mxu0
        %v986 = vadd.f32 %v811, %v985
        %v987 = vpop.f32.mrf.mxu0
        %v988 = vadd.f32 %v811, %v987
        %989 = vmatprep.mubr.bf16.mxu0 0
        %990 = vmatmul.mubr.bf16.gmra.mxu0 %v927
        %v991 = vpop.f32.mrf.mxu0
        %v992 = vadd.f32 %v816, %v991
        %v993 = vpop.f32.mrf.mxu0
        %v994 = vadd.f32 %v816, %v993
        %v995 = vpop.f32.mrf.mxu0
        %v996 = vadd.f32 %v821, %v995
        %v997 = vpop.f32.mrf.mxu0
        %v998 = vadd.f32 %v821, %v997
        %999 = vmatprep.mubr.bf16.mxu0 0
        %1000 = vmatmul.mubr.bf16.gmra.mxu0 %v930
        %v1001 = vpop.f32.mrf.mxu0
        %v1002 = vadd.f32 %v826, %v1001
        %v1003 = vpop.f32.mrf.mxu0
        %v1004 = vadd.f32 %v826, %v1003
        %v1005 = vpop.f32.mrf.mxu0
        %v1006 = vadd.f32 %v831, %v1005
        %v1007 = vpop.f32.mrf.mxu0
        %v1008 = vadd.f32 %v831, %v1007
        %1009 = vmatprep.mubr.bf16.mxu0 0
        %1010 = vmatmul.mubr.bf16.gmra.mxu0 %v933
        %v1011 = vpop.f32.mrf.mxu0
        %v1012 = vadd.f32 %v836, %v1011
        %v1013 = vpop.f32.mrf.mxu0
        %v1014 = vadd.f32 %v836, %v1013
        %v1015 = vpop.f32.mrf.mxu0
        %v1016 = vadd.f32 %v841, %v1015
        %v1017 = vpop.f32.mrf.mxu0
        %v1018 = vadd.f32 %v841, %v1017
        %1019 = vmatprep.mubr.bf16.mxu0 0
        %1020 = vmatmul.mubr.bf16.gmra.mxu0 %v936
        %v1021 = vpop.f32.mrf.mxu0
        %v1022 = vadd.f32 %v846, %v1021
        %v1023 = vpop.f32.mrf.mxu0
        %v1024 = vadd.f32 %v846, %v1023
        %v1025 = vpop.f32.mrf.mxu0
        %v1026 = vadd.f32 %v851, %v1025
        %v1027 = vpop.f32.mrf.mxu0
        %v1028 = vadd.f32 %v851, %v1027
        %1029 = vmatprep.mubr.bf16.mxu0 0
        %1030 = vmatmul.mubr.bf16.gmra.mxu0 %v939
        %v1031 = vpop.f32.mrf.mxu0
        %v1032 = vadd.f32 %v856, %v1031
        %v1033 = vpop.f32.mrf.mxu0
        %v1034 = vadd.f32 %v856, %v1033
        %v1035 = vpop.f32.mrf.mxu0
        %v1036 = vadd.f32 %v861, %v1035
        %v1037 = vpop.f32.mrf.mxu0
        %v1038 = vadd.f32 %v861, %v1037
        %1039 = vmatprep.mubr.bf16.mxu0 0
        %1040 = vmatmul.mubr.bf16.gmra.mxu0 %v942
        %v1041 = vpop.f32.mrf.mxu0
        %v1042 = vadd.f32 %v866, %v1041
        %v1043 = vpop.f32.mrf.mxu0
        %v1044 = vadd.f32 %v866, %v1043
        %v1045 = vpop.f32.mrf.mxu0
        %v1046 = vadd.f32 %v871, %v1045
        %v1047 = vpop.f32.mrf.mxu0
        %v1048 = vadd.f32 %v871, %v1047
        %1049 = vmatprep.mubr.bf16.mxu0 0
        %1050 = vmatmul.mubr.bf16.gmra.mxu0 %v945
        %v1051 = vpop.f32.mrf.mxu0
        %v1052 = vadd.f32 %v876, %v1051
        %v1053 = vpop.f32.mrf.mxu0
        %v1054 = vadd.f32 %v876, %v1053
        %v1055 = vpop.f32.mrf.mxu0
        %v1056 = vadd.f32 %v881, %v1055
        %v1057 = vpop.f32.mrf.mxu0
        %v1058 = vadd.f32 %v881, %v1057
        %1059 = vdwg.mxu0
        %v1060 = vmul.f32 %v982, 0.5
        %v1061 = vmul.f32 %v984, 0.5
        %v1062 = vmul.f32 %v986, 0.5
        %v1063 = vmul.f32 %v988, 0.5
        %v1064 = vmul.f32 %v992, 0.5
        %v1065 = vmul.f32 %v994, 0.5
        %v1066 = vmul.f32 %v996, 0.5
        %v1067 = vmul.f32 %v998, 0.5
        %v1068 = vmul.f32 %v1002, 0.5
        %v1069 = vmul.f32 %v1004, 0.5
        %v1070 = vmul.f32 %v1006, 0.5
        %v1071 = vmul.f32 %v1008, 0.5
        %v1072 = vmul.f32 %v1012, 0.5
        %v1073 = vmul.f32 %v1014, 0.5
        %v1074 = vmul.f32 %v1016, 0.5
        %v1075 = vmul.f32 %v1018, 0.5
        %v1076 = vmul.f32 %v1022, 0.5
        %v1077 = vmul.f32 %v1024, 0.5
        %v1078 = vmul.f32 %v1026, 0.5
        %v1079 = vmul.f32 %v1028, 0.5
        %v1080 = vmul.f32 %v1032, 0.5
        %v1081 = vmul.f32 %v1034, 0.5
        %v1082 = vmul.f32 %v1036, 0.5
        %v1083 = vmul.f32 %v1038, 0.5
        %v1084 = vmul.f32 %v1042, 0.5
        %v1085 = vmul.f32 %v1044, 0.5
        %v1086 = vmul.f32 %v1046, 0.5
        %v1087 = vmul.f32 %v1048, 0.5
        %v1088 = vmul.f32 %v1052, 0.5
        %v1089 = vmul.f32 %v1054, 0.5
        %v1090 = vmul.f32 %v1056, 0.5
        %v1091 = vmul.f32 %v1058, 0.5
        %v1092 = vmul.f32 %v982, 0.044715
        %v1093 = vmul.f32 %v984, 0.044715
        %v1094 = vmul.f32 %v986, 0.044715
        %v1095 = vmul.f32 %v988, 0.044715
        %v1096 = vmul.f32 %v992, 0.044715
        %v1097 = vmul.f32 %v994, 0.044715
        %v1098 = vmul.f32 %v996, 0.044715
        %v1099 = vmul.f32 %v998, 0.044715
        %v1100 = vmul.f32 %v1002, 0.044715
        %v1101 = vmul.f32 %v1004, 0.044715
        %v1102 = vmul.f32 %v1006, 0.044715
        %v1103 = vmul.f32 %v1008, 0.044715
        %v1104 = vmul.f32 %v1012, 0.044715
        %v1105 = vmul.f32 %v1014, 0.044715
        %v1106 = vmul.f32 %v1016, 0.044715
        %v1107 = vmul.f32 %v1018, 0.044715
        %v1108 = vmul.f32 %v1022, 0.044715
        %v1109 = vmul.f32 %v1024, 0.044715
        %v1110 = vmul.f32 %v1026, 0.044715
        %v1111 = vmul.f32 %v1028, 0.044715
        %v1112 = vmul.f32 %v1032, 0.044715
        %v1113 = vmul.f32 %v1034, 0.044715
        %v1114 = vmul.f32 %v1036, 0.044715
        %v1115 = vmul.f32 %v1038, 0.044715
        %v1116 = vmul.f32 %v1042, 0.044715
        %v1117 = vmul.f32 %v1044, 0.044715
        %v1118 = vmul.f32 %v1046, 0.044715
        %v1119 = vmul.f32 %v1048, 0.044715
        %v1120 = vmul.f32 %v1052, 0.044715
        %v1121 = vmul.f32 %v1054, 0.044715
        %v1122 = vmul.f32 %v1056, 0.044715
        %v1123 = vmul.f32 %v1058, 0.044715
        %v1124 = vmul.f32 %v1092, %v982
        %v1125 = vmul.f32 %v1093, %v984
        %v1126 = vmul.f32 %v1094, %v986
        %v1127 = vmul.f32 %v1095, %v988
        %v1128 = vmul.f32 %v1096, %v992
        %v1129 = vmul.f32 %v1097, %v994
        %v1130 = vmul.f32 %v1098, %v996
        %v1131 = vmul.f32 %v1099, %v998
        %v1132 = vmul.f32 %v1100, %v1002
        %v1133 = vmul.f32 %v1101, %v1004
        %v1134 = vmul.f32 %v1102, %v1006
        %v1135 = vmul.f32 %v1103, %v1008
        %v1136 = vmul.f32 %v1104, %v1012
        %v1137 = vmul.f32 %v1105, %v1014
        %v1138 = vmul.f32 %v1106, %v1016
        %v1139 = vmul.f32 %v1107, %v1018
        %v1140 = vmul.f32 %v1108, %v1022
        %v1141 = vmul.f32 %v1109, %v1024
        %v1142 = vmul.f32 %v1110, %v1026
        %v1143 = vmul.f32 %v1111, %v1028
        %v1144 = vmul.f32 %v1112, %v1032
        %v1145 = vmul.f32 %v1113, %v1034
        %v1146 = vmul.f32 %v1114, %v1036
        %v1147 = vmul.f32 %v1115, %v1038
        %v1148 = vmul.f32 %v1116, %v1042
        %v1149 = vmul.f32 %v1117, %v1044
        %v1150 = vmul.f32 %v1118, %v1046
        %v1151 = vmul.f32 %v1119, %v1048
        %v1152 = vmul.f32 %v1120, %v1052
        %v1153 = vmul.f32 %v1121, %v1054
        %v1154 = vmul.f32 %v1122, %v1056
        %v1155 = vmul.f32 %v1123, %v1058
        %v1156 = vmul.f32 %v1124, %v982
        %v1157 = vmul.f32 %v1125, %v984
        %v1158 = vmul.f32 %v1126, %v986
        %v1159 = vmul.f32 %v1127, %v988
        %v1160 = vmul.f32 %v1128, %v992
        %v1161 = vmul.f32 %v1129, %v994
        %v1162 = vmul.f32 %v1130, %v996
        %v1163 = vmul.f32 %v1131, %v998
        %v1164 = vmul.f32 %v1132, %v1002
        %v1165 = vmul.f32 %v1133, %v1004
        %v1166 = vmul.f32 %v1134, %v1006
        %v1167 = vmul.f32 %v1135, %v1008
        %v1168 = vmul.f32 %v1136, %v1012
        %v1169 = vmul.f32 %v1137, %v1014
        %v1170 = vmul.f32 %v1138, %v1016
        %v1171 = vmul.f32 %v1139, %v1018
        %v1172 = vmul.f32 %v1140, %v1022
        %v1173 = vmul.f32 %v1141, %v1024
        %v1174 = vmul.f32 %v1142, %v1026
        %v1175 = vmul.f32 %v1143, %v1028
        %v1176 = vmul.f32 %v1144, %v1032
        %v1177 = vmul.f32 %v1145, %v1034
        %v1178 = vmul.f32 %v1146, %v1036
        %v1179 = vmul.f32 %v1147, %v1038
        %v1180 = vmul.f32 %v1148, %v1042
        %v1181 = vmul.f32 %v1149, %v1044
        %v1182 = vmul.f32 %v1150, %v1046
        %v1183 = vmul.f32 %v1151, %v1048
        %v1184 = vmul.f32 %v1152, %v1052
        %v1185 = vmul.f32 %v1153, %v1054
        %v1186 = vmul.f32 %v1154, %v1056
        %v1187 = vmul.f32 %v1155, %v1058
        %v1188 = vadd.f32 %v982, %v1156
        %v1189 = vadd.f32 %v984, %v1157
        %v1190 = vadd.f32 %v986, %v1158
        %v1191 = vadd.f32 %v988, %v1159
        %v1192 = vadd.f32 %v992, %v1160
        %v1193 = vadd.f32 %v994, %v1161
        %v1194 = vadd.f32 %v996, %v1162
        %v1195 = vadd.f32 %v998, %v1163
        %v1196 = vadd.f32 %v1002, %v1164
        %v1197 = vadd.f32 %v1004, %v1165
        %v1198 = vadd.f32 %v1006, %v1166
        %v1199 = vadd.f32 %v1008, %v1167
        %v1200 = vadd.f32 %v1012, %v1168
        %v1201 = vadd.f32 %v1014, %v1169
        %v1202 = vadd.f32 %v1016, %v1170
        %v1203 = vadd.f32 %v1018, %v1171
        %v1204 = vadd.f32 %v1022, %v1172
        %v1205 = vadd.f32 %v1024, %v1173
        %v1206 = vadd.f32 %v1026, %v1174
        %v1207 = vadd.f32 %v1028, %v1175
        %v1208 = vadd.f32 %v1032, %v1176
        %v1209 = vadd.f32 %v1034, %v1177
        %v1210 = vadd.f32 %v1036, %v1178
        %v1211 = vadd.f32 %v1038, %v1179
        %v1212 = vadd.f32 %v1042, %v1180
        %v1213 = vadd.f32 %v1044, %v1181
        %v1214 = vadd.f32 %v1046, %v1182
        %v1215 = vadd.f32 %v1048, %v1183
        %v1216 = vadd.f32 %v1052, %v1184
        %v1217 = vadd.f32 %v1054, %v1185
        %v1218 = vadd.f32 %v1056, %v1186
        %v1219 = vadd.f32 %v1058, %v1187
        %v1220 = vmul.f32 %v1188, 0.7978846
        %v1221 = vmul.f32 %v1189, 0.7978846
        %v1222 = vmul.f32 %v1190, 0.7978846
        %v1223 = vmul.f32 %v1191, 0.7978846
        %v1224 = vmul.f32 %v1192, 0.7978846
        %v1225 = vmul.f32 %v1193, 0.7978846
        %v1226 = vmul.f32 %v1194, 0.7978846
        %v1227 = vmul.f32 %v1195, 0.7978846
        %v1228 = vmul.f32 %v1196, 0.7978846
        %v1229 = vmul.f32 %v1197, 0.7978846
        %v1230 = vmul.f32 %v1198, 0.7978846
        %v1231 = vmul.f32 %v1199, 0.7978846
        %v1232 = vmul.f32 %v1200, 0.7978846
        %v1233 = vmul.f32 %v1201, 0.7978846
        %v1234 = vmul.f32 %v1202, 0.7978846
        %v1235 = vmul.f32 %v1203, 0.7978846
        %v1236 = vmul.f32 %v1204, 0.7978846
        %v1237 = vmul.f32 %v1205, 0.7978846
        %v1238 = vmul.f32 %v1206, 0.7978846
        %v1239 = vmul.f32 %v1207, 0.7978846
        %v1240 = vmul.f32 %v1208, 0.7978846
        %v1241 = vmul.f32 %v1209, 0.7978846
        %v1242 = vmul.f32 %v1210, 0.7978846
        %v1243 = vmul.f32 %v1211, 0.7978846
        %v1244 = vmul.f32 %v1212, 0.7978846
        %v1245 = vmul.f32 %v1213, 0.7978846
        %v1246 = vmul.f32 %v1214, 0.7978846
        %v1247 = vmul.f32 %v1215, 0.7978846
        %v1248 = vmul.f32 %v1216, 0.7978846
        %v1249 = vmul.f32 %v1217, 0.7978846
        %v1250 = vmul.f32 %v1218, 0.7978846
        %v1251 = vmul.f32 %v1219, 0.7978846
        %v1252 = vtanh.pop %v1220
        %v1253 = vtanh.pop %v1221
        %v1254 = vtanh.pop %v1222
        %v1255 = vtanh.pop %v1223
        %v1256 = vtanh.pop %v1224
        %v1257 = vtanh.pop %v1225
        %v1258 = vtanh.pop %v1226
        %v1259 = vtanh.pop %v1227
        %v1260 = vtanh.pop %v1228
        %v1261 = vtanh.pop %v1229
        %v1262 = vtanh.pop %v1230
        %v1263 = vtanh.pop %v1231
        %v1264 = vtanh.pop %v1232
        %v1265 = vtanh.pop %v1233
        %v1266 = vtanh.pop %v1234
        %v1267 = vtanh.pop %v1235
        %v1268 = vtanh.pop %v1236
        %v1269 = vtanh.pop %v1237
        %v1270 = vtanh.pop %v1238
        %v1271 = vtanh.pop %v1239
        %v1272 = vtanh.pop %v1240
        %v1273 = vtanh.pop %v1241
        %v1274 = vtanh.pop %v1242
        %v1275 = vtanh.pop %v1243
        %v1276 = vtanh.pop %v1244
        %v1277 = vtanh.pop %v1245
        %v1278 = vtanh.pop %v1246
        %v1279 = vtanh.pop %v1247
        %v1280 = vtanh.pop %v1248
        %v1281 = vtanh.pop %v1249
        %v1282 = vtanh.pop %v1250
        %v1283 = vtanh.pop %v1251
        %v1284 = vadd.f32 %v1252, 1.0
        %v1285 = vadd.f32 %v1253, 1.0
        %v1286 = vadd.f32 %v1254, 1.0
        %v1287 = vadd.f32 %v1255, 1.0
        %v1288 = vadd.f32 %v1256, 1.0
        %v1289 = vadd.f32 %v1257, 1.0
        %v1290 = vadd.f32 %v1258, 1.0
        %v1291 = vadd.f32 %v1259, 1.0
        %v1292 = vadd.f32 %v1260, 1.0
        %v1293 = vadd.f32 %v1261, 1.0
        %v1294 = vadd.f32 %v1262, 1.0
        %v1295 = vadd.f32 %v1263, 1.0
        %v1296 = vadd.f32 %v1264, 1.0
        %v1297 = vadd.f32 %v1265, 1.0
        %v1298 = vadd.f32 %v1266, 1.0
        %v1299 = vadd.f32 %v1267, 1.0
        %v1300 = vadd.f32 %v1268, 1.0
        %v1301 = vadd.f32 %v1269, 1.0
        %v1302 = vadd.f32 %v1270, 1.0
        %v1303 = vadd.f32 %v1271, 1.0
        %v1304 = vadd.f32 %v1272, 1.0
        %v1305 = vadd.f32 %v1273, 1.0
        %v1306 = vadd.f32 %v1274, 1.0
        %v1307 = vadd.f32 %v1275, 1.0
        %v1308 = vadd.f32 %v1276, 1.0
        %v1309 = vadd.f32 %v1277, 1.0
        %v1310 = vadd.f32 %v1278, 1.0
        %v1311 = vadd.f32 %v1279, 1.0
        %v1312 = vadd.f32 %v1280, 1.0
        %v1313 = vadd.f32 %v1281, 1.0
        %v1314 = vadd.f32 %v1282, 1.0
        %v1315 = vadd.f32 %v1283, 1.0
        %v1316 = vmul.f32 %v1060, %v1284
        %v1317 = vmul.f32 %v1061, %v1285
        %v1318 = vmul.f32 %v1062, %v1286
        %v1319 = vmul.f32 %v1063, %v1287
        %v1320 = vmul.f32 %v1064, %v1288
        %v1321 = vmul.f32 %v1065, %v1289
        %v1322 = vmul.f32 %v1066, %v1290
        %v1323 = vmul.f32 %v1067, %v1291
        %v1324 = vmul.f32 %v1068, %v1292
        %v1325 = vmul.f32 %v1069, %v1293
        %v1326 = vmul.f32 %v1070, %v1294
        %v1327 = vmul.f32 %v1071, %v1295
        %v1328 = vmul.f32 %v1072, %v1296
        %v1329 = vmul.f32 %v1073, %v1297
        %v1330 = vmul.f32 %v1074, %v1298
        %v1331 = vmul.f32 %v1075, %v1299
        %v1332 = vmul.f32 %v1076, %v1300
        %v1333 = vmul.f32 %v1077, %v1301
        %v1334 = vmul.f32 %v1078, %v1302
        %v1335 = vmul.f32 %v1079, %v1303
        %v1336 = vmul.f32 %v1080, %v1304
        %v1337 = vmul.f32 %v1081, %v1305
        %v1338 = vmul.f32 %v1082, %v1306
        %v1339 = vmul.f32 %v1083, %v1307
        %v1340 = vmul.f32 %v1084, %v1308
        %v1341 = vmul.f32 %v1085, %v1309
        %v1342 = vmul.f32 %v1086, %v1310
        %v1343 = vmul.f32 %v1087, %v1311
        %v1344 = vmul.f32 %v1088, %v1312
        %v1345 = vmul.f32 %v1089, %v1313
        %v1346 = vmul.f32 %v1090, %v1314
        %v1347 = vmul.f32 %v1091, %v1315
        %v1348 = vld [vmem:[%s5] sm:$0xf]
        %v1349 = vld [vmem:[%s5 + $0x4] sm:$0xf]
        %v1350 = vld [vmem:[%s5 + $0x8] sm:$0xf]
        %v1351 = vld [vmem:[%s5 + $0xc] sm:$0xf]
        %v1352 = vpack.c.bf16 %v1318, %v1316
        %v1353 = vpack.c.bf16 %v1319, %v1317
        %v1354 = vpack.c.bf16 %v1322, %v1320
        %v1355 = vpack.c.bf16 %v1323, %v1321
        %v1356 = vpack.c.bf16 %v1326, %v1324
        %v1357 = vpack.c.bf16 %v1327, %v1325
        %v1358 = vpack.c.bf16 %v1330, %v1328
        %v1359 = vpack.c.bf16 %v1331, %v1329
        %v1360 = vpack.c.bf16 %v1334, %v1332
        %v1361 = vpack.c.bf16 %v1335, %v1333
        %v1362 = vpack.c.bf16 %v1338, %v1336
        %v1363 = vpack.c.bf16 %v1339, %v1337
        %v1364 = vpack.c.bf16 %v1342, %v1340
        %v1365 = vpack.c.bf16 %v1343, %v1341
        %v1366 = vpack.c.bf16 %v1346, %v1344
        %v1367 = vpack.c.bf16 %v1347, %v1345
        %v1372 = vunpack.c.l.b16 %v1348
        %v1373 = vunpack.c.l.b16 %v1349
        %v1374 = vunpack.c.l.b16 %v1350
        %v1375 = vunpack.c.l.b16 %v1351
        %v1376 = vpack.c.b16 %v1373, %v1372
        %v1377 = vpack.c.b16 %v1375, %v1374
        %1380 = vmatprep.subr.bf16.mxu0 %v1367
        %1381 = vmatpush1.bf16.msra.mxu0 %v1366
        %1382 = vmatprep.subr.bf16.mxu0 %v1365
        %1383 = vmatpush1.bf16.msra.mxu0 %v1364
        %1384 = vmatprep.subr.bf16.mxu0 %v1363
        %1385 = vmatpush1.bf16.msra.mxu0 %v1362
        %1386 = vmatprep.subr.bf16.mxu0 %v1361
        %1387 = vmatpush1.bf16.msra.mxu0 %v1360
        %1388 = vmatprep.subr.bf16.mxu0 %v1359
        %1389 = vmatpush1.bf16.msra.mxu0 %v1358
        %1390 = vmatprep.subr.bf16.mxu0 %v1357
        %1391 = vmatpush1.bf16.msra.mxu0 %v1356
        %1392 = vmatprep.subr.bf16.mxu0 %v1355
        %1393 = vmatpush1.bf16.msra.mxu0 %v1354
        %1394 = vmatprep.subr.bf16.mxu0 %v1353
        %1395 = vmatpush1.bf16.msra.mxu0 %v1352
        %1396 = vmatprep.subr.bf16.mxu0 0
        %1397 = vmatpush2.bf16.msra.mxu0 0
        %1398 = vmatprep.subr.bf16.mxu0 0
        %1399 = vmatpush2.bf16.msra.mxu0 0
        %1400 = vmatprep.subr.bf16.mxu0 0
        %1401 = vmatpush2.bf16.msra.mxu0 0
        %1402 = vmatprep.subr.bf16.mxu0 0
        %1403 = vmatpush2.bf16.msra.mxu0 0
        %1404 = vmatprep.subr.bf16.mxu0 0
        %1405 = vmatpush2.bf16.msra.mxu0 0
        %1406 = vmatprep.subr.bf16.mxu0 0
        %1407 = vmatpush2.bf16.msra.mxu0 0
        %1408 = vmatprep.subr.bf16.mxu0 0
        %1409 = vmatpush2.bf16.msra.mxu0 0
        %1410 = vmatprep.subr.bf16.mxu0 0
        %1411 = vmatpush2.bf16.msra.mxu0 0
        %1412 = vmatprep.mubr.bf16.mxu0 0
        %1413 = vmatmul.mubr.bf16.gmra.mxu0 %v1376
        %v1414 = vpop.f32.mrf.mxu0
        %v1415 = vadd.f32 0.0, %v1414
        %v1416 = vpop.f32.mrf.mxu0
        %v1417 = vadd.f32 0.0, %v1416
        %v1418 = vpop.f32.mrf.mxu0
        %v1419 = vadd.f32 0.0, %v1418
        %v1420 = vpop.f32.mrf.mxu0
        %v1421 = vadd.f32 0.0, %v1420
        %1422 = vmatprep.mubr.bf16.mxu0 0
        %1423 = vmatmul.mubr.bf16.gmra.mxu0 %v1377
        %v1424 = vpop.f32.mrf.mxu0
        %v1425 = vadd.f32 0.0, %v1424
        %v1426 = vpop.f32.mrf.mxu0
        %v1427 = vadd.f32 0.0, %v1426
        %v1428 = vpop.f32.mrf.mxu0
        %v1429 = vadd.f32 0.0, %v1428
        %v1430 = vpop.f32.mrf.mxu0
        %v1431 = vadd.f32 0.0, %v1430
        %1432 = vdwg.mxu0
        %v1433 = vadd.f32 %v278, %v1415
        %v1434 = vadd.f32 %v279, %v1417
        %v1435 = vadd.f32 %v280, %v1419
        %v1436 = vadd.f32 %v281, %v1421
        %v1437 = vadd.f32 %v282, %v1425
        %v1438 = vadd.f32 %v283, %v1427
        %v1439 = vadd.f32 %v284, %v1429
        %v1440 = vadd.f32 %v285, %v1431
        %v1441 = vld [vmem:[%s6] sm:$0xff]
        %v1442 = vld [vmem:[%s6 + $0x8] sm:$0xff]
        %v1443 = vld [vmem:[%s6 + $0x10] sm:$0xff]
        %v1444 = vld [vmem:[%s6 + $0x18] sm:$0xff]
        %1446 = vset.pattern.permute.xlu0 0
        %1447 = vperm.xlu0 %1446, %v1441
        %v1448 = vpop.permute.xlu0 %1447
        %1451 = vset.pattern.permute.xlu0 0
        %1452 = vperm.xlu0 %1451, %v1442
        %v1453 = vpop.permute.xlu0 %1452
        %1456 = vset.pattern.permute.xlu0 0
        %1457 = vperm.xlu0 %1456, %v1443
        %v1458 = vpop.permute.xlu0 %1457
        %1461 = vset.pattern.permute.xlu0 0
        %1462 = vperm.xlu0 %1461, %v1444
        %v1463 = vpop.permute.xlu0 %1462
        %v1465 = vadd.f32 %v1433, %v1448
        %v1466 = vadd.f32 %v1434, %v1448
        %v1467 = vadd.f32 %v1435, %v1453
        %v1468 = vadd.f32 %v1436, %v1453
        %v1469 = vadd.f32 %v1437, %v1458
        %v1470 = vadd.f32 %v1438, %v1458
        %v1471 = vadd.f32 %v1439, %v1463
        %v1472 = vadd.f32 %v1440, %v1463
        %1473 = vst [vmem:[%s271] sm:$0xff] %v1465
        %1474 = vst [vmem:[%s271 + $0x8] sm:$0xff] %v1466
        %1475 = vst [vmem:[%s271 + $0x10] sm:$0xff] %v1467
        %1476 = vst [vmem:[%s271 + $0x18] sm:$0xff] %v1468
        %1477 = vst [vmem:[%s271 + $0x20] sm:$0xff] %v1469
        %1478 = vst [vmem:[%s271 + $0x28] sm:$0xff] %v1470
        %1479 = vst [vmem:[%s271 + $0x30] sm:$0xff] %v1471
        %1480 = vst [vmem:[%s271 + $0x38] sm:$0xff] %v1472
        %s1481 = sand.u32 %s181, 1
        %s1482 = scalar_lea.sflag [#allocation3], %s1481
        %s1483 = sand.u32 %s181, 1
        %s1484 = smul.addr %s1483, 64
        %s1485 = scalar_lea.vmem [#allocation2], %s1484
        // Predicated region
        $region49: #{tpu_custom_call.1} parent=47 // pred_check
          %p1486 = pneg %p191
        $region50: #{tpu_custom_call.1} parent=47 // pred_check_branch
          %1488 = sbr.rel (%p1486) target = $region52
        $region51: #{tpu_custom_call.1} parent=47 // pred_region
          %s1490 = ssub.s32 1024, 1024
          %1491 = vsyncadd %s1482, %s1490
          %s1492 = smul.addr %s21, 8
          %s1493 = smul.addr %s1492, 128
          %s1494 = scalar_lea.hbm %s7, %s1493
          %s1495 = sshll.u32 %s1485, 4
          %s1496 = int_to_ptr.vmem [resolvable:$true] %s1495
          %1501 = dma.vmem_to_hbm [thread:$0]  %s1496, 1024, %s1494, %s1482, 256, 256, 16
        $region52: #{tpu_custom_call.1} parent=47 // pred_fallthru
          _
      $region48: #{tpu_custom_call.1} parent=5 // pred_fallthru
        _
      %p1502 = scmp.le.s32.totalorder 2, %s16
      // Predicated region
      $region53: #{tpu_custom_call.1} parent=5 // pred_check
        %p1503 = pneg %p1502
      $region54: #{tpu_custom_call.1} parent=5 // pred_check_branch
        %1505 = sbr.rel (%p1503) target = $region56
      $region55: #{tpu_custom_call.1} parent=5 // pred_region
        %s1506 = ssub.s32 %s16, 2
        // Predicated region
        $region57: #{tpu_custom_call.1} parent=55 // pred_check
          %p1507 = pneg %p197
        $region58: #{tpu_custom_call.1} parent=55 // pred_check_branch
          %1509 = sbr.rel (%p1507) target = $region60
        $region59: #{tpu_custom_call.1} parent=55 // pred_region
          %s1510 = sand.u32 %s182, 1
          %s1511 = scalar_lea.sflag [#allocation3], %s1510
          %s1512 = sand.u32 %s182, 1
          %s1513 = smul.addr %s1512, 64
          %s1514 = scalar_lea.vmem [#allocation2], %s1513
          %1515 = dma.done %s1511, 1024
        $region60: #{tpu_custom_call.1} parent=55 // pred_fallthru
          _
      $region56: #{tpu_custom_call.1} parent=5 // pred_fallthru
        _
    $region6: #{tpu_custom_call.1} parent=1 // loop_footer
      %s20 = sadd.s32 1, %s16
    $region7: #{tpu_custom_call.1} parent=1 // loop_footer_branch
      %15 = sbr.rel target = $region3
    $region8: #{tpu_custom_call.1} parent=1 // loop_exit
      _
    %1516 = vsyncpa [#allocation3], 1
    %s1517 = scalar_lea.sflag [#allocation3], 1
    %1518 = vsyncpa %s1517, 1

// kernel: tpu_custom_call.1
$region0: #{tpu_custom_call.1}
  #allocation0 [shape = 'u32[]', space=smem, size = 0x4, offset = 0x4, fixed_abs, tag = 'smem constant byte address 0x4 - core index']
  #allocation1 [shape = 'u32[144,128]{1,0:T(1,128)}', space=vmem, size = 0x12000, scoped, tag = 'internal scratch']
  %s0 = inlined_call_operand.vmem [shape: f32[2,32,256], index: 0, kind: input, shape index: {}]
  %s1 = inlined_call_operand.vmem [shape: f32[32,32], index: 1, kind: input, shape index: {}]
  %s2 = inlined_call_operand.vmem [shape: f32[32,32], index: 2, kind: input, shape index: {}]
  %s3 = inlined_call_operand.vmem [shape: bf16[128,32], index: 3, kind: input, shape index: {}]
  %s4 = inlined_call_operand.vmem [shape: f32[128,1], index: 4, kind: input, shape index: {}]
  %s5 = inlined_call_operand.vmem [shape: bf16[32,128], index: 5, kind: input, shape index: {}]
  %s6 = inlined_call_operand.vmem [shape: f32[32,1], index: 6, kind: input, shape index: {}]
  %s7 = inlined_call_operand.hbm [shape: f32[2,32,256], index: 7, kind: output, shape index: {}]
  %s8 = sld [smem:[#allocation0]]
  $region61: #{tpu_custom_call.1} parent=0
    _
  %s10 = ssub.s32 1, %s8
  %s11 = scalar_select 0, %s10, %s8
  $region1: #{tpu_custom_call.1} parent=0
    #allocation2 [shape = 'u8[65536]{0}', space=vmem, size = 0x10000, scoped, tag = 'output window, operand 0']
    #allocation3 [shape = 's32[2]{0}', space=sflag, size = 0x8, scoped, tag = 'scoped memory for tpu_custom_call.1']
    %12 = vsyncpa [#allocation3], 0
    %s13 = scalar_lea.sflag [#allocation3], 1
    %14 = vsyncpa %s13, 0
    loop: start=0, step=1, limit=4
    $region2: #{tpu_custom_call.1} parent=1 // loop_pre_header
      _
    $region3: #{tpu_custom_call.1} parent=1 // loop_header
      %s16 = sphi 0, %s20
      %p17 = scmp.ge.s32.totalorder %s16, 4
      %s26 = sphi 0, %s28
      %s29 = sphi 0, %s26
      %s30 = sphi 0, %s29
      %s46 = sphi 0, %s30
      %s50 = sphi 0, %s50
      %s52 = sphi 0, %s50
      %s53 = sphi 0, %s52
      %s67 = sphi 0, %s53
      %s71 = sphi 0, %s71
      %s73 = sphi 0, %s71
      %s74 = sphi 0, %s73
      %s88 = sphi 0, %s74
      %s92 = sphi 0, %s92
      %s94 = sphi 0, %s92
      %s95 = sphi 0, %s94
      %s109 = sphi 0, %s95
      %s113 = sphi 0, %s113
      %s115 = sphi 0, %s113
      %s116 = sphi 0, %s115
      %s130 = sphi 0, %s116
      %s134 = sphi 0, %s134
      %s136 = sphi 0, %s134
      %s137 = sphi 0, %s136
      %s151 = sphi 0, %s137
      %s155 = sphi 0, %s155
      %s157 = sphi 0, %s155
      %s158 = sphi 0, %s157
      %s172 = sphi 0, %s158
      %s178 = sphi 0, %s180
      %s181 = sphi 0, %s178
      %s182 = sphi 0, %s181
      %s198 = sphi 0, %s182
    $region4: #{tpu_custom_call.1} parent=1 // loop_header_branch
      %19 = sbr.rel (%p17) target = $region8
    $region5: #{tpu_custom_call.1} parent=1 // loop_body
      %s21 = ssub.s32 %s16, 1
      %s22 = ssub.s32 %s16, 2
      %s23 = sadd.s32 %s16, 1
      %s24 = ssub.s32 %s16, %s23
      %p25 = scmp.eq.s32.totalorder %s24, 0
      %s27 = sadd.s32 %s26, 1
      %s28 = scalar_select %p25, %s26, %s27
      %p31 = pneg %p25
      %p32 = scmp.eq.s32.totalorder %s16, 1
      %p33 = por %p31, %p32
      %p34 = scmp.ne.s32.totalorder %s26, %s29
      %p35 = scmp.eq.s32.totalorder %s16, 0
      %p36 = por %p34, %p35
      %p37 = scmp.ne.s32.totalorder %s26, %s29
      %p38 = scmp.eq.s32.totalorder %s21, 1
      %p39 = por %p37, %p38
      %p40 = scmp.ne.s32.totalorder %s29, %s30
      %p41 = scmp.eq.s32.totalorder %s21, 0
      %p42 = por %p40, %p41
      %p43 = scmp.ne.s32.totalorder %s29, %s30
      %p44 = scmp.eq.s32.totalorder %s22, 1
      %p45 = por %p43, %p44
      %p47 = scmp.ne.s32.totalorder %s30, %s46
      %p48 = scmp.eq.s32.totalorder %s22, 0
      %p49 = por %p47, %p48
      %s51 = sadd.s32 %s50, 1
      %p54 = scmp.eq.s32.totalorder %s16, 1
      %p55 = scmp.ne.s32.totalorder %s50, %s52
      %p56 = scmp.eq.s32.totalorder %s16, 0
      %p57 = por %p55, %p56
      %p58 = scmp.ne.s32.totalorder %s50, %s52
      %p59 = scmp.eq.s32.totalorder %s21, 1
      %p60 = por %p58, %p59
      %p61 = scmp.ne.s32.totalorder %s52, %s53
      %p62 = scmp.eq.s32.totalorder %s21, 0
      %p63 = por %p61, %p62
      %p64 = scmp.ne.s32.totalorder %s52, %s53
      %p65 = scmp.eq.s32.totalorder %s22, 1
      %p66 = por %p64, %p65
      %p68 = scmp.ne.s32.totalorder %s53, %s67
      %p69 = scmp.eq.s32.totalorder %s22, 0
      %p70 = por %p68, %p69
      %s72 = sadd.s32 %s71, 1
      %p75 = scmp.eq.s32.totalorder %s16, 1
      %p76 = scmp.ne.s32.totalorder %s71, %s73
      %p77 = scmp.eq.s32.totalorder %s16, 0
      %p78 = por %p76, %p77
      %p79 = scmp.ne.s32.totalorder %s71, %s73
      %p80 = scmp.eq.s32.totalorder %s21, 1
      %p81 = por %p79, %p80
      %p82 = scmp.ne.s32.totalorder %s73, %s74
      %p83 = scmp.eq.s32.totalorder %s21, 0
      %p84 = por %p82, %p83
      %p85 = scmp.ne.s32.totalorder %s73, %s74
      %p86 = scmp.eq.s32.totalorder %s22, 1
      %p87 = por %p85, %p86
      %p89 = scmp.ne.s32.totalorder %s74, %s88
      %p90 = scmp.eq.s32.totalorder %s22, 0
      %p91 = por %p89, %p90
      %s93 = sadd.s32 %s92, 1
      %p96 = scmp.eq.s32.totalorder %s16, 1
      %p97 = scmp.ne.s32.totalorder %s92, %s94
      %p98 = scmp.eq.s32.totalorder %s16, 0
      %p99 = por %p97, %p98
      %p100 = scmp.ne.s32.totalorder %s92, %s94
      %p101 = scmp.eq.s32.totalorder %s21, 1
      %p102 = por %p100, %p101
      %p103 = scmp.ne.s32.totalorder %s94, %s95
      %p104 = scmp.eq.s32.totalorder %s21, 0
      %p105 = por %p103, %p104
      %p106 = scmp.ne.s32.totalorder %s94, %s95
      %p107 = scmp.eq.s32.totalorder %s22, 1
      %p108 = por %p106, %p107
      %p110 = scmp.ne.s32.totalorder %s95, %s109
      %p111 = scmp.eq.s32.totalorder %s22, 0
      %p112 = por %p110, %p111
      %s114 = sadd.s32 %s113, 1
      %p117 = scmp.eq.s32.totalorder %s16, 1
      %p118 = scmp.ne.s32.totalorder %s113, %s115
      %p119 = scmp.eq.s32.totalorder %s16, 0
      %p120 = por %p118, %p119
      %p121 = scmp.ne.s32.totalorder %s113, %s115
      %p122 = scmp.eq.s32.totalorder %s21, 1
      %p123 = por %p121, %p122
      %p124 = scmp.ne.s32.totalorder %s115, %s116
      %p125 = scmp.eq.s32.totalorder %s21, 0
      %p126 = por %p124, %p125
      %p127 = scmp.ne.s32.totalorder %s115, %s116
      %p128 = scmp.eq.s32.totalorder %s22, 1
      %p129 = por %p127, %p128
      %p131 = scmp.ne.s32.totalorder %s116, %s130
      %p132 = scmp.eq.s32.totalorder %s22, 0
      %p133 = por %p131, %p132
      %s135 = sadd.s32 %s134, 1
      %p138 = scmp.eq.s32.totalorder %s16, 1
      %p139 = scmp.ne.s32.totalorder %s134, %s136
      %p140 = scmp.eq.s32.totalorder %s16, 0
      %p141 = por %p139, %p140
      %p142 = scmp.ne.s32.totalorder %s134, %s136
      %p143 = scmp.eq.s32.totalorder %s21, 1
      %p144 = por %p142, %p143
      %p145 = scmp.ne.s32.totalorder %s136, %s137
      %p146 = scmp.eq.s32.totalorder %s21, 0
      %p147 = por %p145, %p146
      %p148 = scmp.ne.s32.totalorder %s136, %s137
      %p149 = scmp.eq.s32.totalorder %s22, 1
      %p150 = por %p148, %p149
      %p152 = scmp.ne.s32.totalorder %s137, %s151
      %p153 = scmp.eq.s32.totalorder %s22, 0
      %p154 = por %p152, %p153
      %s156 = sadd.s32 %s155, 1
      %p159 = scmp.eq.s32.totalorder %s16, 1
      %p160 = scmp.ne.s32.totalorder %s155, %s157
      %p161 = scmp.eq.s32.totalorder %s16, 0
      %p162 = por %p160, %p161
      %p163 = scmp.ne.s32.totalorder %s155, %s157
      %p164 = scmp.eq.s32.totalorder %s21, 1
      %p165 = por %p163, %p164
      %p166 = scmp.ne.s32.totalorder %s157, %s158
      %p167 = scmp.eq.s32.totalorder %s21, 0
      %p168 = por %p166, %p167
      %p169 = scmp.ne.s32.totalorder %s157, %s158
      %p170 = scmp.eq.s32.totalorder %s22, 1
      %p171 = por %p169, %p170
      %p173 = scmp.ne.s32.totalorder %s158, %s172
      %p174 = scmp.eq.s32.totalorder %s22, 0
      %p175 = por %p173, %p174
      %s176 = ssub.s32 %s16, %s23
      %p177 = scmp.eq.s32.totalorder %s176, 0
      %s179 = sadd.s32 %s178, 1
      %s180 = scalar_select %p177, %s178, %s179
      %p183 = pneg %p177
      %p184 = scmp.eq.s32.totalorder %s16, 1
      %p185 = por %p183, %p184
      %p186 = scmp.ne.s32.totalorder %s178, %s181
      %p187 = scmp.eq.s32.totalorder %s16, 0
      %p188 = por %p186, %p187
      %p189 = scmp.ne.s32.totalorder %s178, %s181
      %p190 = scmp.eq.s32.totalorder %s21, 1
      %p191 = por %p189, %p190
      %p192 = scmp.ne.s32.totalorder %s181, %s182
      %p193 = scmp.eq.s32.totalorder %s21, 0
      %p194 = por %p192, %p193
      %p195 = scmp.ne.s32.totalorder %s181, %s182
      %p196 = scmp.eq.s32.totalorder %s22, 1
      %p197 = por %p195, %p196
      %p199 = scmp.ne.s32.totalorder %s182, %s198
      %p200 = scmp.eq.s32.totalorder %s22, 0
      %p201 = por %p199, %p200
      %p202 = scmp.le.s32.totalorder 1, %s16
      %p203 = scmp.lt.s32.totalorder %s16, 3
      %p204 = pnand %p202, %p203
      %p205 = pneg %p204
      // Predicated region
      $region9: #{tpu_custom_call.1} parent=5 // pred_check
        _
      $region10: #{tpu_custom_call.1} parent=5 // pred_check_branch
        %207 = sbr.rel (%p204) target = $region12
      $region11: #{tpu_custom_call.1} parent=5 // pred_region
        %s208 = ssub.s32 %s16, 1
        // Predicated region
        $region13: #{tpu_custom_call.1} parent=11 // pred_check
          %p209 = pneg %p63
        $region14: #{tpu_custom_call.1} parent=11 // pred_check_branch
          %211 = sbr.rel (%p209) target = $region16
        $region15: #{tpu_custom_call.1} parent=11 // pred_region
          _
        $region16: #{tpu_custom_call.1} parent=11 // pred_fallthru
          _
        // Predicated region
        $region17: #{tpu_custom_call.1} parent=11 // pred_check
          %p212 = pneg %p84
        $region18: #{tpu_custom_call.1} parent=11 // pred_check_branch
          %214 = sbr.rel (%p212) target = $region20
        $region19: #{tpu_custom_call.1} parent=11 // pred_region
          _
        $region20: #{tpu_custom_call.1} parent=11 // pred_fallthru
          _
        // Predicated region
        $region21: #{tpu_custom_call.1} parent=11 // pred_check
          %p215 = pneg %p105
        $region22: #{tpu_custom_call.1} parent=11 // pred_check_branch
          %217 = sbr.rel (%p215) target = $region24
        $region23: #{tpu_custom_call.1} parent=11 // pred_region
          _
        $region24: #{tpu_custom_call.1} parent=11 // pred_fallthru
          _
        // Predicated region
        $region25: #{tpu_custom_call.1} parent=11 // pred_check
          %p218 = pneg %p126
        $region26: #{tpu_custom_call.1} parent=11 // pred_check_branch
          %220 = sbr.rel (%p218) target = $region28
        $region27: #{tpu_custom_call.1} parent=11 // pred_region
          _
        $region28: #{tpu_custom_call.1} parent=11 // pred_fallthru
          _
        // Predicated region
        $region29: #{tpu_custom_call.1} parent=11 // pred_check
          %p221 = pneg %p147
        $region30: #{tpu_custom_call.1} parent=11 // pred_check_branch
          %223 = sbr.rel (%p221) target = $region32
        $region31: #{tpu_custom_call.1} parent=11 // pred_region
          _
        $region32: #{tpu_custom_call.1} parent=11 // pred_fallthru
          _
        // Predicated region
        $region33: #{tpu_custom_call.1} parent=11 // pred_check
          %p224 = pneg %p168
        $region34: #{tpu_custom_call.1} parent=11 // pred_check_branch
          %226 = sbr.rel (%p224) target = $region36
        $region35: #{tpu_custom_call.1} parent=11 // pred_region
          _
        $region36: #{tpu_custom_call.1} parent=11 // pred_fallthru
          _
      $region12: #{tpu_custom_call.1} parent=5 // pred_fallthru
        _
      %p227 = scmp.lt.s32.totalorder %s16, 2
      // Predicated region
      $region37: #{tpu_custom_call.1} parent=5 // pred_check
        %p228 = pneg %p227
      $region38: #{tpu_custom_call.1} parent=5 // pred_check_branch
        %230 = sbr.rel (%p228) target = $region40
      $region39: #{tpu_custom_call.1} parent=5 // pred_region
        // Predicated region
        $region41: #{tpu_custom_call.1} parent=39 // pred_check
          %p231 = pneg %p36
        $region42: #{tpu_custom_call.1} parent=39 // pred_check_branch
          %233 = sbr.rel (%p231) target = $region44
        $region43: #{tpu_custom_call.1} parent=39 // pred_region
          %p234 = scmp.lt.s32.totalorder %s16, 1
          %s235 = scalar_select %p234, %s16, 1
          %s236 = smul.addr %s235, 8
          %s237 = smul.addr %s236, 8
          %s238 = scalar_lea.vmem %s0, %s237
        $region44: #{tpu_custom_call.1} parent=39 // pred_fallthru
          _
      $region40: #{tpu_custom_call.1} parent=5 // pred_fallthru
        _
      %p239 = scmp.le.s32.totalorder 1, %s16
      %p240 = scmp.lt.s32.totalorder %s16, 3
      %p241 = pnand %p239, %p240
      %p242 = pneg %p241
      // Predicated region
      $region45: #{tpu_custom_call.1} parent=5 // pred_check
        _
      $region46: #{tpu_custom_call.1} parent=5 // pred_check_branch
        %244 = sbr.rel (%p241) target = $region48
      $region47: #{tpu_custom_call.1} parent=5 // pred_region
        %s245 = ssub.s32 %s16, 1
        %p246 = scmp.lt.s32.totalorder %s21, 1
        %s247 = scalar_select %p246, %s21, 1
        %s248 = smul.addr %s247, 8
        %s249 = smul.addr %s248, 8
        %s250 = scalar_lea.vmem %s0, %s249
        %p251 = pneg %p42
        %p252 = pneg %p39
        %p253 = pneg %p63
        %p254 = pneg %p60
        %p255 = pneg %p84
        %p256 = pneg %p81
        %p257 = pneg %p105
        %p258 = pneg %p102
        %p259 = pneg %p126
        %p260 = pneg %p123
        %p261 = pneg %p147
        %p262 = pneg %p144
        %p263 = pneg %p168
        %p264 = pneg %p165
        %p265 = pneg %p194
        %p266 = pneg %p191
        %s267 = sand.u32 %s181, 1
        %s268 = scalar_lea.sflag [#allocation3], %s267
        %s269 = sand.u32 %s181, 1
        %s270 = smul.addr %s269, 64
        %s271 = scalar_lea.vmem [#allocation2], %s270
        %p272 = scmp.lt.s32.totalorder %s21, 1
        %s273 = scalar_select %p272, %s21, 1
        %s274 = smul.addr %s273, 8
        %s275 = smul.addr %s274, 8
        %s276 = scalar_lea.vmem %s0, %s275
        %v278 = vld [vmem:[%s276] sm:$0xff]
        %v279 = vld [vmem:[%s276 + $0x8] sm:$0xff]
        %v280 = vld [vmem:[%s276 + $0x10] sm:$0xff]
        %v281 = vld [vmem:[%s276 + $0x18] sm:$0xff]
        %v282 = vld [vmem:[%s276 + $0x20] sm:$0xff]
        %v283 = vld [vmem:[%s276 + $0x28] sm:$0xff]
        %v284 = vld [vmem:[%s276 + $0x30] sm:$0xff]
        %v285 = vld [vmem:[%s276 + $0x38] sm:$0xff]
        %v286 = vadd.f32 %v278, %v279
        %287 = vadd.xlane.f32.xlu0 %v286
        %v288 = vpop.xlane.xlu0 %287
        %v289 = vadd.f32 %v280, %v281
        %290 = vadd.xlane.f32.xlu0 %v289
        %v291 = vpop.xlane.xlu0 %290
        %v292 = vadd.f32 %v282, %v283
        %293 = vadd.xlane.f32.xlu0 %v292
        %v294 = vpop.xlane.xlu0 %293
        %v295 = vadd.f32 %v284, %v285
        %296 = vadd.xlane.f32.xlu0 %v295
        %v297 = vpop.xlane.xlu0 %296
        %v298 = vmul.f32 %v278, %v278
        %v299 = vmul.f32 %v279, %v279
        %v300 = vmul.f32 %v280, %v280
        %v301 = vmul.f32 %v281, %v281
        %v302 = vmul.f32 %v282, %v282
        %v303 = vmul.f32 %v283, %v283
        %v304 = vmul.f32 %v284, %v284
        %v305 = vmul.f32 %v285, %v285
        %v306 = vadd.f32 %v298, %v299
        %307 = vadd.xlane.f32.xlu0 %v306
        %v308 = vpop.xlane.xlu0 %307
        %v309 = vadd.f32 %v300, %v301
        %310 = vadd.xlane.f32.xlu0 %v309
        %v311 = vpop.xlane.xlu0 %310
        %v312 = vadd.f32 %v302, %v303
        %313 = vadd.xlane.f32.xlu0 %v312
        %v314 = vpop.xlane.xlu0 %313
        %v315 = vadd.f32 %v304, %v305
        %316 = vadd.xlane.f32.xlu0 %v315
        %v317 = vpop.xlane.xlu0 %316
        %v318 = vld [vmem:[%s1] sm:$0xff]
        %v319 = vld [vmem:[%s1 + $0x8] sm:$0xff]
        %v320 = vld [vmem:[%s1 + $0x10] sm:$0xff]
        %v321 = vld [vmem:[%s1 + $0x18] sm:$0xff]
        %vm322 = vcmask 261120
        %v324 = vsel %vm322, %v318, 0
        %v327 = vsel %vm322, %v319, 0
        %v330 = vsel %vm322, %v320, 0
        %v333 = vsel %vm322, %v321, 0
        %335 = vmatprep.subr.mxu0 0.0
        %336 = vmatpush1.msra.mxu0 0.0
        %337 = vmatprep.subr.mxu0 0.0
        %338 = vmatpush1.msra.mxu0 0.0
        %339 = vmatprep.subr.mxu0 0.0
        %340 = vmatpush1.msra.mxu0 0.0
        %341 = vmatprep.subr.mxu0 0.0
        %342 = vmatpush1.msra.mxu0 0.0
        %343 = vmatprep.subr.mxu0 0.0
        %344 = vmatpush1.msra.mxu0 0.0
        %345 = vmatprep.subr.mxu0 0.0
        %346 = vmatpush1.msra.mxu0 0.0
        %347 = vmatprep.subr.mxu0 0.0
        %348 = vmatpush1.msra.mxu0 0.0
        %349 = vmatprep.subr.mxu0 0.0
        %350 = vmatpush1.msra.mxu0 0.0
        %351 = vmatprep.subr.mxu0 0.0
        %352 = vmatpush1.msra.mxu0 0.0
        %353 = vmatprep.subr.mxu0 0.0
        %354 = vmatpush1.msra.mxu0 0.0
        %355 = vmatprep.subr.mxu0 0.0
        %356 = vmatpush1.msra.mxu0 0.0
        %357 = vmatprep.subr.mxu0 0.0
        %358 = vmatpush1.msra.mxu0 0.0
        %359 = vmatprep.subr.mxu0 0.0
        %360 = vmatpush1.msra.mxu0 %v297
        %361 = vmatprep.subr.mxu0 0.0
        %362 = vmatpush1.msra.mxu0 %v294
        %363 = vmatprep.subr.mxu0 0.0
        %364 = vmatpush1.msra.mxu0 %v291
        %365 = vmatprep.subr.mxu0 0.0
        %366 = vmatpush1.msra.mxu0 %v288
        %367 = vmatprep.subr.mxu0 0.0
        %368 = vmatpush2.msra.mxu0 0.0
        %369 = vmatprep.subr.mxu0 0.0
        %370 = vmatpush2.msra.mxu0 0.0
        %371 = vmatprep.subr.mxu0 0.0
        %372 = vmatpush2.msra.mxu0 0.0
        %373 = vmatprep.subr.mxu0 0.0
        %374 = vmatpush2.msra.mxu0 0.0
        %375 = vmatprep.subr.mxu0 0.0
        %376 = vmatpush2.msra.mxu0 0.0
        %377 = vmatprep.subr.mxu0 0.0
        %378 = vmatpush2.msra.mxu0 0.0
        %379 = vmatprep.subr.mxu0 0.0
        %380 = vmatpush2.msra.mxu0 0.0
        %381 = vmatprep.subr.mxu0 0.0
        %382 = vmatpush2.msra.mxu0 0.0
        %383 = vmatprep.subr.mxu0 0.0
        %384 = vmatpush2.msra.mxu0 0.0
        %385 = vmatprep.subr.mxu0 0.0
        %386 = vmatpush2.msra.mxu0 0.0
        %387 = vmatprep.subr.mxu0 0.0
        %388 = vmatpush2.msra.mxu0 0.0
        %389 = vmatprep.subr.mxu0 0.0
        %390 = vmatpush2.msra.mxu0 0.0
        %391 = vmatprep.subr.mxu0 0.0
        %392 = vmatpush2.msra.mxu0 0.0
        %393 = vmatprep.subr.mxu0 0.0
        %394 = vmatpush2.msra.mxu0 0.0
        %395 = vmatprep.subr.mxu0 0.0
        %396 = vmatpush2.msra.mxu0 0.0
        %397 = vmatprep.subr.mxu0 0.0
        %398 = vmatpush2.msra.mxu0 0.0
        %399 = vmatprep.mubr.f32.mxu0 0.0
        %400 = vmatmul.mubr.f32.gmra.mxu0 %v324
        %v401 = vpop.f32.mrf.mxu0
        %v402 = vadd.f32 0.0, %v401
        %v403 = vpop.f32.mrf.mxu0
        %404 = vmatprep.mubr.f32.mxu0 0.0
        %405 = vmatmul.mubr.f32.gmra.mxu0 %v327
        %v406 = vpop.f32.mrf.mxu0
        %v407 = vadd.f32 0.0, %v406
        %v408 = vpop.f32.mrf.mxu0
        %409 = vmatprep.mubr.f32.mxu0 0.0
        %410 = vmatmul.mubr.f32.gmra.mxu0 %v330
        %v411 = vpop.f32.mrf.mxu0
        %v412 = vadd.f32 0.0, %v411
        %v413 = vpop.f32.mrf.mxu0
        %414 = vmatprep.mubr.f32.mxu0 0.0
        %415 = vmatmul.mubr.f32.gmra.mxu0 %v333
        %v416 = vpop.f32.mrf.mxu0
        %v417 = vadd.f32 0.0, %v416
        %v418 = vpop.f32.mrf.mxu0
        %419 = vdwg.mxu0
        %420 = vmatprep.subr.mxu0 0.0
        %421 = vmatpush1.msra.mxu0 0.0
        %422 = vmatprep.subr.mxu0 0.0
        %423 = vmatpush1.msra.mxu0 0.0
        %424 = vmatprep.subr.mxu0 0.0
        %425 = vmatpush1.msra.mxu0 0.0
        %426 = vmatprep.subr.mxu0 0.0
        %427 = vmatpush1.msra.mxu0 0.0
        %428 = vmatprep.subr.mxu0 0.0
        %429 = vmatpush1.msra.mxu0 0.0
        %430 = vmatprep.subr.mxu0 0.0
        %431 = vmatpush1.msra.mxu0 0.0
        %432 = vmatprep.subr.mxu0 0.0
        %433 = vmatpush1.msra.mxu0 0.0
        %434 = vmatprep.subr.mxu0 0.0
        %435 = vmatpush1.msra.mxu0 0.0
        %436 = vmatprep.subr.mxu0 0.0
        %437 = vmatpush1.msra.mxu0 0.0
        %438 = vmatprep.subr.mxu0 0.0
        %439 = vmatpush1.msra.mxu0 0.0
        %440 = vmatprep.subr.mxu0 0.0
        %441 = vmatpush1.msra.mxu0 0.0
        %442 = vmatprep.subr.mxu0 0.0
        %443 = vmatpush1.msra.mxu0 0.0
        %444 = vmatprep.subr.mxu0 0.0
        %445 = vmatpush1.msra.mxu0 %v317
        %446 = vmatprep.subr.mxu0 0.0
        %447 = vmatpush1.msra.mxu0 %v314
        %448 = vmatprep.subr.mxu0 0.0
        %449 = vmatpush1.msra.mxu0 %v311
        %450 = vmatprep.subr.mxu0 0.0
        %451 = vmatpush1.msra.mxu0 %v308
        %452 = vmatprep.subr.mxu0 0.0
        %453 = vmatpush2.msra.mxu0 0.0
        %454 = vmatprep.subr.mxu0 0.0
        %455 = vmatpush2.msra.mxu0 0.0
        %456 = vmatprep.subr.mxu0 0.0
        %457 = vmatpush2.msra.mxu0 0.0
        %458 = vmatprep.subr.mxu0 0.0
        %459 = vmatpush2.msra.mxu0 0.0
        %460 = vmatprep.subr.mxu0 0.0
        %461 = vmatpush2.msra.mxu0 0.0
        %462 = vmatprep.subr.mxu0 0.0
        %463 = vmatpush2.msra.mxu0 0.0
        %464 = vmatprep.subr.mxu0 0.0
        %465 = vmatpush2.msra.mxu0 0.0
        %466 = vmatprep.subr.mxu0 0.0
        %467 = vmatpush2.msra.mxu0 0.0
        %468 = vmatprep.subr.mxu0 0.0
        %469 = vmatpush2.msra.mxu0 0.0
        %470 = vmatprep.subr.mxu0 0.0
        %471 = vmatpush2.msra.mxu0 0.0
        %472 = vmatprep.subr.mxu0 0.0
        %473 = vmatpush2.msra.mxu0 0.0
        %474 = vmatprep.subr.mxu0 0.0
        %475 = vmatpush2.msra.mxu0 0.0
        %476 = vmatprep.subr.mxu0 0.0
        %477 = vmatpush2.msra.mxu0 0.0
        %478 = vmatprep.subr.mxu0 0.0
        %479 = vmatpush2.msra.mxu0 0.0
        %480 = vmatprep.subr.mxu0 0.0
        %481 = vmatpush2.msra.mxu0 0.0
        %482 = vmatprep.subr.mxu0 0.0
        %483 = vmatpush2.msra.mxu0 0.0
        %484 = vmatprep.mubr.f32.mxu0 0.0
        %485 = vmatmul.mubr.f32.gmra.mxu0 %v324
        %v486 = vpop.f32.mrf.mxu0
        %v487 = vadd.f32 0.0, %v486
        %v488 = vpop.f32.mrf.mxu0
        %489 = vmatprep.mubr.f32.mxu0 0.0
        %490 = vmatmul.mubr.f32.gmra.mxu0 %v327
        %v491 = vpop.f32.mrf.mxu0
        %v492 = vadd.f32 0.0, %v491
        %v493 = vpop.f32.mrf.mxu0
        %494 = vmatprep.mubr.f32.mxu0 0.0
        %495 = vmatmul.mubr.f32.gmra.mxu0 %v330
        %v496 = vpop.f32.mrf.mxu0
        %v497 = vadd.f32 0.0, %v496
        %v498 = vpop.f32.mrf.mxu0
        %499 = vmatprep.mubr.f32.mxu0 0.0
        %500 = vmatmul.mubr.f32.gmra.mxu0 %v333
        %v501 = vpop.f32.mrf.mxu0
        %v502 = vadd.f32 0.0, %v501
        %v503 = vpop.f32.mrf.mxu0
        %504 = vdwg.mxu0
        %v505 = vld [vmem:[%s2] sm:$0xff]
        %v506 = vld [vmem:[%s2 + $0x8] sm:$0xff]
        %v507 = vld [vmem:[%s2 + $0x10] sm:$0xff]
        %v508 = vld [vmem:[%s2 + $0x18] sm:$0xff]
        %v510 = vsel %vm322, %v505, 0
        %v513 = vsel %vm322, %v506, 0
        %v516 = vsel %vm322, %v507, 0
        %v519 = vsel %vm322, %v508, 0
        %521 = vmatprep.subr.mxu0 0.0
        %522 = vmatpush1.msra.mxu0 0.0
        %523 = vmatprep.subr.mxu0 0.0
        %524 = vmatpush1.msra.mxu0 0.0
        %525 = vmatprep.subr.mxu0 0.0
        %526 = vmatpush1.msra.mxu0 0.0
        %527 = vmatprep.subr.mxu0 0.0
        %528 = vmatpush1.msra.mxu0 0.0
        %529 = vmatprep.subr.mxu0 0.0
        %530 = vmatpush1.msra.mxu0 0.0
        %531 = vmatprep.subr.mxu0 0.0
        %532 = vmatpush1.msra.mxu0 0.0
        %533 = vmatprep.subr.mxu0 0.0
        %534 = vmatpush1.msra.mxu0 0.0
        %535 = vmatprep.subr.mxu0 0.0
        %536 = vmatpush1.msra.mxu0 0.0
        %537 = vmatprep.subr.mxu0 0.0
        %538 = vmatpush1.msra.mxu0 0.0
        %539 = vmatprep.subr.mxu0 0.0
        %540 = vmatpush1.msra.mxu0 0.0
        %541 = vmatprep.subr.mxu0 0.0
        %542 = vmatpush1.msra.mxu0 0.0
        %543 = vmatprep.subr.mxu0 0.0
        %544 = vmatpush1.msra.mxu0 0.0
        %545 = vmatprep.subr.mxu0 0.0
        %546 = vmatpush1.msra.mxu0 %v417
        %547 = vmatprep.subr.mxu0 0.0
        %548 = vmatpush1.msra.mxu0 %v412
        %549 = vmatprep.subr.mxu0 0.0
        %550 = vmatpush1.msra.mxu0 %v407
        %551 = vmatprep.subr.mxu0 0.0
        %552 = vmatpush1.msra.mxu0 %v402
        %553 = vmatprep.subr.mxu0 0.0
        %554 = vmatpush2.msra.mxu0 0.0
        %555 = vmatprep.subr.mxu0 0.0
        %556 = vmatpush2.msra.mxu0 0.0
        %557 = vmatprep.subr.mxu0 0.0
        %558 = vmatpush2.msra.mxu0 0.0
        %559 = vmatprep.subr.mxu0 0.0
        %560 = vmatpush2.msra.mxu0 0.0
        %561 = vmatprep.subr.mxu0 0.0
        %562 = vmatpush2.msra.mxu0 0.0
        %563 = vmatprep.subr.mxu0 0.0
        %564 = vmatpush2.msra.mxu0 0.0
        %565 = vmatprep.subr.mxu0 0.0
        %566 = vmatpush2.msra.mxu0 0.0
        %567 = vmatprep.subr.mxu0 0.0
        %568 = vmatpush2.msra.mxu0 0.0
        %569 = vmatprep.subr.mxu0 0.0
        %570 = vmatpush2.msra.mxu0 0.0
        %571 = vmatprep.subr.mxu0 0.0
        %572 = vmatpush2.msra.mxu0 0.0
        %573 = vmatprep.subr.mxu0 0.0
        %574 = vmatpush2.msra.mxu0 0.0
        %575 = vmatprep.subr.mxu0 0.0
        %576 = vmatpush2.msra.mxu0 0.0
        %577 = vmatprep.subr.mxu0 0.0
        %578 = vmatpush2.msra.mxu0 0.0
        %579 = vmatprep.subr.mxu0 0.0
        %580 = vmatpush2.msra.mxu0 0.0
        %581 = vmatprep.subr.mxu0 0.0
        %582 = vmatpush2.msra.mxu0 0.0
        %583 = vmatprep.subr.mxu0 0.0
        %584 = vmatpush2.msra.mxu0 0.0
        %585 = vmatprep.mubr.f32.mxu0 0.0
        %586 = vmatmul.mubr.f32.gmra.mxu0 %v510
        %v587 = vpop.f32.mrf.mxu0
        %v588 = vadd.f32 0.0, %v587
        %v589 = vpop.f32.mrf.mxu0
        %590 = vmatprep.mubr.f32.mxu0 0.0
        %591 = vmatmul.mubr.f32.gmra.mxu0 %v513
        %v592 = vpop.f32.mrf.mxu0
        %v593 = vadd.f32 0.0, %v592
        %v594 = vpop.f32.mrf.mxu0
        %595 = vmatprep.mubr.f32.mxu0 0.0
        %596 = vmatmul.mubr.f32.gmra.mxu0 %v516
        %v597 = vpop.f32.mrf.mxu0
        %v598 = vadd.f32 0.0, %v597
        %v599 = vpop.f32.mrf.mxu0
        %600 = vmatprep.mubr.f32.mxu0 0.0
        %601 = vmatmul.mubr.f32.gmra.mxu0 %v519
        %v602 = vpop.f32.mrf.mxu0
        %v603 = vadd.f32 0.0, %v602
        %v604 = vpop.f32.mrf.mxu0
        %605 = vdwg.mxu0
        %606 = vmatprep.subr.mxu0 0.0
        %607 = vmatpush1.msra.mxu0 0.0
        %608 = vmatprep.subr.mxu0 0.0
        %609 = vmatpush1.msra.mxu0 0.0
        %610 = vmatprep.subr.mxu0 0.0
        %611 = vmatpush1.msra.mxu0 0.0
        %612 = vmatprep.subr.mxu0 0.0
        %613 = vmatpush1.msra.mxu0 0.0
        %614 = vmatprep.subr.mxu0 0.0
        %615 = vmatpush1.msra.mxu0 0.0
        %616 = vmatprep.subr.mxu0 0.0
        %617 = vmatpush1.msra.mxu0 0.0
        %618 = vmatprep.subr.mxu0 0.0
        %619 = vmatpush1.msra.mxu0 0.0
        %620 = vmatprep.subr.mxu0 0.0
        %621 = vmatpush1.msra.mxu0 0.0
        %622 = vmatprep.subr.mxu0 0.0
        %623 = vmatpush1.msra.mxu0 0.0
        %624 = vmatprep.subr.mxu0 0.0
        %625 = vmatpush1.msra.mxu0 0.0
        %626 = vmatprep.subr.mxu0 0.0
        %627 = vmatpush1.msra.mxu0 0.0
        %628 = vmatprep.subr.mxu0 0.0
        %629 = vmatpush1.msra.mxu0 0.0
        %630 = vmatprep.subr.mxu0 0.0
        %631 = vmatpush1.msra.mxu0 %v502
        %632 = vmatprep.subr.mxu0 0.0
        %633 = vmatpush1.msra.mxu0 %v497
        %634 = vmatprep.subr.mxu0 0.0
        %635 = vmatpush1.msra.mxu0 %v492
        %636 = vmatprep.subr.mxu0 0.0
        %637 = vmatpush1.msra.mxu0 %v487
        %638 = vmatprep.subr.mxu0 0.0
        %639 = vmatpush2.msra.mxu0 0.0
        %640 = vmatprep.subr.mxu0 0.0
        %641 = vmatpush2.msra.mxu0 0.0
        %642 = vmatprep.subr.mxu0 0.0
        %643 = vmatpush2.msra.mxu0 0.0
        %644 = vmatprep.subr.mxu0 0.0
        %645 = vmatpush2.msra.mxu0 0.0
        %646 = vmatprep.subr.mxu0 0.0
        %647 = vmatpush2.msra.mxu0 0.0
        %648 = vmatprep.subr.mxu0 0.0
        %649 = vmatpush2.msra.mxu0 0.0
        %650 = vmatprep.subr.mxu0 0.0
        %651 = vmatpush2.msra.mxu0 0.0
        %652 = vmatprep.subr.mxu0 0.0
        %653 = vmatpush2.msra.mxu0 0.0
        %654 = vmatprep.subr.mxu0 0.0
        %655 = vmatpush2.msra.mxu0 0.0
        %656 = vmatprep.subr.mxu0 0.0
        %657 = vmatpush2.msra.mxu0 0.0
        %658 = vmatprep.subr.mxu0 0.0
        %659 = vmatpush2.msra.mxu0 0.0
        %660 = vmatprep.subr.mxu0 0.0
        %661 = vmatpush2.msra.mxu0 0.0
        %662 = vmatprep.subr.mxu0 0.0
        %663 = vmatpush2.msra.mxu0 0.0
        %664 = vmatprep.subr.mxu0 0.0
        %665 = vmatpush2.msra.mxu0 0.0
        %666 = vmatprep.subr.mxu0 0.0
        %667 = vmatpush2.msra.mxu0 0.0
        %668 = vmatprep.subr.mxu0 0.0
        %669 = vmatpush2.msra.mxu0 0.0
        %670 = vmatprep.mubr.f32.mxu0 0.0
        %671 = vmatmul.mubr.f32.gmra.mxu0 %v510
        %v672 = vpop.f32.mrf.mxu0
        %v673 = vadd.f32 0.0, %v672
        %v674 = vpop.f32.mrf.mxu0
        %675 = vmatprep.mubr.f32.mxu0 0.0
        %676 = vmatmul.mubr.f32.gmra.mxu0 %v513
        %v677 = vpop.f32.mrf.mxu0
        %v678 = vadd.f32 0.0, %v677
        %v679 = vpop.f32.mrf.mxu0
        %680 = vmatprep.mubr.f32.mxu0 0.0
        %681 = vmatmul.mubr.f32.gmra.mxu0 %v516
        %v682 = vpop.f32.mrf.mxu0
        %v683 = vadd.f32 0.0, %v682
        %v684 = vpop.f32.mrf.mxu0
        %685 = vmatprep.mubr.f32.mxu0 0.0
        %686 = vmatmul.mubr.f32.gmra.mxu0 %v519
        %v687 = vpop.f32.mrf.mxu0
        %v688 = vadd.f32 0.0, %v687
        %v689 = vpop.f32.mrf.mxu0
        %690 = vdwg.mxu0
        %v691 = vmul.f32 %v588, %v588
        %v692 = vmul.f32 %v593, %v593
        %v693 = vmul.f32 %v598, %v598
        %v694 = vmul.f32 %v603, %v603
        %v695 = vsub.f32 %v673, %v691
        %v696 = vsub.f32 %v678, %v692
        %v697 = vsub.f32 %v683, %v693
        %v698 = vsub.f32 %v688, %v694
        %v699 = vmax.f32 %v695, 0.0
        %v700 = vmax.f32 %v696, 0.0
        %v701 = vmax.f32 %v697, 0.0
        %v702 = vmax.f32 %v698, 0.0
        %v703 = vadd.f32 %v699, 1e-05
        %v704 = vadd.f32 %v700, 1e-05
        %v705 = vadd.f32 %v701, 1e-05
        %v706 = vadd.f32 %v702, 1e-05
        %v707 = vrsqrt.pop %v703
        %v708 = vrsqrt.pop %v704
        %v709 = vrsqrt.pop %v705
        %v710 = vrsqrt.pop %v706
        %712 = vset.pattern.permute.xlu0 0
        %713 = vperm.xlu0 %712, %v588
        %v714 = vpop.permute.xlu0 %713
        %717 = vset.pattern.permute.xlu0 0
        %718 = vperm.xlu0 %717, %v593
        %v719 = vpop.permute.xlu0 %718
        %722 = vset.pattern.permute.xlu0 0
        %723 = vperm.xlu0 %722, %v598
        %v724 = vpop.permute.xlu0 %723
        %727 = vset.pattern.permute.xlu0 0
        %728 = vperm.xlu0 %727, %v603
        %v729 = vpop.permute.xlu0 %728
        %v731 = vsub.f32 %v278, %v714
        %v732 = vsub.f32 %v279, %v714
        %v733 = vsub.f32 %v280, %v719
        %v734 = vsub.f32 %v281, %v719
        %v735 = vsub.f32 %v282, %v724
        %v736 = vsub.f32 %v283, %v724
        %v737 = vsub.f32 %v284, %v729
        %v738 = vsub.f32 %v285, %v729
        %740 = vset.pattern.permute.xlu0 0
        %741 = vperm.xlu0 %740, %v707
        %v742 = vpop.permute.xlu0 %741
        %745 = vset.pattern.permute.xlu0 0
        %746 = vperm.xlu0 %745, %v708
        %v747 = vpop.permute.xlu0 %746
        %750 = vset.pattern.permute.xlu0 0
        %751 = vperm.xlu0 %750, %v709
        %v752 = vpop.permute.xlu0 %751
        %755 = vset.pattern.permute.xlu0 0
        %756 = vperm.xlu0 %755, %v710
        %v757 = vpop.permute.xlu0 %756
        %v759 = vmul.f32 %v731, %v742
        %v760 = vmul.f32 %v732, %v742
        %v761 = vmul.f32 %v733, %v747
        %v762 = vmul.f32 %v734, %v747
        %v763 = vmul.f32 %v735, %v752
        %v764 = vmul.f32 %v736, %v752
        %v765 = vmul.f32 %v737, %v757
        %v766 = vmul.f32 %v738, %v757
        %v767 = vld [vmem:[%s3] sm:$0xf]
        %v768 = vld [vmem:[%s3 + $0x4] sm:$0xf]
        %v769 = vld [vmem:[%s3 + $0x8] sm:$0xf]
        %v770 = vld [vmem:[%s3 + $0xc] sm:$0xf]
        %v771 = vld [vmem:[%s3 + $0x10] sm:$0xf]
        %v772 = vld [vmem:[%s3 + $0x14] sm:$0xf]
        %v773 = vld [vmem:[%s3 + $0x18] sm:$0xf]
        %v774 = vld [vmem:[%s3 + $0x1c] sm:$0xf]
        %v775 = vld [vmem:[%s3 + $0x20] sm:$0xf]
        %v776 = vld [vmem:[%s3 + $0x24] sm:$0xf]
        %v777 = vld [vmem:[%s3 + $0x28] sm:$0xf]
        %v778 = vld [vmem:[%s3 + $0x2c] sm:$0xf]
        %v779 = vld [vmem:[%s3 + $0x30] sm:$0xf]
        %v780 = vld [vmem:[%s3 + $0x34] sm:$0xf]
        %v781 = vld [vmem:[%s3 + $0x38] sm:$0xf]
        %v782 = vld [vmem:[%s3 + $0x3c] sm:$0xf]
        %v783 = vpack.c.bf16 %v761, %v759
        %v784 = vpack.c.bf16 %v762, %v760
        %v785 = vpack.c.bf16 %v765, %v763
        %v786 = vpack.c.bf16 %v766, %v764
        %v787 = vld [vmem:[%s4] sm:$0xff]
        %v788 = vld [vmem:[%s4 + $0x8] sm:$0xff]
        %v789 = vld [vmem:[%s4 + $0x10] sm:$0xff]
        %v790 = vld [vmem:[%s4 + $0x18] sm:$0xff]
        %v791 = vld [vmem:[%s4 + $0x20] sm:$0xff]
        %v792 = vld [vmem:[%s4 + $0x28] sm:$0xff]
        %v793 = vld [vmem:[%s4 + $0x30] sm:$0xff]
        %v794 = vld [vmem:[%s4 + $0x38] sm:$0xff]
        %v795 = vld [vmem:[%s4 + $0x40] sm:$0xff]
        %v796 = vld [vmem:[%s4 + $0x48] sm:$0xff]
        %v797 = vld [vmem:[%s4 + $0x50] sm:$0xff]
        %v798 = vld [vmem:[%s4 + $0x58] sm:$0xff]
        %v799 = vld [vmem:[%s4 + $0x60] sm:$0xff]
        %v800 = vld [vmem:[%s4 + $0x68] sm:$0xff]
        %v801 = vld [vmem:[%s4 + $0x70] sm:$0xff]
        %v802 = vld [vmem:[%s4 + $0x78] sm:$0xff]
        %804 = vset.pattern.permute.xlu0 0
        %805 = vperm.xlu0 %804, %v787
        %v806 = vpop.permute.xlu0 %805
        %809 = vset.pattern.permute.xlu0 0
        %810 = vperm.xlu0 %809, %v788
        %v811 = vpop.permute.xlu0 %810
        %814 = vset.pattern.permute.xlu0 0
        %815 = vperm.xlu0 %814, %v789
        %v816 = vpop.permute.xlu0 %815
        %819 = vset.pattern.permute.xlu0 0
        %820 = vperm.xlu0 %819, %v790
        %v821 = vpop.permute.xlu0 %820
        %824 = vset.pattern.permute.xlu0 0
        %825 = vperm.xlu0 %824, %v791
        %v826 = vpop.permute.xlu0 %825
        %829 = vset.pattern.permute.xlu0 0
        %830 = vperm.xlu0 %829, %v792
        %v831 = vpop.permute.xlu0 %830
        %834 = vset.pattern.permute.xlu0 0
        %835 = vperm.xlu0 %834, %v793
        %v836 = vpop.permute.xlu0 %835
        %839 = vset.pattern.permute.xlu0 0
        %840 = vperm.xlu0 %839, %v794
        %v841 = vpop.permute.xlu0 %840
        %844 = vset.pattern.permute.xlu0 0
        %845 = vperm.xlu0 %844, %v795
        %v846 = vpop.permute.xlu0 %845
        %849 = vset.pattern.permute.xlu0 0
        %850 = vperm.xlu0 %849, %v796
        %v851 = vpop.permute.xlu0 %850
        %854 = vset.pattern.permute.xlu0 0
        %855 = vperm.xlu0 %854, %v797
        %v856 = vpop.permute.xlu0 %855
        %859 = vset.pattern.permute.xlu0 0
        %860 = vperm.xlu0 %859, %v798
        %v861 = vpop.permute.xlu0 %860
        %864 = vset.pattern.permute.xlu0 0
        %865 = vperm.xlu0 %864, %v799
        %v866 = vpop.permute.xlu0 %865
        %869 = vset.pattern.permute.xlu0 0
        %870 = vperm.xlu0 %869, %v800
        %v871 = vpop.permute.xlu0 %870
        %874 = vset.pattern.permute.xlu0 0
        %875 = vperm.xlu0 %874, %v801
        %v876 = vpop.permute.xlu0 %875
        %879 = vset.pattern.permute.xlu0 0
        %880 = vperm.xlu0 %879, %v802
        %v881 = vpop.permute.xlu0 %880
        %v899 = vunpack.c.l.b16 %v767
        %v900 = vunpack.c.l.b16 %v768
        %v901 = vunpack.c.l.b16 %v769
        %v902 = vunpack.c.l.b16 %v770
        %v903 = vunpack.c.l.b16 %v771
        %v904 = vunpack.c.l.b16 %v772
        %v905 = vunpack.c.l.b16 %v773
        %v906 = vunpack.c.l.b16 %v774
        %v907 = vunpack.c.l.b16 %v775
        %v908 = vunpack.c.l.b16 %v776
        %v909 = vunpack.c.l.b16 %v777
        %v910 = vunpack.c.l.b16 %v778
        %v911 = vunpack.c.l.b16 %v779
        %v912 = vunpack.c.l.b16 %v780
        %v913 = vunpack.c.l.b16 %v781
        %v914 = vunpack.c.l.b16 %v782
        %v915 = vpack.c.b16 %v900, %v899
        %v916 = vpack.c.b16 %v902, %v901
        %v917 = vpack.c.b16 %v904, %v903
        %v918 = vpack.c.b16 %v906, %v905
        %v919 = vpack.c.b16 %v908, %v907
        %v920 = vpack.c.b16 %v910, %v909
        %v921 = vpack.c.b16 %v912, %v911
        %v922 = vpack.c.b16 %v914, %v913
        %v924 = vsel %vm322, %v915, 0
        %v927 = vsel %vm322, %v916, 0
        %v930 = vsel %vm322, %v917, 0
        %v933 = vsel %vm322, %v918, 0
        %v936 = vsel %vm322, %v919, 0
        %v939 = vsel %vm322, %v920, 0
        %v942 = vsel %vm322, %v921, 0
        %v945 = vsel %vm322, %v922, 0
        %947 = vmatprep.subr.bf16.mxu0 0
        %948 = vmatpush1.bf16.msra.mxu0 0
        %949 = vmatprep.subr.bf16.mxu0 0
        %950 = vmatpush1.bf16.msra.mxu0 0
        %951 = vmatprep.subr.bf16.mxu0 0
        %952 = vmatpush1.bf16.msra.mxu0 0
        %953 = vmatprep.subr.bf16.mxu0 0
        %954 = vmatpush1.bf16.msra.mxu0 0
        %955 = vmatprep.subr.bf16.mxu0 0
        %956 = vmatpush1.bf16.msra.mxu0 0
        %957 = vmatprep.subr.bf16.mxu0 0
        %958 = vmatpush1.bf16.msra.mxu0 0
        %959 = vmatprep.subr.bf16.mxu0 %v786
        %960 = vmatpush1.bf16.msra.mxu0 %v785
        %961 = vmatprep.subr.bf16.mxu0 %v784
        %962 = vmatpush1.bf16.msra.mxu0 %v783
        %963 = vmatprep.subr.bf16.mxu0 0
        %964 = vmatpush2.bf16.msra.mxu0 0
        %965 = vmatprep.subr.bf16.mxu0 0
        %966 = vmatpush2.bf16.msra.mxu0 0
        %967 = vmatprep.subr.bf16.mxu0 0
        %968 = vmatpush2.bf16.msra.mxu0 0
        %969 = vmatprep.subr.bf16.mxu0 0
        %970 = vmatpush2.bf16.msra.mxu0 0
        %971 = vmatprep.subr.bf16.mxu0 0
        %972 = vmatpush2.bf16.msra.mxu0 0
        %973 = vmatprep.subr.bf16.mxu0 0
        %974 = vmatpush2.bf16.msra.mxu0 0
        %975 = vmatprep.subr.bf16.mxu0 0
        %976 = vmatpush2.bf16.msra.mxu0 0
        %977 = vmatprep.subr.bf16.mxu0 0
        %978 = vmatpush2.bf16.msra.mxu0 0
        %979 = vmatprep.mubr.bf16.mxu0 0
        %980 = vmatmul.mubr.bf16.gmra.mxu0 %v924
        %v981 = vpop.f32.mrf.mxu0
        %v982 = vadd.f32 %v806, %v981
        %v983 = vpop.f32.mrf.mxu0
        %v984 = vadd.f32 %v806, %v983
        %v985 = vpop.f32.mrf.mxu0
        %v986 = vadd.f32 %v811, %v985
        %v987 = vpop.f32.mrf.mxu0
        %v988 = vadd.f32 %v811, %v987
        %989 = vmatprep.mubr.bf16.mxu0 0
        %990 = vmatmul.mubr.bf16.gmra.mxu0 %v927
        %v991 = vpop.f32.mrf.mxu0
        %v992 = vadd.f32 %v816, %v991
        %v993 = vpop.f32.mrf.mxu0
        %v994 = vadd.f32 %v816, %v993
        %v995 = vpop.f32.mrf.mxu0
        %v996 = vadd.f32 %v821, %v995
        %v997 = vpop.f32.mrf.mxu0
        %v998 = vadd.f32 %v821, %v997
        %999 = vmatprep.mubr.bf16.mxu0 0
        %1000 = vmatmul.mubr.bf16.gmra.mxu0 %v930
        %v1001 = vpop.f32.mrf.mxu0
        %v1002 = vadd.f32 %v826, %v1001
        %v1003 = vpop.f32.mrf.mxu0
        %v1004 = vadd.f32 %v826, %v1003
        %v1005 = vpop.f32.mrf.mxu0
        %v1006 = vadd.f32 %v831, %v1005
        %v1007 = vpop.f32.mrf.mxu0
        %v1008 = vadd.f32 %v831, %v1007
        %1009 = vmatprep.mubr.bf16.mxu0 0
        %1010 = vmatmul.mubr.bf16.gmra.mxu0 %v933
        %v1011 = vpop.f32.mrf.mxu0
        %v1012 = vadd.f32 %v836, %v1011
        %v1013 = vpop.f32.mrf.mxu0
        %v1014 = vadd.f32 %v836, %v1013
        %v1015 = vpop.f32.mrf.mxu0
        %v1016 = vadd.f32 %v841, %v1015
        %v1017 = vpop.f32.mrf.mxu0
        %v1018 = vadd.f32 %v841, %v1017
        %1019 = vmatprep.mubr.bf16.mxu0 0
        %1020 = vmatmul.mubr.bf16.gmra.mxu0 %v936
        %v1021 = vpop.f32.mrf.mxu0
        %v1022 = vadd.f32 %v846, %v1021
        %v1023 = vpop.f32.mrf.mxu0
        %v1024 = vadd.f32 %v846, %v1023
        %v1025 = vpop.f32.mrf.mxu0
        %v1026 = vadd.f32 %v851, %v1025
        %v1027 = vpop.f32.mrf.mxu0
        %v1028 = vadd.f32 %v851, %v1027
        %1029 = vmatprep.mubr.bf16.mxu0 0
        %1030 = vmatmul.mubr.bf16.gmra.mxu0 %v939
        %v1031 = vpop.f32.mrf.mxu0
        %v1032 = vadd.f32 %v856, %v1031
        %v1033 = vpop.f32.mrf.mxu0
        %v1034 = vadd.f32 %v856, %v1033
        %v1035 = vpop.f32.mrf.mxu0
        %v1036 = vadd.f32 %v861, %v1035
        %v1037 = vpop.f32.mrf.mxu0
        %v1038 = vadd.f32 %v861, %v1037
        %1039 = vmatprep.mubr.bf16.mxu0 0
        %1040 = vmatmul.mubr.bf16.gmra.mxu0 %v942
        %v1041 = vpop.f32.mrf.mxu0
        %v1042 = vadd.f32 %v866, %v1041
        %v1043 = vpop.f32.mrf.mxu0
        %v1044 = vadd.f32 %v866, %v1043
        %v1045 = vpop.f32.mrf.mxu0
        %v1046 = vadd.f32 %v871, %v1045
        %v1047 = vpop.f32.mrf.mxu0
        %v1048 = vadd.f32 %v871, %v1047
        %1049 = vmatprep.mubr.bf16.mxu0 0
        %1050 = vmatmul.mubr.bf16.gmra.mxu0 %v945
        %v1051 = vpop.f32.mrf.mxu0
        %v1052 = vadd.f32 %v876, %v1051
        %v1053 = vpop.f32.mrf.mxu0
        %v1054 = vadd.f32 %v876, %v1053
        %v1055 = vpop.f32.mrf.mxu0
        %v1056 = vadd.f32 %v881, %v1055
        %v1057 = vpop.f32.mrf.mxu0
        %v1058 = vadd.f32 %v881, %v1057
        %1059 = vdwg.mxu0
        %v1060 = vmul.f32 %v982, 0.5
        %v1061 = vmul.f32 %v984, 0.5
        %v1062 = vmul.f32 %v986, 0.5
        %v1063 = vmul.f32 %v988, 0.5
        %v1064 = vmul.f32 %v992, 0.5
        %v1065 = vmul.f32 %v994, 0.5
        %v1066 = vmul.f32 %v996, 0.5
        %v1067 = vmul.f32 %v998, 0.5
        %v1068 = vmul.f32 %v1002, 0.5
        %v1069 = vmul.f32 %v1004, 0.5
        %v1070 = vmul.f32 %v1006, 0.5
        %v1071 = vmul.f32 %v1008, 0.5
        %v1072 = vmul.f32 %v1012, 0.5
        %v1073 = vmul.f32 %v1014, 0.5
        %v1074 = vmul.f32 %v1016, 0.5
        %v1075 = vmul.f32 %v1018, 0.5
        %v1076 = vmul.f32 %v1022, 0.5
        %v1077 = vmul.f32 %v1024, 0.5
        %v1078 = vmul.f32 %v1026, 0.5
        %v1079 = vmul.f32 %v1028, 0.5
        %v1080 = vmul.f32 %v1032, 0.5
        %v1081 = vmul.f32 %v1034, 0.5
        %v1082 = vmul.f32 %v1036, 0.5
        %v1083 = vmul.f32 %v1038, 0.5
        %v1084 = vmul.f32 %v1042, 0.5
        %v1085 = vmul.f32 %v1044, 0.5
        %v1086 = vmul.f32 %v1046, 0.5
        %v1087 = vmul.f32 %v1048, 0.5
        %v1088 = vmul.f32 %v1052, 0.5
        %v1089 = vmul.f32 %v1054, 0.5
        %v1090 = vmul.f32 %v1056, 0.5
        %v1091 = vmul.f32 %v1058, 0.5
        %v1092 = vmul.f32 %v982, 0.044715
        %v1093 = vmul.f32 %v984, 0.044715
        %v1094 = vmul.f32 %v986, 0.044715
        %v1095 = vmul.f32 %v988, 0.044715
        %v1096 = vmul.f32 %v992, 0.044715
        %v1097 = vmul.f32 %v994, 0.044715
        %v1098 = vmul.f32 %v996, 0.044715
        %v1099 = vmul.f32 %v998, 0.044715
        %v1100 = vmul.f32 %v1002, 0.044715
        %v1101 = vmul.f32 %v1004, 0.044715
        %v1102 = vmul.f32 %v1006, 0.044715
        %v1103 = vmul.f32 %v1008, 0.044715
        %v1104 = vmul.f32 %v1012, 0.044715
        %v1105 = vmul.f32 %v1014, 0.044715
        %v1106 = vmul.f32 %v1016, 0.044715
        %v1107 = vmul.f32 %v1018, 0.044715
        %v1108 = vmul.f32 %v1022, 0.044715
        %v1109 = vmul.f32 %v1024, 0.044715
        %v1110 = vmul.f32 %v1026, 0.044715
        %v1111 = vmul.f32 %v1028, 0.044715
        %v1112 = vmul.f32 %v1032, 0.044715
        %v1113 = vmul.f32 %v1034, 0.044715
        %v1114 = vmul.f32 %v1036, 0.044715
        %v1115 = vmul.f32 %v1038, 0.044715
        %v1116 = vmul.f32 %v1042, 0.044715
        %v1117 = vmul.f32 %v1044, 0.044715
        %v1118 = vmul.f32 %v1046, 0.044715
        %v1119 = vmul.f32 %v1048, 0.044715
        %v1120 = vmul.f32 %v1052, 0.044715
        %v1121 = vmul.f32 %v1054, 0.044715
        %v1122 = vmul.f32 %v1056, 0.044715
        %v1123 = vmul.f32 %v1058, 0.044715
        %v1124 = vmul.f32 %v1092, %v982
        %v1125 = vmul.f32 %v1093, %v984
        %v1126 = vmul.f32 %v1094, %v986
        %v1127 = vmul.f32 %v1095, %v988
        %v1128 = vmul.f32 %v1096, %v992
        %v1129 = vmul.f32 %v1097, %v994
        %v1130 = vmul.f32 %v1098, %v996
        %v1131 = vmul.f32 %v1099, %v998
        %v1132 = vmul.f32 %v1100, %v1002
        %v1133 = vmul.f32 %v1101, %v1004
        %v1134 = vmul.f32 %v1102, %v1006
        %v1135 = vmul.f32 %v1103, %v1008
        %v1136 = vmul.f32 %v1104, %v1012
        %v1137 = vmul.f32 %v1105, %v1014
        %v1138 = vmul.f32 %v1106, %v1016
        %v1139 = vmul.f32 %v1107, %v1018
        %v1140 = vmul.f32 %v1108, %v1022
        %v1141 = vmul.f32 %v1109, %v1024
        %v1142 = vmul.f32 %v1110, %v1026
        %v1143 = vmul.f32 %v1111, %v1028
        %v1144 = vmul.f32 %v1112, %v1032
        %v1145 = vmul.f32 %v1113, %v1034
        %v1146 = vmul.f32 %v1114, %v1036
        %v1147 = vmul.f32 %v1115, %v1038
        %v1148 = vmul.f32 %v1116, %v1042
        %v1149 = vmul.f32 %v1117, %v1044
        %v1150 = vmul.f32 %v1118, %v1046
        %v1151 = vmul.f32 %v1119, %v1048
        %v1152 = vmul.f32 %v1120, %v1052
        %v1153 = vmul.f32 %v1121, %v1054
        %v1154 = vmul.f32 %v1122, %v1056
        %v1155 = vmul.f32 %v1123, %v1058
        %v1156 = vmul.f32 %v1124, %v982
        %v1157 = vmul.f32 %v1125, %v984
        %v1158 = vmul.f32 %v1126, %v986
        %v1159 = vmul.f32 %v1127, %v988
        %v1160 = vmul.f32 %v1128, %v992
        %v1161 = vmul.f32 %v1129, %v994
        %v1162 = vmul.f32 %v1130, %v996
        %v1163 = vmul.f32 %v1131, %v998
        %v1164 = vmul.f32 %v1132, %v1002
        %v1165 = vmul.f32 %v1133, %v1004
        %v1166 = vmul.f32 %v1134, %v1006
        %v1167 = vmul.f32 %v1135, %v1008
        %v1168 = vmul.f32 %v1136, %v1012
        %v1169 = vmul.f32 %v1137, %v1014
        %v1170 = vmul.f32 %v1138, %v1016
        %v1171 = vmul.f32 %v1139, %v1018
        %v1172 = vmul.f32 %v1140, %v1022
        %v1173 = vmul.f32 %v1141, %v1024
        %v1174 = vmul.f32 %v1142, %v1026
        %v1175 = vmul.f32 %v1143, %v1028
        %v1176 = vmul.f32 %v1144, %v1032
        %v1177 = vmul.f32 %v1145, %v1034
        %v1178 = vmul.f32 %v1146, %v1036
        %v1179 = vmul.f32 %v1147, %v1038
        %v1180 = vmul.f32 %v1148, %v1042
        %v1181 = vmul.f32 %v1149, %v1044
        %v1182 = vmul.f32 %v1150, %v1046
        %v1183 = vmul.f32 %v1151, %v1048
        %v1184 = vmul.f32 %v1152, %v1052
        %v1185 = vmul.f32 %v1153, %v1054
        %v1186 = vmul.f32 %v1154, %v1056
        %v1187 = vmul.f32 %v1155, %v1058
        %v1188 = vadd.f32 %v982, %v1156
        %v1189 = vadd.f32 %v984, %v1157
        %v1190 = vadd.f32 %v986, %v1158
        %v1191 = vadd.f32 %v988, %v1159
        %v1192 = vadd.f32 %v992, %v1160
        %v1193 = vadd.f32 %v994, %v1161
        %v1194 = vadd.f32 %v996, %v1162
        %v1195 = vadd.f32 %v998, %v1163
        %v1196 = vadd.f32 %v1002, %v1164
        %v1197 = vadd.f32 %v1004, %v1165
        %v1198 = vadd.f32 %v1006, %v1166
        %v1199 = vadd.f32 %v1008, %v1167
        %v1200 = vadd.f32 %v1012, %v1168
        %v1201 = vadd.f32 %v1014, %v1169
        %v1202 = vadd.f32 %v1016, %v1170
        %v1203 = vadd.f32 %v1018, %v1171
        %v1204 = vadd.f32 %v1022, %v1172
        %v1205 = vadd.f32 %v1024, %v1173
        %v1206 = vadd.f32 %v1026, %v1174
        %v1207 = vadd.f32 %v1028, %v1175
        %v1208 = vadd.f32 %v1032, %v1176
        %v1209 = vadd.f32 %v1034, %v1177
        %v1210 = vadd.f32 %v1036, %v1178
        %v1211 = vadd.f32 %v1038, %v1179
        %v1212 = vadd.f32 %v1042, %v1180
        %v1213 = vadd.f32 %v1044, %v1181
        %v1214 = vadd.f32 %v1046, %v1182
        %v1215 = vadd.f32 %v1048, %v1183
        %v1216 = vadd.f32 %v1052, %v1184
        %v1217 = vadd.f32 %v1054, %v1185
        %v1218 = vadd.f32 %v1056, %v1186
        %v1219 = vadd.f32 %v1058, %v1187
        %v1220 = vmul.f32 %v1188, 0.7978846
        %v1221 = vmul.f32 %v1189, 0.7978846
        %v1222 = vmul.f32 %v1190, 0.7978846
        %v1223 = vmul.f32 %v1191, 0.7978846
        %v1224 = vmul.f32 %v1192, 0.7978846
        %v1225 = vmul.f32 %v1193, 0.7978846
        %v1226 = vmul.f32 %v1194, 0.7978846
        %v1227 = vmul.f32 %v1195, 0.7978846
        %v1228 = vmul.f32 %v1196, 0.7978846
        %v1229 = vmul.f32 %v1197, 0.7978846
        %v1230 = vmul.f32 %v1198, 0.7978846
        %v1231 = vmul.f32 %v1199, 0.7978846
        %v1232 = vmul.f32 %v1200, 0.7978846
        %v1233 = vmul.f32 %v1201, 0.7978846
        %v1234 = vmul.f32 %v1202, 0.7978846
        %v1235 = vmul.f32 %v1203, 0.7978846
        %v1236 = vmul.f32 %v1204, 0.7978846
        %v1237 = vmul.f32 %v1205, 0.7978846
        %v1238 = vmul.f32 %v1206, 0.7978846
        %v1239 = vmul.f32 %v1207, 0.7978846
        %v1240 = vmul.f32 %v1208, 0.7978846
        %v1241 = vmul.f32 %v1209, 0.7978846
        %v1242 = vmul.f32 %v1210, 0.7978846
        %v1243 = vmul.f32 %v1211, 0.7978846
        %v1244 = vmul.f32 %v1212, 0.7978846
        %v1245 = vmul.f32 %v1213, 0.7978846
        %v1246 = vmul.f32 %v1214, 0.7978846
        %v1247 = vmul.f32 %v1215, 0.7978846
        %v1248 = vmul.f32 %v1216, 0.7978846
        %v1249 = vmul.f32 %v1217, 0.7978846
        %v1250 = vmul.f32 %v1218, 0.7978846
        %v1251 = vmul.f32 %v1219, 0.7978846
        %v1252 = vtanh.pop %v1220
        %v1253 = vtanh.pop %v1221
        %v1254 = vtanh.pop %v1222
        %v1255 = vtanh.pop %v1223
        %v1256 = vtanh.pop %v1224
        %v1257 = vtanh.pop %v1225
        %v1258 = vtanh.pop %v1226
        %v1259 = vtanh.pop %v1227
        %v1260 = vtanh.pop %v1228
        %v1261 = vtanh.pop %v1229
        %v1262 = vtanh.pop %v1230
        %v1263 = vtanh.pop %v1231
        %v1264 = vtanh.pop %v1232
        %v1265 = vtanh.pop %v1233
        %v1266 = vtanh.pop %v1234
        %v1267 = vtanh.pop %v1235
        %v1268 = vtanh.pop %v1236
        %v1269 = vtanh.pop %v1237
        %v1270 = vtanh.pop %v1238
        %v1271 = vtanh.pop %v1239
        %v1272 = vtanh.pop %v1240
        %v1273 = vtanh.pop %v1241
        %v1274 = vtanh.pop %v1242
        %v1275 = vtanh.pop %v1243
        %v1276 = vtanh.pop %v1244
        %v1277 = vtanh.pop %v1245
        %v1278 = vtanh.pop %v1246
        %v1279 = vtanh.pop %v1247
        %v1280 = vtanh.pop %v1248
        %v1281 = vtanh.pop %v1249
        %v1282 = vtanh.pop %v1250
        %v1283 = vtanh.pop %v1251
        %v1284 = vadd.f32 %v1252, 1.0
        %v1285 = vadd.f32 %v1253, 1.0
        %v1286 = vadd.f32 %v1254, 1.0
        %v1287 = vadd.f32 %v1255, 1.0
        %v1288 = vadd.f32 %v1256, 1.0
        %v1289 = vadd.f32 %v1257, 1.0
        %v1290 = vadd.f32 %v1258, 1.0
        %v1291 = vadd.f32 %v1259, 1.0
        %v1292 = vadd.f32 %v1260, 1.0
        %v1293 = vadd.f32 %v1261, 1.0
        %v1294 = vadd.f32 %v1262, 1.0
        %v1295 = vadd.f32 %v1263, 1.0
        %v1296 = vadd.f32 %v1264, 1.0
        %v1297 = vadd.f32 %v1265, 1.0
        %v1298 = vadd.f32 %v1266, 1.0
        %v1299 = vadd.f32 %v1267, 1.0
        %v1300 = vadd.f32 %v1268, 1.0
        %v1301 = vadd.f32 %v1269, 1.0
        %v1302 = vadd.f32 %v1270, 1.0
        %v1303 = vadd.f32 %v1271, 1.0
        %v1304 = vadd.f32 %v1272, 1.0
        %v1305 = vadd.f32 %v1273, 1.0
        %v1306 = vadd.f32 %v1274, 1.0
        %v1307 = vadd.f32 %v1275, 1.0
        %v1308 = vadd.f32 %v1276, 1.0
        %v1309 = vadd.f32 %v1277, 1.0
        %v1310 = vadd.f32 %v1278, 1.0
        %v1311 = vadd.f32 %v1279, 1.0
        %v1312 = vadd.f32 %v1280, 1.0
        %v1313 = vadd.f32 %v1281, 1.0
        %v1314 = vadd.f32 %v1282, 1.0
        %v1315 = vadd.f32 %v1283, 1.0
        %v1316 = vmul.f32 %v1060, %v1284
        %v1317 = vmul.f32 %v1061, %v1285
        %v1318 = vmul.f32 %v1062, %v1286
        %v1319 = vmul.f32 %v1063, %v1287
        %v1320 = vmul.f32 %v1064, %v1288
        %v1321 = vmul.f32 %v1065, %v1289
        %v1322 = vmul.f32 %v1066, %v1290
        %v1323 = vmul.f32 %v1067, %v1291
        %v1324 = vmul.f32 %v1068, %v1292
        %v1325 = vmul.f32 %v1069, %v1293
        %v1326 = vmul.f32 %v1070, %v1294
        %v1327 = vmul.f32 %v1071, %v1295
        %v1328 = vmul.f32 %v1072, %v1296
        %v1329 = vmul.f32 %v1073, %v1297
        %v1330 = vmul.f32 %v1074, %v1298
        %v1331 = vmul.f32 %v1075, %v1299
        %v1332 = vmul.f32 %v1076, %v1300
        %v1333 = vmul.f32 %v1077, %v1301
        %v1334 = vmul.f32 %v1078, %v1302
        %v1335 = vmul.f32 %v1079, %v1303
        %v1336 = vmul.f32 %v1080, %v1304
        %v1337 = vmul.f32 %v1081, %v1305
        %v1338 = vmul.f32 %v1082, %v1306
        %v1339 = vmul.f32 %v1083, %v1307
        %v1340 = vmul.f32 %v1084, %v1308
        %v1341 = vmul.f32 %v1085, %v1309
        %v1342 = vmul.f32 %v1086, %v1310
        %v1343 = vmul.f32 %v1087, %v1311
        %v1344 = vmul.f32 %v1088, %v1312
        %v1345 = vmul.f32 %v1089, %v1313
        %v1346 = vmul.f32 %v1090, %v1314
        %v1347 = vmul.f32 %v1091, %v1315
        %v1348 = vld [vmem:[%s5] sm:$0xf]
        %v1349 = vld [vmem:[%s5 + $0x4] sm:$0xf]
        %v1350 = vld [vmem:[%s5 + $0x8] sm:$0xf]
        %v1351 = vld [vmem:[%s5 + $0xc] sm:$0xf]
        %v1352 = vpack.c.bf16 %v1318, %v1316
        %v1353 = vpack.c.bf16 %v1319, %v1317
        %v1354 = vpack.c.bf16 %v1322, %v1320
        %v1355 = vpack.c.bf16 %v1323, %v1321
        %v1356 = vpack.c.bf16 %v1326, %v1324
        %v1357 = vpack.c.bf16 %v1327, %v1325
        %v1358 = vpack.c.bf16 %v1330, %v1328
        %v1359 = vpack.c.bf16 %v1331, %v1329
        %v1360 = vpack.c.bf16 %v1334, %v1332
        %v1361 = vpack.c.bf16 %v1335, %v1333
        %v1362 = vpack.c.bf16 %v1338, %v1336
        %v1363 = vpack.c.bf16 %v1339, %v1337
        %v1364 = vpack.c.bf16 %v1342, %v1340
        %v1365 = vpack.c.bf16 %v1343, %v1341
        %v1366 = vpack.c.bf16 %v1346, %v1344
        %v1367 = vpack.c.bf16 %v1347, %v1345
        %v1372 = vunpack.c.l.b16 %v1348
        %v1373 = vunpack.c.l.b16 %v1349
        %v1374 = vunpack.c.l.b16 %v1350
        %v1375 = vunpack.c.l.b16 %v1351
        %v1376 = vpack.c.b16 %v1373, %v1372
        %v1377 = vpack.c.b16 %v1375, %v1374
        %1380 = vmatprep.subr.bf16.mxu0 %v1367
        %1381 = vmatpush1.bf16.msra.mxu0 %v1366
        %1382 = vmatprep.subr.bf16.mxu0 %v1365
        %1383 = vmatpush1.bf16.msra.mxu0 %v1364
        %1384 = vmatprep.subr.bf16.mxu0 %v1363
        %1385 = vmatpush1.bf16.msra.mxu0 %v1362
        %1386 = vmatprep.subr.bf16.mxu0 %v1361
        %1387 = vmatpush1.bf16.msra.mxu0 %v1360
        %1388 = vmatprep.subr.bf16.mxu0 %v1359
        %1389 = vmatpush1.bf16.msra.mxu0 %v1358
        %1390 = vmatprep.subr.bf16.mxu0 %v1357
        %1391 = vmatpush1.bf16.msra.mxu0 %v1356
        %1392 = vmatprep.subr.bf16.mxu0 %v1355
        %1393 = vmatpush1.bf16.msra.mxu0 %v1354
        %1394 = vmatprep.subr.bf16.mxu0 %v1353
        %1395 = vmatpush1.bf16.msra.mxu0 %v1352
        %1396 = vmatprep.subr.bf16.mxu0 0
        %1397 = vmatpush2.bf16.msra.mxu0 0
        %1398 = vmatprep.subr.bf16.mxu0 0
        %1399 = vmatpush2.bf16.msra.mxu0 0
        %1400 = vmatprep.subr.bf16.mxu0 0
        %1401 = vmatpush2.bf16.msra.mxu0 0
        %1402 = vmatprep.subr.bf16.mxu0 0
        %1403 = vmatpush2.bf16.msra.mxu0 0
        %1404 = vmatprep.subr.bf16.mxu0 0
        %1405 = vmatpush2.bf16.msra.mxu0 0
        %1406 = vmatprep.subr.bf16.mxu0 0
        %1407 = vmatpush2.bf16.msra.mxu0 0
        %1408 = vmatprep.subr.bf16.mxu0 0
        %1409 = vmatpush2.bf16.msra.mxu0 0
        %1410 = vmatprep.subr.bf16.mxu0 0
        %1411 = vmatpush2.bf16.msra.mxu0 0
        %1412 = vmatprep.mubr.bf16.mxu0 0
        %1413 = vmatmul.mubr.bf16.gmra.mxu0 %v1376
        %v1414 = vpop.f32.mrf.mxu0
        %v1415 = vadd.f32 0.0, %v1414
        %v1416 = vpop.f32.mrf.mxu0
        %v1417 = vadd.f32 0.0, %v1416
        %v1418 = vpop.f32.mrf.mxu0
        %v1419 = vadd.f32 0.0, %v1418
        %v1420 = vpop.f32.mrf.mxu0
        %v1421 = vadd.f32 0.0, %v1420
        %1422 = vmatprep.mubr.bf16.mxu0 0
        %1423 = vmatmul.mubr.bf16.gmra.mxu0 %v1377
        %v1424 = vpop.f32.mrf.mxu0
        %v1425 = vadd.f32 0.0, %v1424
        %v1426 = vpop.f32.mrf.mxu0
        %v1427 = vadd.f32 0.0, %v1426
        %v1428 = vpop.f32.mrf.mxu0
        %v1429 = vadd.f32 0.0, %v1428
        %v1430 = vpop.f32.mrf.mxu0
        %v1431 = vadd.f32 0.0, %v1430
        %1432 = vdwg.mxu0
        %v1433 = vadd.f32 %v278, %v1415
        %v1434 = vadd.f32 %v279, %v1417
        %v1435 = vadd.f32 %v280, %v1419
        %v1436 = vadd.f32 %v281, %v1421
        %v1437 = vadd.f32 %v282, %v1425
        %v1438 = vadd.f32 %v283, %v1427
        %v1439 = vadd.f32 %v284, %v1429
        %v1440 = vadd.f32 %v285, %v1431
        %v1441 = vld [vmem:[%s6] sm:$0xff]
        %v1442 = vld [vmem:[%s6 + $0x8] sm:$0xff]
        %v1443 = vld [vmem:[%s6 + $0x10] sm:$0xff]
        %v1444 = vld [vmem:[%s6 + $0x18] sm:$0xff]
        %1446 = vset.pattern.permute.xlu0 0
        %1447 = vperm.xlu0 %1446, %v1441
        %v1448 = vpop.permute.xlu0 %1447
        %1451 = vset.pattern.permute.xlu0 0
        %1452 = vperm.xlu0 %1451, %v1442
        %v1453 = vpop.permute.xlu0 %1452
        %1456 = vset.pattern.permute.xlu0 0
        %1457 = vperm.xlu0 %1456, %v1443
        %v1458 = vpop.permute.xlu0 %1457
        %1461 = vset.pattern.permute.xlu0 0
        %1462 = vperm.xlu0 %1461, %v1444
        %v1463 = vpop.permute.xlu0 %1462
        %v1465 = vadd.f32 %v1433, %v1448
        %v1466 = vadd.f32 %v1434, %v1448
        %v1467 = vadd.f32 %v1435, %v1453
        %v1468 = vadd.f32 %v1436, %v1453
        %v1469 = vadd.f32 %v1437, %v1458
        %v1470 = vadd.f32 %v1438, %v1458
        %v1471 = vadd.f32 %v1439, %v1463
        %v1472 = vadd.f32 %v1440, %v1463
        %1473 = vst [vmem:[%s271] sm:$0xff] %v1465
        %1474 = vst [vmem:[%s271 + $0x8] sm:$0xff] %v1466
        %1475 = vst [vmem:[%s271 + $0x10] sm:$0xff] %v1467
        %1476 = vst [vmem:[%s271 + $0x18] sm:$0xff] %v1468
        %1477 = vst [vmem:[%s271 + $0x20] sm:$0xff] %v1469
        %1478 = vst [vmem:[%s271 + $0x28] sm:$0xff] %v1470
        %1479 = vst [vmem:[%s271 + $0x30] sm:$0xff] %v1471
        %1480 = vst [vmem:[%s271 + $0x38] sm:$0xff] %v1472
        %s1481 = sand.u32 %s181, 1
        %s1482 = scalar_lea.sflag [#allocation3], %s1481
        %s1483 = sand.u32 %s181, 1
        %s1484 = smul.addr %s1483, 64
        %s1485 = scalar_lea.vmem [#allocation2], %s1484
        // Predicated region
        $region49: #{tpu_custom_call.1} parent=47 // pred_check
          %p1486 = pneg %p191
        $region50: #{tpu_custom_call.1} parent=47 // pred_check_branch
          %1488 = sbr.rel (%p1486) target = $region52
        $region51: #{tpu_custom_call.1} parent=47 // pred_region
          %s1490 = ssub.s32 1024, 1024
          %1491 = vsyncadd %s1482, %s1490
          %s1492 = smul.addr %s21, 8
          %s1493 = smul.addr %s1492, 128
          %s1494 = scalar_lea.hbm %s7, %s1493
          %s1495 = sshll.u32 %s1485, 4
          %s1496 = int_to_ptr.vmem [resolvable:$true] %s1495
          %1501 = dma.vmem_to_hbm [thread:$0]  %s1496, 1024, %s1494, %s1482, 256, 256, 16
        $region52: #{tpu_custom_call.1} parent=47 // pred_fallthru
          _
      $region48: #{tpu_custom_call.1} parent=5 // pred_fallthru
        _
      %p1502 = scmp.le.s32.totalorder 2, %s16
      // Predicated region
      $region53: #{tpu_custom_call.1} parent=5 // pred_check
        %p1503 = pneg %p1502
      $region54: #{tpu_custom_call.1} parent=5 // pred_check_branch
        %1505 = sbr.rel (%p1503) target = $region56
      $region55: #{tpu_custom_call.1} parent=5 // pred_region
        %s1506 = ssub.s32 %s16, 2
        // Predicated region
        $region57: #{tpu_custom_call.1} parent=55 // pred_check
          %p1507 = pneg %p197
        $region58: #{tpu_custom_call.1} parent=55 // pred_check_branch
          %1509 = sbr.rel (%p1507) target = $region60
        $region59: #{tpu_custom_call.1} parent=55 // pred_region
          %s1510 = sand.u32 %s182, 1
          %s1511 = scalar_lea.sflag [#allocation3], %s1510
          %s1512 = sand.u32 %s182, 1
          %s1513 = smul.addr %s1512, 64
          %s1514 = scalar_lea.vmem [#allocation2], %s1513
          %1515 = dma.done %s1511, 1024
        $region60: #{tpu_custom_call.1} parent=55 // pred_fallthru
          _
      $region56: #{tpu_custom_call.1} parent=5 // pred_fallthru
        _
    $region6: #{tpu_custom_call.1} parent=1 // loop_footer
      %s20 = sadd.s32 1, %s16
    $region7: #{tpu_custom_call.1} parent=1 // loop_footer_branch
      %15 = sbr.rel target = $region3
    $region8: #{tpu_custom_call.1} parent=1 // loop_exit
      _
    %1516 = vsyncpa [#allocation3], 1
    %s1517 = scalar_lea.sflag [#allocation3], 1
    %1518 = vsyncpa %s1517, 1

</llo_original>
